<compile_context>
chip_gen: v7x
topology: tpu7x:2x2x1
jax: 0.10.0
libtpu: 0.0.40
codegen_flags: <defaults>
</compile_context>

<pallas_src>
import math
import functools

import jax
import jax.numpy as jnp
from jax.experimental import pallas as pl
from jax.experimental.pallas import tpu as pltpu


# ----------------------------- kernel -------------------------------------

def _branch_kernel(cdt, fast,
                   x_ref, mask_ref,
                   enc_w, enc_b, p1_w, p1_b, p2_w, p2_b,
                   ln1_g, ln1_b, qkv_w, qkv_b, ob,
                   ln2_g, ln2_b, f1w, f1b, f2w, f2b,
                   lnf_g, lnf_b,
                   out_ref, enc_scr):
    f32 = jnp.float32
    D = out_ref.shape[-1]
    layer = pl.program_id(1)

    def mm(a, w):
        # matmul operands in compute dtype (bf16 on the fast path), f32 accumulate
        return jnp.dot(a.astype(cdt), w.astype(cdt), preferred_element_type=f32)

    def mm_t(a, b):
        # a @ b.T without materializing a transpose (contract last dims)
        return jax.lax.dot_general(
            a.astype(cdt), b.astype(cdt),
            dimension_numbers=(((1,), (1,)), ((), ())),
            preferred_element_type=f32)

    def layer_norm(x, g, b):
        mu = jnp.mean(x, axis=-1, keepdims=True)
        var = jnp.maximum(jnp.mean(x * x, axis=-1, keepdims=True) - mu * mu, 0.0)
        return (x - mu) * jax.lax.rsqrt(var + 1e-5) * g + b

    def leaky_relu(x):
        return jnp.where(x >= 0, x, 0.01 * x)

    def gelu_exact(x):
        # matches torch.nn.functional.gelu default (erf form)
        return 0.5 * x * (1.0 + jax.lax.erf(x * (1.0 / math.sqrt(2.0))))

    # ---- prologue: encode() + make_patches(), only on the first layer step ----
    @pl.when(layer == 0)
    def _():
        x = x_ref[...].astype(f32)
        h = leaky_relu(mm(x, enc_w[...]) + enc_b[...])
        t = leaky_relu(mm(h, p1_w[...]) + p1_b[...])
        enc_scr[...] = mm(t, p2_w[...]) + p2_b[...]

    # ---- one transformer layer per grid step along axis 1 ----
    enc = enc_scr[...]
    x1 = layer_norm(enc, ln1_g[...], ln1_b[...])

    # fused QKV projection; 1/sqrt(head_dim) folded into Wq, Wo folded into Wv
    qkv = mm(x1, qkv_w[...]) + qkv_b[...]
    q = qkv[:, 0 * D:1 * D]
    k = qkv[:, 1 * D:2 * D]
    v = qkv[:, 2 * D:3 * D]

    # block-diagonal (M, M) attention: one full-width score matmul, additive
    # mask kills cross-batch-element entries, softmax over the 128-lane axis.
    s = mm_t(q, k) + mask_ref[...]
    s = s - jnp.max(s, axis=-1, keepdims=True)
    p = jnp.exp(s)
    denom = jnp.sum(p, axis=-1, keepdims=True)
    if fast:
        p = p * pl.reciprocal(denom, approx=True)
    else:
        p = p / denom
    attn = mm(p, v) + ob[...]

    x2 = x1 + attn                        # residual on post-norm x1 (matches module)
    x3 = layer_norm(x2, ln2_g[...], ln2_b[...])
    x3 = gelu_exact(mm(x3, f1w[...]) + f1b[...])
    x3 = gelu_exact(mm(x3, f2w[...]) + f2b[...])
    enc_scr[...] = x2 + x3

    # ---- epilogue: final LayerNorm, write output on the last layer step ----
    @pl.when(layer == pl.num_programs(1) - 1)
    def _():
        out_ref[...] = layer_norm(enc_scr[...], lnf_g[...], lnf_b[...]).astype(out_ref.dtype)


# ----------------------------- param prep -----------------------------------

def _prepare_kernel_params(params, proj_dim, f_pad, cdt):
    """Fuse QKV, fold attn scale into Wq and Wo into Wv, pad encode, cast weights."""
    (enc_w, enc_b, p1_w, p1_b, p2_w, p2_b,
     ln1_g, ln1_b, qw, qb, kw, kb, vw, vb, ow, ob,
     ln2_g, ln2_b, f1w, f1b, f2w, f2b, lnf_g, lnf_b) = params

    D = proj_dim
    scale = 1.0 / math.sqrt(D)                       # num_heads = 1 -> head_dim = D
    # Wo folded into the V projection (valid ONLY for num_heads == 1).
    vw_f = jnp.matmul(vw, ow, precision="highest")   # (L, D, D)
    vb_f = jnp.matmul(vb, ow, precision="highest")   # (L, 1, D)
    qkv_w = jnp.concatenate([qw * scale, kw, vw_f], axis=-1)   # (L, D, 3D)
    qkv_b = jnp.concatenate([qb * scale, kb, vb_f], axis=-1)   # (L, 1, 3D)

    F = enc_w.shape[0]
    enc_w_p = jnp.zeros((f_pad, D), enc_w.dtype).at[:F].set(enc_w)

    wt = lambda a: a.astype(cdt)                # matmul operands in compute dtype
    fp = lambda a: a.astype(jnp.float32)        # biases / LN params stay f32

    return (wt(enc_w_p), fp(enc_b), wt(p1_w), fp(p1_b), wt(p2_w), fp(p2_b),
            fp(ln1_g), fp(ln1_b), wt(qkv_w), fp(qkv_b), fp(ob),
            fp(ln2_g), fp(ln2_b), wt(f1w), fp(f1b), wt(f2w), fp(f2b),
            fp(lnf_g), fp(lnf_b))


# ----------------------------- wrapper ---------------------------------------

def branch_forward_pallas(x, params, *, num_layers, proj_dim,
                          rows_per_step=128, use_bf16=True):
    B, N, F = x.shape
    D = proj_dim
    L = num_layers
    cdt = jnp.bfloat16 if use_bf16 else jnp.float32

    # pad feature dim to a sublane-friendly multiple of 8 (zero columns add 0)
    Fp = max(8, ((F + 7) // 8) * 8)
    if Fp != F:
        x = jnp.concatenate([x, jnp.zeros((B, N, Fp - F), x.dtype)], axis=-1)

    # batch tile: largest divisor of B with bt*N <= rows_per_step.
    # 128 rows fills a v5e MXU pass and keeps grid >= 2 so the v7x megacore can
    # split the batch axis over its 2 TensorCores; pass rows_per_step=256 on
    # v6e (single TC, 256-wide MXU) when B is large enough.
    bt = 1
    for c in range(1, B + 1):
        if B % c == 0 and c * N <= rows_per_step:
            bt = c
    M = bt * N
    nb = B // bt

    # flat (B*N, Fp) input: contiguous 2-D DMA, no in-kernel reshape
    x2d = x.reshape(B * N, Fp).astype(jnp.float32)

    # block-diagonal additive mask (hoisted out of the kernel entirely)
    ridx = jnp.arange(M, dtype=jnp.int32) // N
    neg_mask = jnp.where(ridx[:, None] == ridx[None, :],
                         jnp.float32(0.0), jnp.float32(-1e9))

    kparams = _prepare_kernel_params(params, D, Fp, cdt)

    const2 = lambda shape: pl.BlockSpec(shape, lambda b, l: (0, 0))
    perlayer = lambda shape: pl.BlockSpec((None,) + shape, lambda b, l: (l, 0, 0))

    in_specs = [
        pl.BlockSpec((M, Fp), lambda b, l: (b, 0)),            # x rows
        const2((M, M)),                                        # block-diag mask
        const2((Fp, D)), const2((1, D)),                       # encode
        const2((D, D)), const2((1, D)),                        # patch1
        const2((D, D)), const2((1, D)),                        # patch2
        perlayer((1, D)), perlayer((1, D)),                    # ln1 g, b
        perlayer((D, 3 * D)), perlayer((1, 3 * D)),            # fused qkv
        perlayer((1, D)),                                      # attn out bias
        perlayer((1, D)), perlayer((1, D)),                    # ln2 g, b
        perlayer((D, 4 * D)), perlayer((1, 4 * D)),            # fc1
        perlayer((4 * D, D)), perlayer((1, D)),                # fc2
        const2((1, D)), const2((1, D)),                        # final ln g, b
    ]

    kernel = functools.partial(_branch_kernel, cdt, use_bf16)

    out2d = pl.pallas_call(
        kernel,
        out_shape=jax.ShapeDtypeStruct((B * N, D), jnp.float32),
        grid_spec=pltpu.PrefetchScalarGridSpec(
            num_scalar_prefetch=0,
            grid=(nb, L),                                      # layers streamed
            in_specs=in_specs,
            out_specs=pl.BlockSpec((M, D), lambda b, l: (b, 0)),
            scratch_shapes=[pltpu.VMEM((M, D), jnp.float32)],  # carried `enc`
        ),
        compiler_params=pltpu.CompilerParams(
            dimension_semantics=("parallel", "arbitrary"),
            vmem_limit_bytes=32 * 1024 * 1024,
        ),
    )(x2d, neg_mask, *kparams)

    return out2d.reshape(B, N, D)


# ------------------------- pure-JAX reference --------------------------------

def branch_forward_ref(x, params, *, num_layers, proj_dim):
    (enc_w, enc_b, p1_w, p1_b, p2_w, p2_b,
     ln1_g, ln1_b, qw, qb, kw, kb, vw, vb, ow, ob,
     ln2_g, ln2_b, f1w, f1b, f2w, f2b, lnf_g, lnf_b) = params

    def ln(x, g, b):
        mu = jnp.mean(x, axis=-1, keepdims=True)
        var = jnp.mean((x - mu) ** 2, axis=-1, keepdims=True)
        return (x - mu) / jnp.sqrt(var + 1e-5) * g + b

    def lrelu(x):
        return jnp.where(x >= 0, x, 0.01 * x)

    def gelu(x):
        return 0.5 * x * (1.0 + jax.lax.erf(x / math.sqrt(2.0)))

    h = lrelu(x @ enc_w + enc_b)
    t = lrelu(h @ p1_w + p1_b)
    enc = t @ p2_w + p2_b
    scale = 1.0 / math.sqrt(proj_dim)
    for l in range(num_layers):
        x1 = ln(enc, ln1_g[l], ln1_b[l])
        q = x1 @ qw[l] + qb[l]
        k = x1 @ kw[l] + kb[l]
        v = x1 @ vw[l] + vb[l]
        s = jnp.einsum('bnd,bmd->bnm', q, k) * scale
        p = jax.nn.softmax(s, axis=-1)
        a = jnp.einsum('bnm,bmd->bnd', p, v) @ ow[l] + ob[l]
        x2 = x1 + a
        x3 = ln(x2, ln2_g[l], ln2_b[l])
        x3 = gelu(x3 @ f1w[l] + f1b[l])
        x3 = gelu(x3 @ f2w[l] + f2b[l])
        enc = x2 + x3
    return ln(enc, lnf_g, lnf_b)


# ----------------------------- params & main ----------------------------------

def make_params(key, num_features, proj_dim, num_layers):
    D, F, L = proj_dim, num_features, num_layers
    ks = jax.random.split(key, 16)
    s = 0.05
    nrm = lambda k, shape: (jax.random.normal(k, shape, jnp.float32) * s)
    return (
        nrm(ks[0], (F, D)), nrm(ks[1], (1, D)),                 # encode
        nrm(ks[2], (D, D)), nrm(ks[3], (1, D)),                 # patch1
        nrm(ks[4], (D, D)), nrm(ks[5], (1, D)),                 # patch2
        jnp.ones((L, 1, D), jnp.float32), jnp.zeros((L, 1, D), jnp.float32),  # ln1
        nrm(ks[6], (L, D, D)), nrm(ks[7], (L, 1, D)),           # q
        nrm(ks[8], (L, D, D)), nrm(ks[9], (L, 1, D)),           # k
        nrm(ks[10], (L, D, D)), nrm(ks[11], (L, 1, D)),         # v
        nrm(ks[12], (L, D, D)), nrm(ks[13], (L, 1, D)),         # attn out proj
        jnp.ones((L, 1, D), jnp.float32), jnp.zeros((L, 1, D), jnp.float32),  # ln2
        nrm(ks[14], (L, D, 4 * D)), jnp.zeros((L, 1, 4 * D), jnp.float32),    # fc1
        nrm(ks[15], (L, 4 * D, D)), jnp.zeros((L, 1, D), jnp.float32),        # fc2
        jnp.ones((1, D), jnp.float32), jnp.zeros((1, D), jnp.float32),        # final ln
    )


if __name__ == "__main__":
    # small shapes consistent with the module's forward
    batch = 32          # fused into the matmul M dim (16 elems x 8 rows per tile)
    seq = 8             # npart
    num_features = 3
    proj_dim = 128
    num_layers = 4      # num_transformer (scaled down from 8 for the demo)

    key = jax.random.PRNGKey(0)
    kx, kp = jax.random.split(key)
    x = jax.random.normal(kx, (batch, seq, num_features), jnp.float32)
    params = make_params(kp, num_features, proj_dim, num_layers)

    # near-exact f32 reference (avoid XLA's default low-precision f32 matmuls)
    with jax.default_matmul_precision("highest"):
        ref = jax.block_until_ready(
            branch_forward_ref(x, params, num_layers=num_layers, proj_dim=proj_dim))

    # f32-operand path: tight check of the kernel math vs the reference
    out_f32 = jax.block_until_ready(
        branch_forward_pallas(x, params, num_layers=num_layers,
                              proj_dim=proj_dim, use_bf16=False))
    assert out_f32.shape == (batch, seq, proj_dim)
    assert jnp.allclose(out_f32, ref, rtol=2e-3, atol=2e-3), "f32 kernel mismatch"

    # bf16-operand / f32-accumulate path: the fast MXU path on v6e / v7x
    out_bf16 = jax.block_until_ready(
        branch_forward_pallas(x, params, num_layers=num_layers,
                              proj_dim=proj_dim, use_bf16=True))
    assert jnp.allclose(out_bf16, ref, rtol=5e-2, atol=5e-2), "bf16 kernel mismatch"

    print("KERNEL_OK")
</pallas_src>

<mosaic_0001>
module attributes {stable_mosaic.version = 11 : i64} {
  func.func @_branch_kernel(%arg0: i32, %arg1: i32, %arg2: memref<128x8xf32, #tpu.memory_space<vmem>>, %arg3: memref<128x128xf32, #tpu.memory_space<vmem>>, %arg4: memref<8x128xf32, #tpu.memory_space<vmem>>, %arg5: memref<1x128xf32, #tpu.memory_space<vmem>>, %arg6: memref<128x128xf32, #tpu.memory_space<vmem>>, %arg7: memref<1x128xf32, #tpu.memory_space<vmem>>, %arg8: memref<128x128xf32, #tpu.memory_space<vmem>>, %arg9: memref<1x128xf32, #tpu.memory_space<vmem>>, %arg10: memref<1x1x128xf32, #tpu.memory_space<vmem>>, %arg11: memref<1x1x128xf32, #tpu.memory_space<vmem>>, %arg12: memref<1x128x384xf32, #tpu.memory_space<vmem>>, %arg13: memref<1x1x384xf32, #tpu.memory_space<vmem>>, %arg14: memref<1x1x128xf32, #tpu.memory_space<vmem>>, %arg15: memref<1x1x128xf32, #tpu.memory_space<vmem>>, %arg16: memref<1x1x128xf32, #tpu.memory_space<vmem>>, %arg17: memref<1x128x512xf32, #tpu.memory_space<vmem>>, %arg18: memref<1x1x512xf32, #tpu.memory_space<vmem>>, %arg19: memref<1x512x128xf32, #tpu.memory_space<vmem>>, %arg20: memref<1x1x128xf32, #tpu.memory_space<vmem>>, %arg21: memref<1x128xf32, #tpu.memory_space<vmem>>, %arg22: memref<1x128xf32, #tpu.memory_space<vmem>>, %arg23: memref<128x128xf32, #tpu.memory_space<vmem>>, %arg24: memref<128x128xf32, #tpu.memory_space<vmem>>) attributes {dimension_semantics = [#tpu.dimension_semantics<parallel>, #tpu.dimension_semantics<arbitrary>], iteration_bounds = array<i64: 2, 4>, scalar_prefetch = 0 : i64, scratch_operands = 1 : i64, tpu.core_type = #tpu.core_type<tc>, window_params = [{transform_indices = @transform_0, window_bounds = array<i64: 128, 8>}, {pipeline_mode = #tpu.pipeline_mode<synchronous>, transform_indices = @transform_1, window_bounds = array<i64: 128, 128>}, {pipeline_mode = #tpu.pipeline_mode<synchronous>, transform_indices = @transform_2, window_bounds = array<i64: 8, 128>}, {pipeline_mode = #tpu.pipeline_mode<synchronous>, transform_indices = @transform_3, window_bounds = array<i64: 1, 128>}, {pipeline_mode = #tpu.pipeline_mode<synchronous>, transform_indices = @transform_4, window_bounds = array<i64: 128, 128>}, {pipeline_mode = #tpu.pipeline_mode<synchronous>, transform_indices = @transform_5, window_bounds = array<i64: 1, 128>}, {pipeline_mode = #tpu.pipeline_mode<synchronous>, transform_indices = @transform_6, window_bounds = array<i64: 128, 128>}, {pipeline_mode = #tpu.pipeline_mode<synchronous>, transform_indices = @transform_7, window_bounds = array<i64: 1, 128>}, {transform_indices = @transform_8, window_bounds = array<i64: 1, 1, 128>}, {transform_indices = @transform_9, window_bounds = array<i64: 1, 1, 128>}, {transform_indices = @transform_10, window_bounds = array<i64: 1, 128, 384>}, {transform_indices = @transform_11, window_bounds = array<i64: 1, 1, 384>}, {transform_indices = @transform_12, window_bounds = array<i64: 1, 1, 128>}, {transform_indices = @transform_13, window_bounds = array<i64: 1, 1, 128>}, {transform_indices = @transform_14, window_bounds = array<i64: 1, 1, 128>}, {transform_indices = @transform_15, window_bounds = array<i64: 1, 128, 512>}, {transform_indices = @transform_16, window_bounds = array<i64: 1, 1, 512>}, {transform_indices = @transform_17, window_bounds = array<i64: 1, 512, 128>}, {transform_indices = @transform_18, window_bounds = array<i64: 1, 1, 128>}, {pipeline_mode = #tpu.pipeline_mode<synchronous>, transform_indices = @transform_19, window_bounds = array<i64: 1, 128>}, {pipeline_mode = #tpu.pipeline_mode<synchronous>, transform_indices = @transform_20, window_bounds = array<i64: 1, 128>}, {transform_indices = @transform_21, window_bounds = array<i64: 128, 128>}]} {
    %c0_i32 = arith.constant 0 : i32
    %0 = arith.cmpi eq, %arg1, %c0_i32 : i32
    %1 = arith.extui %0 : i1 to i32
    %c0_i32_0 = arith.constant 0 : i32
    %2 = arith.cmpi ne, %1, %c0_i32_0 : i32
    scf.if %2 {
      %c0_64 = arith.constant 0 : index
      %c0_65 = arith.constant 0 : index
      %123 = vector.load %arg2[%c0_64, %c0_65] : memref<128x8xf32, #tpu.memory_space<vmem>>, vector<128x8xf32>
      %c0_66 = arith.constant 0 : index
      %c0_67 = arith.constant 0 : index
      %124 = vector.load %arg4[%c0_66, %c0_67] : memref<8x128xf32, #tpu.memory_space<vmem>>, vector<8x128xf32>
      %cst_68 = arith.constant dense<0.000000e+00> : vector<128x128xf32>
      %125 = tpu.matmul %123, %124, %cst_68 {dimension_numbers = #tpu.dot_dimension_numbers<[1], [0], [0], [1], [0, 0, 1, 1], [], []>} : vector<128x8xf32>, vector<8x128xf32>, vector<128x128xf32> -> vector<128x128xf32>
      %c0_69 = arith.constant 0 : index
      %c0_70 = arith.constant 0 : index
      %126 = vector.load %arg5[%c0_69, %c0_70] : memref<1x128xf32, #tpu.memory_space<vmem>>, vector<1x128xf32>
      %127 = vector.broadcast %126 : vector<1x128xf32> to vector<128x128xf32>
      %128 = arith.addf %125, %127 : vector<128x128xf32>
      %cst_71 = arith.constant 0.000000e+00 : f32
      %129 = vector.broadcast %cst_71 : f32 to vector<128x128xf32>
      %130 = arith.cmpf oge, %128, %129 : vector<128x128xf32>
      %cst_72 = arith.constant 0.00999999977 : f32
      %131 = vector.broadcast %cst_72 : f32 to vector<128x128xf32>
      %132 = arith.mulf %131, %128 : vector<128x128xf32>
      %133 = arith.select %130, %128, %132 : vector<128x128xi1>, vector<128x128xf32>
      %c0_73 = arith.constant 0 : index
      %c0_74 = arith.constant 0 : index
      %134 = vector.load %arg6[%c0_73, %c0_74] : memref<128x128xf32, #tpu.memory_space<vmem>>, vector<128x128xf32>
      %cst_75 = arith.constant dense<0.000000e+00> : vector<128x128xf32>
      %135 = tpu.matmul %133, %134, %cst_75 {dimension_numbers = #tpu.dot_dimension_numbers<[1], [0], [0], [1], [0, 0, 1, 1], [], []>} : vector<128x128xf32>, vector<128x128xf32>, vector<128x128xf32> -> vector<128x128xf32>
      %c0_76 = arith.constant 0 : index
      %c0_77 = arith.constant 0 : index
      %136 = vector.load %arg7[%c0_76, %c0_77] : memref<1x128xf32, #tpu.memory_space<vmem>>, vector<1x128xf32>
      %137 = vector.broadcast %136 : vector<1x128xf32> to vector<128x128xf32>
      %138 = arith.addf %135, %137 : vector<128x128xf32>
      %cst_78 = arith.constant 0.000000e+00 : f32
      %139 = vector.broadcast %cst_78 : f32 to vector<128x128xf32>
      %140 = arith.cmpf oge, %138, %139 : vector<128x128xf32>
      %cst_79 = arith.constant 0.00999999977 : f32
      %141 = vector.broadcast %cst_79 : f32 to vector<128x128xf32>
      %142 = arith.mulf %141, %138 : vector<128x128xf32>
      %143 = arith.select %140, %138, %142 : vector<128x128xi1>, vector<128x128xf32>
      %c0_80 = arith.constant 0 : index
      %c0_81 = arith.constant 0 : index
      %144 = vector.load %arg8[%c0_80, %c0_81] : memref<128x128xf32, #tpu.memory_space<vmem>>, vector<128x128xf32>
      %cst_82 = arith.constant dense<0.000000e+00> : vector<128x128xf32>
      %145 = tpu.matmul %143, %144, %cst_82 {dimension_numbers = #tpu.dot_dimension_numbers<[1], [0], [0], [1], [0, 0, 1, 1], [], []>} : vector<128x128xf32>, vector<128x128xf32>, vector<128x128xf32> -> vector<128x128xf32>
      %c0_83 = arith.constant 0 : index
      %c0_84 = arith.constant 0 : index
      %146 = vector.load %arg9[%c0_83, %c0_84] : memref<1x128xf32, #tpu.memory_space<vmem>>, vector<1x128xf32>
      %147 = vector.broadcast %146 : vector<1x128xf32> to vector<128x128xf32>
      %148 = arith.addf %145, %147 : vector<128x128xf32>
      %c0_85 = arith.constant 0 : index
      %c0_86 = arith.constant 0 : index
      %149 = vector.load %arg24[%c0_85, %c0_86] : memref<128x128xf32, #tpu.memory_space<vmem>>, vector<128x128xf32>
      tpu.vector_store %arg24[%c0_85, %c0_86], %148 {strides = array<i32>} : memref<128x128xf32, #tpu.memory_space<vmem>>, vector<128x128xf32>,
    } else {
    }
    %c0 = arith.constant 0 : index
    %c0_1 = arith.constant 0 : index
    %3 = vector.load %arg24[%c0, %c0_1] : memref<128x128xf32, #tpu.memory_space<vmem>>, vector<128x128xf32>
    %c0_2 = arith.constant 0 : index
    %c0_3 = arith.constant 0 : index
    %c0_4 = arith.constant 0 : index
    %4 = vector.load %arg10[%c0_2, %c0_3, %c0_4] : memref<1x1x128xf32, #tpu.memory_space<vmem>>, vector<1x1x128xf32>
    %5 = vector.shape_cast %4 : vector<1x1x128xf32> to vector<1x128xf32>
    %c0_5 = arith.constant 0 : index
    %c0_6 = arith.constant 0 : index
    %c0_7 = arith.constant 0 : index
    %6 = vector.load %arg11[%c0_5, %c0_6, %c0_7] : memref<1x1x128xf32, #tpu.memory_space<vmem>>, vector<1x1x128xf32>
    %7 = vector.shape_cast %6 : vector<1x1x128xf32> to vector<1x128xf32>
    %cst = arith.constant dense<0.000000e+00> : vector<128xf32>
    %8 = vector.multi_reduction <add>, %3, %cst [1] : vector<128x128xf32> to vector<128xf32>
    %9 = vector.shape_cast %8 : vector<128xf32> to vector<128x1xf32>
    %cst_8 = arith.constant 1.280000e+02 : f32
    %10 = vector.broadcast %cst_8 : f32 to vector<128x1xf32>
    %11 = arith.divf %9, %10 : vector<128x1xf32>
    %12 = arith.mulf %3, %3 : vector<128x128xf32>
    %cst_9 = arith.constant dense<0.000000e+00> : vector<128xf32>
    %13 = vector.multi_reduction <add>, %12, %cst_9 [1] : vector<128x128xf32> to vector<128xf32>
    %14 = vector.shape_cast %13 : vector<128xf32> to vector<128x1xf32>
    %cst_10 = arith.constant 1.280000e+02 : f32
    %15 = vector.broadcast %cst_10 : f32 to vector<128x1xf32>
    %16 = arith.divf %14, %15 : vector<128x1xf32>
    %17 = arith.mulf %11, %11 : vector<128x1xf32>
    %18 = arith.subf %16, %17 : vector<128x1xf32>
    %cst_11 = arith.constant 0.000000e+00 : f32
    %19 = vector.broadcast %cst_11 : f32 to vector<128x1xf32>
    %20 = arith.maximumf %18, %19 : vector<128x1xf32>
    %21 = vector.broadcast %11 : vector<128x1xf32> to vector<128x128xf32>
    %22 = arith.subf %3, %21 : vector<128x128xf32>
    %cst_12 = arith.constant 9.99999974E-6 : f32
    %23 = vector.broadcast %cst_12 : f32 to vector<128x1xf32>
    %24 = arith.addf %20, %23 : vector<128x1xf32>
    %25 = math.rsqrt %24 : vector<128x1xf32>
    %26 = vector.broadcast %25 : vector<128x1xf32> to vector<128x128xf32>
    %27 = arith.mulf %22, %26 : vector<128x128xf32>
    %28 = vector.broadcast %5 : vector<1x128xf32> to vector<128x128xf32>
    %29 = arith.mulf %27, %28 : vector<128x128xf32>
    %30 = vector.broadcast %7 : vector<1x128xf32> to vector<128x128xf32>
    %31 = arith.addf %29, %30 : vector<128x128xf32>
    %c0_13 = arith.constant 0 : index
    %c0_14 = arith.constant 0 : index
    %c0_15 = arith.constant 0 : index
    %32 = vector.load %arg12[%c0_13, %c0_14, %c0_15] : memref<1x128x384xf32, #tpu.memory_space<vmem>>, vector<1x128x384xf32>
    %33 = vector.shape_cast %32 : vector<1x128x384xf32> to vector<128x384xf32>
    %cst_16 = arith.constant dense<0.000000e+00> : vector<128x384xf32>
    %34 = tpu.matmul %31, %33, %cst_16 {dimension_numbers = #tpu.dot_dimension_numbers<[1], [0], [0], [1], [0, 0, 1, 1], [], []>} : vector<128x128xf32>, vector<128x384xf32>, vector<128x384xf32> -> vector<128x384xf32>
    %c0_17 = arith.constant 0 : index
    %c0_18 = arith.constant 0 : index
    %c0_19 = arith.constant 0 : index
    %35 = vector.load %arg13[%c0_17, %c0_18, %c0_19] : memref<1x1x384xf32, #tpu.memory_space<vmem>>, vector<1x1x384xf32>
    %36 = vector.shape_cast %35 : vector<1x1x384xf32> to vector<1x384xf32>
    %37 = vector.broadcast %36 : vector<1x384xf32> to vector<128x384xf32>
    %38 = arith.addf %34, %37 : vector<128x384xf32>
    %39 = vector.extract_strided_slice %38 {offsets = [0, 0], sizes = [128, 128], strides = [1, 1]} : vector<128x384xf32> to vector<128x128xf32>
    %40 = vector.extract_strided_slice %38 {offsets = [0, 128], sizes = [128, 128], strides = [1, 1]} : vector<128x384xf32> to vector<128x128xf32>
    %41 = vector.extract_strided_slice %38 {offsets = [0, 256], sizes = [128, 128], strides = [1, 1]} : vector<128x384xf32> to vector<128x128xf32>
    %cst_20 = arith.constant dense<0.000000e+00> : vector<128x128xf32>
    %42 = tpu.matmul %39, %40, %cst_20 {dimension_numbers = #tpu.dot_dimension_numbers<[1], [1], [0], [0], [0, 0, 1, 0], [], []>} : vector<128x128xf32>, vector<128x128xf32>, vector<128x128xf32> -> vector<128x128xf32>
    %c0_21 = arith.constant 0 : index
    %c0_22 = arith.constant 0 : index
    %43 = vector.load %arg3[%c0_21, %c0_22] : memref<128x128xf32, #tpu.memory_space<vmem>>, vector<128x128xf32>
    %44 = arith.addf %42, %43 : vector<128x128xf32>
    %cst_23 = arith.constant dense<0xFF800000> : vector<128xf32>
    %45 = vector.multi_reduction <maximumf>, %44, %cst_23 [1] : vector<128x128xf32> to vector<128xf32>
    %46 = vector.shape_cast %45 : vector<128xf32> to vector<128x1xf32>
    %47 = vector.broadcast %46 : vector<128x1xf32> to vector<128x128xf32>
    %48 = arith.subf %44, %47 : vector<128x128xf32>
    %49 = math.exp %48 : vector<128x128xf32>
    %cst_24 = arith.constant dense<0.000000e+00> : vector<128xf32>
    %50 = vector.multi_reduction <add>, %49, %cst_24 [1] : vector<128x128xf32> to vector<128xf32>
    %51 = vector.shape_cast %50 : vector<128xf32> to vector<128x1xf32>
    %52 = vector.broadcast %51 : vector<128x1xf32> to vector<128x128xf32>
    %53 = arith.divf %49, %52 : vector<128x128xf32>
    %cst_25 = arith.constant dense<0.000000e+00> : vector<128x128xf32>
    %54 = tpu.matmul %53, %41, %cst_25 {dimension_numbers = #tpu.dot_dimension_numbers<[1], [0], [0], [1], [0, 0, 1, 1], [], []>} : vector<128x128xf32>, vector<128x128xf32>, vector<128x128xf32> -> vector<128x128xf32>
    %c0_26 = arith.constant 0 : index
    %c0_27 = arith.constant 0 : index
    %c0_28 = arith.constant 0 : index
    %55 = vector.load %arg14[%c0_26, %c0_27, %c0_28] : memref<1x1x128xf32, #tpu.memory_space<vmem>>, vector<1x1x128xf32>
    %56 = vector.shape_cast %55 : vector<1x1x128xf32> to vector<1x128xf32>
    %57 = vector.broadcast %56 : vector<1x128xf32> to vector<128x128xf32>
    %58 = arith.addf %54, %57 : vector<128x128xf32>
    %59 = arith.addf %31, %58 : vector<128x128xf32>
    %c0_29 = arith.constant 0 : index
    %c0_30 = arith.constant 0 : index
    %c0_31 = arith.constant 0 : index
    %60 = vector.load %arg15[%c0_29, %c0_30, %c0_31] : memref<1x1x128xf32, #tpu.memory_space<vmem>>, vector<1x1x128xf32>
    %61 = vector.shape_cast %60 : vector<1x1x128xf32> to vector<1x128xf32>
    %c0_32 = arith.constant 0 : index
    %c0_33 = arith.constant 0 : index
    %c0_34 = arith.constant 0 : index
    %62 = vector.load %arg16[%c0_32, %c0_33, %c0_34] : memref<1x1x128xf32, #tpu.memory_space<vmem>>, vector<1x1x128xf32>
    %63 = vector.shape_cast %62 : vector<1x1x128xf32> to vector<1x128xf32>
    %cst_35 = arith.constant dense<0.000000e+00> : vector<128xf32>
    %64 = vector.multi_reduction <add>, %59, %cst_35 [1] : vector<128x128xf32> to vector<128xf32>
    %65 = vector.shape_cast %64 : vector<128xf32> to vector<128x1xf32>
    %cst_36 = arith.constant 1.280000e+02 : f32
    %66 = vector.broadcast %cst_36 : f32 to vector<128x1xf32>
    %67 = arith.divf %65, %66 : vector<128x1xf32>
    %68 = arith.mulf %59, %59 : vector<128x128xf32>
    %cst_37 = arith.constant dense<0.000000e+00> : vector<128xf32>
    %69 = vector.multi_reduction <add>, %68, %cst_37 [1] : vector<128x128xf32> to vector<128xf32>
    %70 = vector.shape_cast %69 : vector<128xf32> to vector<128x1xf32>
    %cst_38 = arith.constant 1.280000e+02 : f32
    %71 = vector.broadcast %cst_38 : f32 to vector<128x1xf32>
    %72 = arith.divf %70, %71 : vector<128x1xf32>
    %73 = arith.mulf %67, %67 : vector<128x1xf32>
    %74 = arith.subf %72, %73 : vector<128x1xf32>
    %cst_39 = arith.constant 0.000000e+00 : f32
    %75 = vector.broadcast %cst_39 : f32 to vector<128x1xf32>
    %76 = arith.maximumf %74, %75 : vector<128x1xf32>
    %77 = vector.broadcast %67 : vector<128x1xf32> to vector<128x128xf32>
    %78 = arith.subf %59, %77 : vector<128x128xf32>
    %cst_40 = arith.constant 9.99999974E-6 : f32
    %79 = vector.broadcast %cst_40 : f32 to vector<128x1xf32>
    %80 = arith.addf %76, %79 : vector<128x1xf32>
    %81 = math.rsqrt %80 : vector<128x1xf32>
    %82 = vector.broadcast %81 : vector<128x1xf32> to vector<128x128xf32>
    %83 = arith.mulf %78, %82 : vector<128x128xf32>
    %84 = vector.broadcast %61 : vector<1x128xf32> to vector<128x128xf32>
    %85 = arith.mulf %83, %84 : vector<128x128xf32>
    %86 = vector.broadcast %63 : vector<1x128xf32> to vector<128x128xf32>
    %87 = arith.addf %85, %86 : vector<128x128xf32>
    %c0_41 = arith.constant 0 : index
    %c0_42 = arith.constant 0 : index
    %c0_43 = arith.constant 0 : index
    %88 = vector.load %arg17[%c0_41, %c0_42, %c0_43] : memref<1x128x512xf32, #tpu.memory_space<vmem>>, vector<1x128x512xf32>
    %89 = vector.shape_cast %88 : vector<1x128x512xf32> to vector<128x512xf32>
    %cst_44 = arith.constant dense<0.000000e+00> : vector<128x512xf32>
    %90 = tpu.matmul %87, %89, %cst_44 {dimension_numbers = #tpu.dot_dimension_numbers<[1], [0], [0], [1], [0, 0, 1, 1], [], []>} : vector<128x128xf32>, vector<128x512xf32>, vector<128x512xf32> -> vector<128x512xf32>
    %c0_45 = arith.constant 0 : index
    %c0_46 = arith.constant 0 : index
    %c0_47 = arith.constant 0 : index
    %91 = vector.load %arg18[%c0_45, %c0_46, %c0_47] : memref<1x1x512xf32, #tpu.memory_space<vmem>>, vector<1x1x512xf32>
    %92 = vector.shape_cast %91 : vector<1x1x512xf32> to vector<1x512xf32>
    %93 = vector.broadcast %92 : vector<1x512xf32> to vector<128x512xf32>
    %94 = arith.addf %90, %93 : vector<128x512xf32>
    %cst_48 = arith.constant 5.000000e-01 : f32
    %95 = vector.broadcast %cst_48 : f32 to vector<128x512xf32>
    %96 = arith.mulf %95, %94 : vector<128x512xf32>
    %cst_49 = arith.constant 0.707106769 : f32
    %97 = vector.broadcast %cst_49 : f32 to vector<128x512xf32>
    %98 = arith.mulf %94, %97 : vector<128x512xf32>
    %99 = math.erf %98 : vector<128x512xf32>
    %cst_50 = arith.constant 1.000000e+00 : f32
    %100 = vector.broadcast %cst_50 : f32 to vector<128x512xf32>
    %101 = arith.addf %100, %99 : vector<128x512xf32>
    %102 = arith.mulf %96, %101 : vector<128x512xf32>
    %c0_51 = arith.constant 0 : index
    %c0_52 = arith.constant 0 : index
    %c0_53 = arith.constant 0 : index
    %103 = vector.load %arg19[%c0_51, %c0_52, %c0_53] : memref<1x512x128xf32, #tpu.memory_space<vmem>>, vector<1x512x128xf32>
    %104 = vector.shape_cast %103 : vector<1x512x128xf32> to vector<512x128xf32>
    %cst_54 = arith.constant dense<0.000000e+00> : vector<128x128xf32>
    %105 = tpu.matmul %102, %104, %cst_54 {dimension_numbers = #tpu.dot_dimension_numbers<[1], [0], [0], [1], [0, 0, 1, 1], [], []>} : vector<128x512xf32>, vector<512x128xf32>, vector<128x128xf32> -> vector<128x128xf32>
    %c0_55 = arith.constant 0 : index
    %c0_56 = arith.constant 0 : index
    %c0_57 = arith.constant 0 : index
    %106 = vector.load %arg20[%c0_55, %c0_56, %c0_57] : memref<1x1x128xf32, #tpu.memory_space<vmem>>, vector<1x1x128xf32>
    %107 = vector.shape_cast %106 : vector<1x1x128xf32> to vector<1x128xf32>
    %108 = vector.broadcast %107 : vector<1x128xf32> to vector<128x128xf32>
    %109 = arith.addf %105, %108 : vector<128x128xf32>
    %cst_58 = arith.constant 5.000000e-01 : f32
    %110 = vector.broadcast %cst_58 : f32 to vector<128x128xf32>
    %111 = arith.mulf %110, %109 : vector<128x128xf32>
    %cst_59 = arith.constant 0.707106769 : f32
    %112 = vector.broadcast %cst_59 : f32 to vector<128x128xf32>
    %113 = arith.mulf %109, %112 : vector<128x128xf32>
    %114 = math.erf %113 : vector<128x128xf32>
    %cst_60 = arith.constant 1.000000e+00 : f32
    %115 = vector.broadcast %cst_60 : f32 to vector<128x128xf32>
    %116 = arith.addf %115, %114 : vector<128x128xf32>
    %117 = arith.mulf %111, %116 : vector<128x128xf32>
    %118 = arith.addf %59, %117 : vector<128x128xf32>
    %c0_61 = arith.constant 0 : index
    %c0_62 = arith.constant 0 : index
    %119 = vector.load %arg24[%c0_61, %c0_62] : memref<128x128xf32, #tpu.memory_space<vmem>>, vector<128x128xf32>
    tpu.vector_store %arg24[%c0_61, %c0_62], %118 {strides = array<i32>} : memref<128x128xf32, #tpu.memory_space<vmem>>, vector<128x128xf32>,
    %c3_i32 = arith.constant 3 : i32
    %120 = arith.cmpi eq, %arg1, %c3_i32 : i32
    %121 = arith.extui %120 : i1 to i32
    %c0_i32_63 = arith.constant 0 : i32
    %122 = arith.cmpi ne, %121, %c0_i32_63 : i32
    scf.if %122 {
      %c0_64 = arith.constant 0 : index
      %c0_65 = arith.constant 0 : index
      %123 = vector.load %arg24[%c0_64, %c0_65] : memref<128x128xf32, #tpu.memory_space<vmem>>, vector<128x128xf32>
      %c0_66 = arith.constant 0 : index
      %c0_67 = arith.constant 0 : index
      %124 = vector.load %arg21[%c0_66, %c0_67] : memref<1x128xf32, #tpu.memory_space<vmem>>, vector<1x128xf32>
      %c0_68 = arith.constant 0 : index
      %c0_69 = arith.constant 0 : index
      %125 = vector.load %arg22[%c0_68, %c0_69] : memref<1x128xf32, #tpu.memory_space<vmem>>, vector<1x128xf32>
      %cst_70 = arith.constant dense<0.000000e+00> : vector<128xf32>
      %126 = vector.multi_reduction <add>, %123, %cst_70 [1] : vector<128x128xf32> to vector<128xf32>
      %127 = vector.shape_cast %126 : vector<128xf32> to vector<128x1xf32>
      %cst_71 = arith.constant 1.280000e+02 : f32
      %128 = vector.broadcast %cst_71 : f32 to vector<128x1xf32>
      %129 = arith.divf %127, %128 : vector<128x1xf32>
      %130 = arith.mulf %123, %123 : vector<128x128xf32>
      %cst_72 = arith.constant dense<0.000000e+00> : vector<128xf32>
      %131 = vector.multi_reduction <add>, %130, %cst_72 [1] : vector<128x128xf32> to vector<128xf32>
      %132 = vector.shape_cast %131 : vector<128xf32> to vector<128x1xf32>
      %cst_73 = arith.constant 1.280000e+02 : f32
      %133 = vector.broadcast %cst_73 : f32 to vector<128x1xf32>
      %134 = arith.divf %132, %133 : vector<128x1xf32>
      %135 = arith.mulf %129, %129 : vector<128x1xf32>
      %136 = arith.subf %134, %135 : vector<128x1xf32>
      %cst_74 = arith.constant 0.000000e+00 : f32
      %137 = vector.broadcast %cst_74 : f32 to vector<128x1xf32>
      %138 = arith.maximumf %136, %137 : vector<128x1xf32>
      %139 = vector.broadcast %129 : vector<128x1xf32> to vector<128x128xf32>
      %140 = arith.subf %123, %139 : vector<128x128xf32>
      %cst_75 = arith.constant 9.99999974E-6 : f32
      %141 = vector.broadcast %cst_75 : f32 to vector<128x1xf32>
      %142 = arith.addf %138, %141 : vector<128x1xf32>
      %143 = math.rsqrt %142 : vector<128x1xf32>
      %144 = vector.broadcast %143 : vector<128x1xf32> to vector<128x128xf32>
      %145 = arith.mulf %140, %144 : vector<128x128xf32>
      %146 = vector.broadcast %124 : vector<1x128xf32> to vector<128x128xf32>
      %147 = arith.mulf %145, %146 : vector<128x128xf32>
      %148 = vector.broadcast %125 : vector<1x128xf32> to vector<128x128xf32>
      %149 = arith.addf %147, %148 : vector<128x128xf32>
      %c0_76 = arith.constant 0 : index
      %c0_77 = arith.constant 0 : index
      %150 = vector.load %arg23[%c0_76, %c0_77] : memref<128x128xf32, #tpu.memory_space<vmem>>, vector<128x128xf32>
      tpu.vector_store %arg23[%c0_76, %c0_77], %149 {strides = array<i32>} : memref<128x128xf32, #tpu.memory_space<vmem>>, vector<128x128xf32>,
    } else {
    }
    return
  }
  func.func @transform_0(%arg0: i32, %arg1: i32) -> (i32, i32) {
    %c0_i32 = arith.constant 0 : i32
    %c0_i32_0 = arith.constant 0 : i32
    return %arg0, %c0_i32 : i32, i32
  }
  func.func @transform_1(%arg0: i32, %arg1: i32) -> (i32, i32) {
    %c0_i32 = arith.constant 0 : i32
    %c0_i32_0 = arith.constant 0 : i32
    %c0_i32_1 = arith.constant 0 : i32
    return %c0_i32, %c0_i32_0 : i32, i32
  }
  func.func @transform_2(%arg0: i32, %arg1: i32) -> (i32, i32) {
    %c0_i32 = arith.constant 0 : i32
    %c0_i32_0 = arith.constant 0 : i32
    %c0_i32_1 = arith.constant 0 : i32
    return %c0_i32, %c0_i32_0 : i32, i32
  }
  func.func @transform_3(%arg0: i32, %arg1: i32) -> (i32, i32) {
    %c0_i32 = arith.constant 0 : i32
    %c0_i32_0 = arith.constant 0 : i32
    %c0_i32_1 = arith.constant 0 : i32
    return %c0_i32, %c0_i32_0 : i32, i32
  }
  func.func @transform_4(%arg0: i32, %arg1: i32) -> (i32, i32) {
    %c0_i32 = arith.constant 0 : i32
    %c0_i32_0 = arith.constant 0 : i32
    %c0_i32_1 = arith.constant 0 : i32
    return %c0_i32, %c0_i32_0 : i32, i32
  }
  func.func @transform_5(%arg0: i32, %arg1: i32) -> (i32, i32) {
    %c0_i32 = arith.constant 0 : i32
    %c0_i32_0 = arith.constant 0 : i32
    %c0_i32_1 = arith.constant 0 : i32
    return %c0_i32, %c0_i32_0 : i32, i32
  }
  func.func @transform_6(%arg0: i32, %arg1: i32) -> (i32, i32) {
    %c0_i32 = arith.constant 0 : i32
    %c0_i32_0 = arith.constant 0 : i32
    %c0_i32_1 = arith.constant 0 : i32
    return %c0_i32, %c0_i32_0 : i32, i32
  }
  func.func @transform_7(%arg0: i32, %arg1: i32) -> (i32, i32) {
    %c0_i32 = arith.constant 0 : i32
    %c0_i32_0 = arith.constant 0 : i32
    %c0_i32_1 = arith.constant 0 : i32
    return %c0_i32, %c0_i32_0 : i32, i32
  }
  func.func @transform_8(%arg0: i32, %arg1: i32) -> (i32, i32, i32) {
    %c0_i32 = arith.constant 0 : i32
    %c0_i32_0 = arith.constant 0 : i32
    %c0_i32_1 = arith.constant 0 : i32
    return %arg1, %c0_i32, %c0_i32_0 : i32, i32, i32
  }
  func.func @transform_9(%arg0: i32, %arg1: i32) -> (i32, i32, i32) {
    %c0_i32 = arith.constant 0 : i32
    %c0_i32_0 = arith.constant 0 : i32
    %c0_i32_1 = arith.constant 0 : i32
    return %arg1, %c0_i32, %c0_i32_0 : i32, i32, i32
  }
  func.func @transform_10(%arg0: i32, %arg1: i32) -> (i32, i32, i32) {
    %c0_i32 = arith.constant 0 : i32
    %c0_i32_0 = arith.constant 0 : i32
    %c0_i32_1 = arith.constant 0 : i32
    return %arg1, %c0_i32, %c0_i32_0 : i32, i32, i32
  }
  func.func @transform_11(%arg0: i32, %arg1: i32) -> (i32, i32, i32) {
    %c0_i32 = arith.constant 0 : i32
    %c0_i32_0 = arith.constant 0 : i32
    %c0_i32_1 = arith.constant 0 : i32
    return %arg1, %c0_i32, %c0_i32_0 : i32, i32, i32
  }
  func.func @transform_12(%arg0: i32, %arg1: i32) -> (i32, i32, i32) {
    %c0_i32 = arith.constant 0 : i32
    %c0_i32_0 = arith.constant 0 : i32
    %c0_i32_1 = arith.constant 0 : i32
    return %arg1, %c0_i32, %c0_i32_0 : i32, i32, i32
  }
  func.func @transform_13(%arg0: i32, %arg1: i32) -> (i32, i32, i32) {
    %c0_i32 = arith.constant 0 : i32
    %c0_i32_0 = arith.constant 0 : i32
    %c0_i32_1 = arith.constant 0 : i32
    return %arg1, %c0_i32, %c0_i32_0 : i32, i32, i32
  }
  func.func @transform_14(%arg0: i32, %arg1: i32) -> (i32, i32, i32) {
    %c0_i32 = arith.constant 0 : i32
    %c0_i32_0 = arith.constant 0 : i32
    %c0_i32_1 = arith.constant 0 : i32
    return %arg1, %c0_i32, %c0_i32_0 : i32, i32, i32
  }
  func.func @transform_15(%arg0: i32, %arg1: i32) -> (i32, i32, i32) {
    %c0_i32 = arith.constant 0 : i32
    %c0_i32_0 = arith.constant 0 : i32
    %c0_i32_1 = arith.constant 0 : i32
    return %arg1, %c0_i32, %c0_i32_0 : i32, i32, i32
  }
  func.func @transform_16(%arg0: i32, %arg1: i32) -> (i32, i32, i32) {
    %c0_i32 = arith.constant 0 : i32
    %c0_i32_0 = arith.constant 0 : i32
    %c0_i32_1 = arith.constant 0 : i32
    return %arg1, %c0_i32, %c0_i32_0 : i32, i32, i32
  }
  func.func @transform_17(%arg0: i32, %arg1: i32) -> (i32, i32, i32) {
    %c0_i32 = arith.constant 0 : i32
    %c0_i32_0 = arith.constant 0 : i32
    %c0_i32_1 = arith.constant 0 : i32
    return %arg1, %c0_i32, %c0_i32_0 : i32, i32, i32
  }
  func.func @transform_18(%arg0: i32, %arg1: i32) -> (i32, i32, i32) {
    %c0_i32 = arith.constant 0 : i32
    %c0_i32_0 = arith.constant 0 : i32
    %c0_i32_1 = arith.constant 0 : i32
    return %arg1, %c0_i32, %c0_i32_0 : i32, i32, i32
  }
  func.func @transform_19(%arg0: i32, %arg1: i32) -> (i32, i32) {
    %c0_i32 = arith.constant 0 : i32
    %c0_i32_0 = arith.constant 0 : i32
    %c0_i32_1 = arith.constant 0 : i32
    return %c0_i32, %c0_i32_0 : i32, i32
  }
  func.func @transform_20(%arg0: i32, %arg1: i32) -> (i32, i32) {
    %c0_i32 = arith.constant 0 : i32
    %c0_i32_0 = arith.constant 0 : i32
    %c0_i32_1 = arith.constant 0 : i32
    return %c0_i32, %c0_i32_0 : i32, i32
  }
  func.func @transform_21(%arg0: i32, %arg1: i32) -> (i32, i32) {
    %c0_i32 = arith.constant 0 : i32
    %c0_i32_0 = arith.constant 0 : i32
    return %arg0, %c0_i32 : i32, i32
  }
}

</mosaic_0001>

<llo_original>
// kernel: tpu_custom_call.1
$region0: #{tpu_custom_call.1}
  #allocation0 [shape = 'u32[]', space=smem, size = 0x4, offset = 0x4, fixed_abs, tag = 'smem constant byte address 0x4 - core index']
  #allocation1 [shape = 'u32[144,128]{1,0:T(1,128)}', space=vmem, size = 0x12000, scoped, tag = 'internal scratch']
  #allocation2 [shape = 'f32[128,128]{1,0:T(8,128)}', space=vmem, size = 0x10000, scoped, tag = 'scratch operand']
  %s0 = inlined_call_operand.vmem [shape: f32[256,8], index: 0, kind: input, shape index: {}]
  %s1 = inlined_call_operand.vmem [shape: f32[128,128], index: 1, kind: input, shape index: {}]
  %s2 = inlined_call_operand.hbm [shape: f32[8,128], index: 2, kind: input, shape index: {}]
  %s3 = inlined_call_operand.vmem [shape: f32[1,128], index: 3, kind: input, shape index: {}]
  %s4 = inlined_call_operand.vmem [shape: f32[128,128], index: 4, kind: input, shape index: {}]
  %s5 = inlined_call_operand.hbm [shape: f32[1,128], index: 5, kind: input, shape index: {}]
  %s6 = inlined_call_operand.hbm [shape: f32[128,128], index: 6, kind: input, shape index: {}]
  %s7 = inlined_call_operand.hbm [shape: f32[1,128], index: 7, kind: input, shape index: {}]
  %s8 = inlined_call_operand.vmem [shape: f32[4,1,128], index: 8, kind: input, shape index: {}]
  %s9 = inlined_call_operand.vmem [shape: f32[4,1,128], index: 9, kind: input, shape index: {}]
  %s10 = inlined_call_operand.hbm [shape: f32[4,128,384], index: 10, kind: input, shape index: {}]
  %s11 = inlined_call_operand.vmem [shape: f32[4,1,384], index: 11, kind: input, shape index: {}]
  %s12 = inlined_call_operand.vmem [shape: f32[4,1,128], index: 12, kind: input, shape index: {}]
  %s13 = inlined_call_operand.vmem [shape: f32[4,1,128], index: 13, kind: input, shape index: {}]
  %s14 = inlined_call_operand.vmem [shape: f32[4,1,128], index: 14, kind: input, shape index: {}]
  %s15 = inlined_call_operand.hbm [shape: f32[4,128,512], index: 15, kind: input, shape index: {}]
  %s16 = inlined_call_operand.vmem [shape: f32[4,1,512], index: 16, kind: input, shape index: {}]
  %s17 = inlined_call_operand.hbm [shape: f32[4,512,128], index: 17, kind: input, shape index: {}]
  %s18 = inlined_call_operand.vmem [shape: f32[4,1,128], index: 18, kind: input, shape index: {}]
  %s19 = inlined_call_operand.vmem [shape: f32[1,128], index: 19, kind: input, shape index: {}]
  %s20 = inlined_call_operand.vmem [shape: f32[1,128], index: 20, kind: input, shape index: {}]
  %s21 = inlined_call_operand.hbm [shape: f32[256,128], index: 21, kind: output, shape index: {}]
  %s22 = sld [smem:[#allocation0]]
  $region153: #{tpu_custom_call.1} parent=0
    _
  %s24 = ssub.s32 1, %s22
  %s25 = scalar_select 0, %s24, %s22
  $region1: #{tpu_custom_call.1} parent=0
    #allocation3 [shape = 'u8[4096]{0}', space=vmem, size = 0x1000, scoped, tag = 'input window, operand 2, single buffered']
    #allocation4 [shape = 's32[2]{0}', space=sflag, size = 0x8, scoped, tag = 'scoped memory for tpu_custom_call.1']
    #allocation5 [shape = 's32[2]{0}', space=sflag, size = 0x8, scoped, tag = 'scoped memory for tpu_custom_call.1']
    #allocation6 [shape = 'u8[512]{0}', space=vmem, size = 0x400, scoped, tag = 'input window, operand 5, single buffered']
    #allocation7 [shape = 's32[1]{0}', space=sflag, size = 0x4, scoped, tag = 'scoped memory for tpu_custom_call.1']
    #allocation8 [shape = 'u8[65536]{0}', space=vmem, size = 0x10000, scoped, tag = 'input window, operand 6, single buffered']
    #allocation9 [shape = 'u8[512]{0}', space=vmem, size = 0x400, scoped, tag = 'input window, operand 7, single buffered']
    #allocation10 [shape = 's32[1]{0}', space=sflag, size = 0x4, scoped, tag = 'scoped memory for tpu_custom_call.1']
    #allocation11 [shape = 'u8[393216]{0}', space=vmem, size = 0x60000, scoped, tag = 'input window, operand 10']
    #allocation12 [shape = 'u8[524288]{0}', space=vmem, size = 0x80000, scoped, tag = 'input window, operand 15']
    #allocation13 [shape = 'u8[524288]{0}', space=vmem, size = 0x80000, scoped, tag = 'input window, operand 17']
    #allocation14 [shape = 'u8[131072]{0}', space=vmem, size = 0x20000, scoped, tag = 'output window, operand 0']
    %26 = vsyncpa [#allocation4], 0
    %27 = vsyncpa [#allocation7], 0
    %28 = vsyncpa [#allocation10], 0
    %29 = vsyncpa [#allocation5], 0
    %s30 = scalar_lea.sflag [#allocation5], 1
    %31 = vsyncpa %s30, 0
    loop: start=0, step=1, limit=10
    $region2: #{tpu_custom_call.1} parent=1 // loop_pre_header
      _
    $region3: #{tpu_custom_call.1} parent=1 // loop_header
      %s33 = sphi 0, %s37
      %p34 = scmp.ge.s32.totalorder %s33, 10
      %s40 = sphi 0, %s52
      %s41 = sphi 0, %s48
      %s42 = sphi 0, %s40
      %s43 = sphi 0, %s41
      %s44 = sphi 0, %s42
      %s45 = sphi 0, %s43
      %s55 = sphi 0, %s57
      %s58 = sphi 0, %s55
      %s59 = sphi 0, %s58
      %s75 = sphi 0, %s59
      %s79 = sphi 0, %s79
      %s81 = sphi 0, %s79
      %s82 = sphi 0, %s81
      %s96 = sphi 0, %s82
      %s100 = sphi 0, %s100
      %s102 = sphi 0, %s100
      %s103 = sphi 0, %s102
      %s117 = sphi 0, %s103
      %s121 = sphi 0, %s121
      %s123 = sphi 0, %s121
      %s124 = sphi 0, %s123
      %s138 = sphi 0, %s124
      %s142 = sphi 0, %s142
      %s144 = sphi 0, %s142
      %s145 = sphi 0, %s144
      %s159 = sphi 0, %s145
      %s163 = sphi 0, %s163
      %s165 = sphi 0, %s163
      %s166 = sphi 0, %s165
      %s180 = sphi 0, %s166
      %s184 = sphi 0, %s184
      %s186 = sphi 0, %s184
      %s187 = sphi 0, %s186
      %s201 = sphi 0, %s187
      %s205 = sphi 0, %s205
      %s207 = sphi 0, %s205
      %s208 = sphi 0, %s207
      %s222 = sphi 0, %s208
      %s228 = sphi 0, %s230
      %s231 = sphi 0, %s228
      %s232 = sphi 0, %s231
      %s248 = sphi 0, %s232
      %s254 = sphi 0, %s256
      %s257 = sphi 0, %s254
      %s258 = sphi 0, %s257
      %s274 = sphi 0, %s258
      %s280 = sphi 0, %s282
      %s283 = sphi 0, %s280
      %s284 = sphi 0, %s283
      %s300 = sphi 0, %s284
      %s306 = sphi 0, %s308
      %s309 = sphi 0, %s306
      %s310 = sphi 0, %s309
      %s326 = sphi 0, %s310
      %s332 = sphi 0, %s334
      %s335 = sphi 0, %s332
      %s336 = sphi 0, %s335
      %s352 = sphi 0, %s336
      %s358 = sphi 0, %s360
      %s361 = sphi 0, %s358
      %s362 = sphi 0, %s361
      %s378 = sphi 0, %s362
      %s384 = sphi 0, %s386
      %s387 = sphi 0, %s384
      %s388 = sphi 0, %s387
      %s404 = sphi 0, %s388
      %s410 = sphi 0, %s412
      %s413 = sphi 0, %s410
      %s414 = sphi 0, %s413
      %s430 = sphi 0, %s414
      %s436 = sphi 0, %s438
      %s439 = sphi 0, %s436
      %s440 = sphi 0, %s439
      %s456 = sphi 0, %s440
      %s462 = sphi 0, %s464
      %s465 = sphi 0, %s462
      %s466 = sphi 0, %s465
      %s482 = sphi 0, %s466
      %s488 = sphi 0, %s490
      %s491 = sphi 0, %s488
      %s492 = sphi 0, %s491
      %s508 = sphi 0, %s492
      %s512 = sphi 0, %s512
      %s514 = sphi 0, %s512
      %s515 = sphi 0, %s514
      %s529 = sphi 0, %s515
      %s533 = sphi 0, %s533
      %s535 = sphi 0, %s533
      %s536 = sphi 0, %s535
      %s550 = sphi 0, %s536
      %s556 = sphi 0, %s558
      %s559 = sphi 0, %s556
      %s560 = sphi 0, %s559
      %s576 = sphi 0, %s560
    $region4: #{tpu_custom_call.1} parent=1 // loop_header_branch
      %36 = sbr.rel (%p34) target = $region8
    $region5: #{tpu_custom_call.1} parent=1 // loop_body
      %s38 = ssub.s32 %s33, 1
      %s39 = ssub.s32 %s33, 2
      %s46 = sadd.s32 1, %s41
      %p47 = scmp.ge.s32.totalorder %s46, 4
      %s48 = scalar_select %p47, 0, %s46
      %s49 = sadd.s32 1, %s40
      %s50 = scalar_select %p47, %s49, %s40
      %p51 = scmp.ge.s32.totalorder %s50, 2
      %s52 = scalar_select %p51, 0, %s50
      %s53 = ssub.s32 %s40, %s52
      %p54 = scmp.eq.s32.totalorder %s53, 0
      %s56 = sadd.s32 %s55, 1
      %s57 = scalar_select %p54, %s55, %s56
      %p60 = pneg %p54
      %p61 = scmp.eq.s32.totalorder %s33, 7
      %p62 = por %p60, %p61
      %p63 = scmp.ne.s32.totalorder %s55, %s58
      %p64 = scmp.eq.s32.totalorder %s33, 0
      %p65 = por %p63, %p64
      %p66 = scmp.ne.s32.totalorder %s55, %s58
      %p67 = scmp.eq.s32.totalorder %s38, 7
      %p68 = por %p66, %p67
      %p69 = scmp.ne.s32.totalorder %s58, %s59
      %p70 = scmp.eq.s32.totalorder %s38, 0
      %p71 = por %p69, %p70
      %p72 = scmp.ne.s32.totalorder %s58, %s59
      %p73 = scmp.eq.s32.totalorder %s39, 7
      %p74 = por %p72, %p73
      %p76 = scmp.ne.s32.totalorder %s59, %s75
      %p77 = scmp.eq.s32.totalorder %s39, 0
      %p78 = por %p76, %p77
      %s80 = sadd.s32 %s79, 1
      %p83 = scmp.eq.s32.totalorder %s33, 7
      %p84 = scmp.ne.s32.totalorder %s79, %s81
      %p85 = scmp.eq.s32.totalorder %s33, 0
      %p86 = por %p84, %p85
      %p87 = scmp.ne.s32.totalorder %s79, %s81
      %p88 = scmp.eq.s32.totalorder %s38, 7
      %p89 = por %p87, %p88
      %p90 = scmp.ne.s32.totalorder %s81, %s82
      %p91 = scmp.eq.s32.totalorder %s38, 0
      %p92 = por %p90, %p91
      %p93 = scmp.ne.s32.totalorder %s81, %s82
      %p94 = scmp.eq.s32.totalorder %s39, 7
      %p95 = por %p93, %p94
      %p97 = scmp.ne.s32.totalorder %s82, %s96
      %p98 = scmp.eq.s32.totalorder %s39, 0
      %p99 = por %p97, %p98
      %s101 = sadd.s32 %s100, 1
      %p104 = scmp.eq.s32.totalorder %s33, 7
      %p105 = scmp.ne.s32.totalorder %s100, %s102
      %p106 = scmp.eq.s32.totalorder %s33, 0
      %p107 = por %p105, %p106
      %p108 = scmp.ne.s32.totalorder %s100, %s102
      %p109 = scmp.eq.s32.totalorder %s38, 7
      %p110 = por %p108, %p109
      %p111 = scmp.ne.s32.totalorder %s102, %s103
      %p112 = scmp.eq.s32.totalorder %s38, 0
      %p113 = por %p111, %p112
      %p114 = scmp.ne.s32.totalorder %s102, %s103
      %p115 = scmp.eq.s32.totalorder %s39, 7
      %p116 = por %p114, %p115
      %p118 = scmp.ne.s32.totalorder %s103, %s117
      %p119 = scmp.eq.s32.totalorder %s39, 0
      %p120 = por %p118, %p119
      %s122 = sadd.s32 %s121, 1
      %p125 = scmp.eq.s32.totalorder %s33, 7
      %p126 = scmp.ne.s32.totalorder %s121, %s123
      %p127 = scmp.eq.s32.totalorder %s33, 0
      %p128 = por %p126, %p127
      %p129 = scmp.ne.s32.totalorder %s121, %s123
      %p130 = scmp.eq.s32.totalorder %s38, 7
      %p131 = por %p129, %p130
      %p132 = scmp.ne.s32.totalorder %s123, %s124
      %p133 = scmp.eq.s32.totalorder %s38, 0
      %p134 = por %p132, %p133
      %p135 = scmp.ne.s32.totalorder %s123, %s124
      %p136 = scmp.eq.s32.totalorder %s39, 7
      %p137 = por %p135, %p136
      %p139 = scmp.ne.s32.totalorder %s124, %s138
      %p140 = scmp.eq.s32.totalorder %s39, 0
      %p141 = por %p139, %p140
      %s143 = sadd.s32 %s142, 1
      %p146 = scmp.eq.s32.totalorder %s33, 7
      %p147 = scmp.ne.s32.totalorder %s142, %s144
      %p148 = scmp.eq.s32.totalorder %s33, 0
      %p149 = por %p147, %p148
      %p150 = scmp.ne.s32.totalorder %s142, %s144
      %p151 = scmp.eq.s32.totalorder %s38, 7
      %p152 = por %p150, %p151
      %p153 = scmp.ne.s32.totalorder %s144, %s145
      %p154 = scmp.eq.s32.totalorder %s38, 0
      %p155 = por %p153, %p154
      %p156 = scmp.ne.s32.totalorder %s144, %s145
      %p157 = scmp.eq.s32.totalorder %s39, 7
      %p158 = por %p156, %p157
      %p160 = scmp.ne.s32.totalorder %s145, %s159
      %p161 = scmp.eq.s32.totalorder %s39, 0
      %p162 = por %p160, %p161
      %s164 = sadd.s32 %s163, 1
      %p167 = scmp.eq.s32.totalorder %s33, 7
      %p168 = scmp.ne.s32.totalorder %s163, %s165
      %p169 = scmp.eq.s32.totalorder %s33, 0
      %p170 = por %p168, %p169
      %p171 = scmp.ne.s32.totalorder %s163, %s165
      %p172 = scmp.eq.s32.totalorder %s38, 7
      %p173 = por %p171, %p172
      %p174 = scmp.ne.s32.totalorder %s165, %s166
      %p175 = scmp.eq.s32.totalorder %s38, 0
      %p176 = por %p174, %p175
      %p177 = scmp.ne.s32.totalorder %s165, %s166
      %p178 = scmp.eq.s32.totalorder %s39, 7
      %p179 = por %p177, %p178
      %p181 = scmp.ne.s32.totalorder %s166, %s180
      %p182 = scmp.eq.s32.totalorder %s39, 0
      %p183 = por %p181, %p182
      %s185 = sadd.s32 %s184, 1
      %p188 = scmp.eq.s32.totalorder %s33, 7
      %p189 = scmp.ne.s32.totalorder %s184, %s186
      %p190 = scmp.eq.s32.totalorder %s33, 0
      %p191 = por %p189, %p190
      %p192 = scmp.ne.s32.totalorder %s184, %s186
      %p193 = scmp.eq.s32.totalorder %s38, 7
      %p194 = por %p192, %p193
      %p195 = scmp.ne.s32.totalorder %s186, %s187
      %p196 = scmp.eq.s32.totalorder %s38, 0
      %p197 = por %p195, %p196
      %p198 = scmp.ne.s32.totalorder %s186, %s187
      %p199 = scmp.eq.s32.totalorder %s39, 7
      %p200 = por %p198, %p199
      %p202 = scmp.ne.s32.totalorder %s187, %s201
      %p203 = scmp.eq.s32.totalorder %s39, 0
      %p204 = por %p202, %p203
      %s206 = sadd.s32 %s205, 1
      %p209 = scmp.eq.s32.totalorder %s33, 7
      %p210 = scmp.ne.s32.totalorder %s205, %s207
      %p211 = scmp.eq.s32.totalorder %s33, 0
      %p212 = por %p210, %p211
      %p213 = scmp.ne.s32.totalorder %s205, %s207
      %p214 = scmp.eq.s32.totalorder %s38, 7
      %p215 = por %p213, %p214
      %p216 = scmp.ne.s32.totalorder %s207, %s208
      %p217 = scmp.eq.s32.totalorder %s38, 0
      %p218 = por %p216, %p217
      %p219 = scmp.ne.s32.totalorder %s207, %s208
      %p220 = scmp.eq.s32.totalorder %s39, 7
      %p221 = por %p219, %p220
      %p223 = scmp.ne.s32.totalorder %s208, %s222
      %p224 = scmp.eq.s32.totalorder %s39, 0
      %p225 = por %p223, %p224
      %s226 = ssub.s32 %s41, %s48
      %p227 = scmp.eq.s32.totalorder %s226, 0
      %s229 = sadd.s32 %s228, 1
      %s230 = scalar_select %p227, %s228, %s229
      %p233 = pneg %p227
      %p234 = scmp.eq.s32.totalorder %s33, 7
      %p235 = por %p233, %p234
      %p236 = scmp.ne.s32.totalorder %s228, %s231
      %p237 = scmp.eq.s32.totalorder %s33, 0
      %p238 = por %p236, %p237
      %p239 = scmp.ne.s32.totalorder %s228, %s231
      %p240 = scmp.eq.s32.totalorder %s38, 7
      %p241 = por %p239, %p240
      %p242 = scmp.ne.s32.totalorder %s231, %s232
      %p243 = scmp.eq.s32.totalorder %s38, 0
      %p244 = por %p242, %p243
      %p245 = scmp.ne.s32.totalorder %s231, %s232
      %p246 = scmp.eq.s32.totalorder %s39, 7
      %p247 = por %p245, %p246
      %p249 = scmp.ne.s32.totalorder %s232, %s248
      %p250 = scmp.eq.s32.totalorder %s39, 0
      %p251 = por %p249, %p250
      %s252 = ssub.s32 %s41, %s48
      %p253 = scmp.eq.s32.totalorder %s252, 0
      %s255 = sadd.s32 %s254, 1
      %s256 = scalar_select %p253, %s254, %s255
      %p259 = pneg %p253
      %p260 = scmp.eq.s32.totalorder %s33, 7
      %p261 = por %p259, %p260
      %p262 = scmp.ne.s32.totalorder %s254, %s257
      %p263 = scmp.eq.s32.totalorder %s33, 0
      %p264 = por %p262, %p263
      %p265 = scmp.ne.s32.totalorder %s254, %s257
      %p266 = scmp.eq.s32.totalorder %s38, 7
      %p267 = por %p265, %p266
      %p268 = scmp.ne.s32.totalorder %s257, %s258
      %p269 = scmp.eq.s32.totalorder %s38, 0
      %p270 = por %p268, %p269
      %p271 = scmp.ne.s32.totalorder %s257, %s258
      %p272 = scmp.eq.s32.totalorder %s39, 7
      %p273 = por %p271, %p272
      %p275 = scmp.ne.s32.totalorder %s258, %s274
      %p276 = scmp.eq.s32.totalorder %s39, 0
      %p277 = por %p275, %p276
      %s278 = ssub.s32 %s41, %s48
      %p279 = scmp.eq.s32.totalorder %s278, 0
      %s281 = sadd.s32 %s280, 1
      %s282 = scalar_select %p279, %s280, %s281
      %p285 = pneg %p279
      %p286 = scmp.eq.s32.totalorder %s33, 7
      %p287 = por %p285, %p286
      %p288 = scmp.ne.s32.totalorder %s280, %s283
      %p289 = scmp.eq.s32.totalorder %s33, 0
      %p290 = por %p288, %p289
      %p291 = scmp.ne.s32.totalorder %s280, %s283
      %p292 = scmp.eq.s32.totalorder %s38, 7
      %p293 = por %p291, %p292
      %p294 = scmp.ne.s32.totalorder %s283, %s284
      %p295 = scmp.eq.s32.totalorder %s38, 0
      %p296 = por %p294, %p295
      %p297 = scmp.ne.s32.totalorder %s283, %s284
      %p298 = scmp.eq.s32.totalorder %s39, 7
      %p299 = por %p297, %p298
      %p301 = scmp.ne.s32.totalorder %s284, %s300
      %p302 = scmp.eq.s32.totalorder %s39, 0
      %p303 = por %p301, %p302
      %s304 = ssub.s32 %s41, %s48
      %p305 = scmp.eq.s32.totalorder %s304, 0
      %s307 = sadd.s32 %s306, 1
      %s308 = scalar_select %p305, %s306, %s307
      %p311 = pneg %p305
      %p312 = scmp.eq.s32.totalorder %s33, 7
      %p313 = por %p311, %p312
      %p314 = scmp.ne.s32.totalorder %s306, %s309
      %p315 = scmp.eq.s32.totalorder %s33, 0
      %p316 = por %p314, %p315
      %p317 = scmp.ne.s32.totalorder %s306, %s309
      %p318 = scmp.eq.s32.totalorder %s38, 7
      %p319 = por %p317, %p318
      %p320 = scmp.ne.s32.totalorder %s309, %s310
      %p321 = scmp.eq.s32.totalorder %s38, 0
      %p322 = por %p320, %p321
      %p323 = scmp.ne.s32.totalorder %s309, %s310
      %p324 = scmp.eq.s32.totalorder %s39, 7
      %p325 = por %p323, %p324
      %p327 = scmp.ne.s32.totalorder %s310, %s326
      %p328 = scmp.eq.s32.totalorder %s39, 0
      %p329 = por %p327, %p328
      %s330 = ssub.s32 %s41, %s48
      %p331 = scmp.eq.s32.totalorder %s330, 0
      %s333 = sadd.s32 %s332, 1
      %s334 = scalar_select %p331, %s332, %s333
      %p337 = pneg %p331
      %p338 = scmp.eq.s32.totalorder %s33, 7
      %p339 = por %p337, %p338
      %p340 = scmp.ne.s32.totalorder %s332, %s335
      %p341 = scmp.eq.s32.totalorder %s33, 0
      %p342 = por %p340, %p341
      %p343 = scmp.ne.s32.totalorder %s332, %s335
      %p344 = scmp.eq.s32.totalorder %s38, 7
      %p345 = por %p343, %p344
      %p346 = scmp.ne.s32.totalorder %s335, %s336
      %p347 = scmp.eq.s32.totalorder %s38, 0
      %p348 = por %p346, %p347
      %p349 = scmp.ne.s32.totalorder %s335, %s336
      %p350 = scmp.eq.s32.totalorder %s39, 7
      %p351 = por %p349, %p350
      %p353 = scmp.ne.s32.totalorder %s336, %s352
      %p354 = scmp.eq.s32.totalorder %s39, 0
      %p355 = por %p353, %p354
      %s356 = ssub.s32 %s41, %s48
      %p357 = scmp.eq.s32.totalorder %s356, 0
      %s359 = sadd.s32 %s358, 1
      %s360 = scalar_select %p357, %s358, %s359
      %p363 = pneg %p357
      %p364 = scmp.eq.s32.totalorder %s33, 7
      %p365 = por %p363, %p364
      %p366 = scmp.ne.s32.totalorder %s358, %s361
      %p367 = scmp.eq.s32.totalorder %s33, 0
      %p368 = por %p366, %p367
      %p369 = scmp.ne.s32.totalorder %s358, %s361
      %p370 = scmp.eq.s32.totalorder %s38, 7
      %p371 = por %p369, %p370
      %p372 = scmp.ne.s32.totalorder %s361, %s362
      %p373 = scmp.eq.s32.totalorder %s38, 0
      %p374 = por %p372, %p373
      %p375 = scmp.ne.s32.totalorder %s361, %s362
      %p376 = scmp.eq.s32.totalorder %s39, 7
      %p377 = por %p375, %p376
      %p379 = scmp.ne.s32.totalorder %s362, %s378
      %p380 = scmp.eq.s32.totalorder %s39, 0
      %p381 = por %p379, %p380
      %s382 = ssub.s32 %s41, %s48
      %p383 = scmp.eq.s32.totalorder %s382, 0
      %s385 = sadd.s32 %s384, 1
      %s386 = scalar_select %p383, %s384, %s385
      %p389 = pneg %p383
      %p390 = scmp.eq.s32.totalorder %s33, 7
      %p391 = por %p389, %p390
      %p392 = scmp.ne.s32.totalorder %s384, %s387
      %p393 = scmp.eq.s32.totalorder %s33, 0
      %p394 = por %p392, %p393
      %p395 = scmp.ne.s32.totalorder %s384, %s387
      %p396 = scmp.eq.s32.totalorder %s38, 7
      %p397 = por %p395, %p396
      %p398 = scmp.ne.s32.totalorder %s387, %s388
      %p399 = scmp.eq.s32.totalorder %s38, 0
      %p400 = por %p398, %p399
      %p401 = scmp.ne.s32.totalorder %s387, %s388
      %p402 = scmp.eq.s32.totalorder %s39, 7
      %p403 = por %p401, %p402
      %p405 = scmp.ne.s32.totalorder %s388, %s404
      %p406 = scmp.eq.s32.totalorder %s39, 0
      %p407 = por %p405, %p406
      %s408 = ssub.s32 %s41, %s48
      %p409 = scmp.eq.s32.totalorder %s408, 0
      %s411 = sadd.s32 %s410, 1
      %s412 = scalar_select %p409, %s410, %s411
      %p415 = pneg %p409
      %p416 = scmp.eq.s32.totalorder %s33, 7
      %p417 = por %p415, %p416
      %p418 = scmp.ne.s32.totalorder %s410, %s413
      %p419 = scmp.eq.s32.totalorder %s33, 0
      %p420 = por %p418, %p419
      %p421 = scmp.ne.s32.totalorder %s410, %s413
      %p422 = scmp.eq.s32.totalorder %s38, 7
      %p423 = por %p421, %p422
      %p424 = scmp.ne.s32.totalorder %s413, %s414
      %p425 = scmp.eq.s32.totalorder %s38, 0
      %p426 = por %p424, %p425
      %p427 = scmp.ne.s32.totalorder %s413, %s414
      %p428 = scmp.eq.s32.totalorder %s39, 7
      %p429 = por %p427, %p428
      %p431 = scmp.ne.s32.totalorder %s414, %s430
      %p432 = scmp.eq.s32.totalorder %s39, 0
      %p433 = por %p431, %p432
      %s434 = ssub.s32 %s41, %s48
      %p435 = scmp.eq.s32.totalorder %s434, 0
      %s437 = sadd.s32 %s436, 1
      %s438 = scalar_select %p435, %s436, %s437
      %p441 = pneg %p435
      %p442 = scmp.eq.s32.totalorder %s33, 7
      %p443 = por %p441, %p442
      %p444 = scmp.ne.s32.totalorder %s436, %s439
      %p445 = scmp.eq.s32.totalorder %s33, 0
      %p446 = por %p444, %p445
      %p447 = scmp.ne.s32.totalorder %s436, %s439
      %p448 = scmp.eq.s32.totalorder %s38, 7
      %p449 = por %p447, %p448
      %p450 = scmp.ne.s32.totalorder %s439, %s440
      %p451 = scmp.eq.s32.totalorder %s38, 0
      %p452 = por %p450, %p451
      %p453 = scmp.ne.s32.totalorder %s439, %s440
      %p454 = scmp.eq.s32.totalorder %s39, 7
      %p455 = por %p453, %p454
      %p457 = scmp.ne.s32.totalorder %s440, %s456
      %p458 = scmp.eq.s32.totalorder %s39, 0
      %p459 = por %p457, %p458
      %s460 = ssub.s32 %s41, %s48
      %p461 = scmp.eq.s32.totalorder %s460, 0
      %s463 = sadd.s32 %s462, 1
      %s464 = scalar_select %p461, %s462, %s463
      %p467 = pneg %p461
      %p468 = scmp.eq.s32.totalorder %s33, 7
      %p469 = por %p467, %p468
      %p470 = scmp.ne.s32.totalorder %s462, %s465
      %p471 = scmp.eq.s32.totalorder %s33, 0
      %p472 = por %p470, %p471
      %p473 = scmp.ne.s32.totalorder %s462, %s465
      %p474 = scmp.eq.s32.totalorder %s38, 7
      %p475 = por %p473, %p474
      %p476 = scmp.ne.s32.totalorder %s465, %s466
      %p477 = scmp.eq.s32.totalorder %s38, 0
      %p478 = por %p476, %p477
      %p479 = scmp.ne.s32.totalorder %s465, %s466
      %p480 = scmp.eq.s32.totalorder %s39, 7
      %p481 = por %p479, %p480
      %p483 = scmp.ne.s32.totalorder %s466, %s482
      %p484 = scmp.eq.s32.totalorder %s39, 0
      %p485 = por %p483, %p484
      %s486 = ssub.s32 %s41, %s48
      %p487 = scmp.eq.s32.totalorder %s486, 0
      %s489 = sadd.s32 %s488, 1
      %s490 = scalar_select %p487, %s488, %s489
      %p493 = pneg %p487
      %p494 = scmp.eq.s32.totalorder %s33, 7
      %p495 = por %p493, %p494
      %p496 = scmp.ne.s32.totalorder %s488, %s491
      %p497 = scmp.eq.s32.totalorder %s33, 0
      %p498 = por %p496, %p497
      %p499 = scmp.ne.s32.totalorder %s488, %s491
      %p500 = scmp.eq.s32.totalorder %s38, 7
      %p501 = por %p499, %p500
      %p502 = scmp.ne.s32.totalorder %s491, %s492
      %p503 = scmp.eq.s32.totalorder %s38, 0
      %p504 = por %p502, %p503
      %p505 = scmp.ne.s32.totalorder %s491, %s492
      %p506 = scmp.eq.s32.totalorder %s39, 7
      %p507 = por %p505, %p506
      %p509 = scmp.ne.s32.totalorder %s492, %s508
      %p510 = scmp.eq.s32.totalorder %s39, 0
      %p511 = por %p509, %p510
      %s513 = sadd.s32 %s512, 1
      %p516 = scmp.eq.s32.totalorder %s33, 7
      %p517 = scmp.ne.s32.totalorder %s512, %s514
      %p518 = scmp.eq.s32.totalorder %s33, 0
      %p519 = por %p517, %p518
      %p520 = scmp.ne.s32.totalorder %s512, %s514
      %p521 = scmp.eq.s32.totalorder %s38, 7
      %p522 = por %p520, %p521
      %p523 = scmp.ne.s32.totalorder %s514, %s515
      %p524 = scmp.eq.s32.totalorder %s38, 0
      %p525 = por %p523, %p524
      %p526 = scmp.ne.s32.totalorder %s514, %s515
      %p527 = scmp.eq.s32.totalorder %s39, 7
      %p528 = por %p526, %p527
      %p530 = scmp.ne.s32.totalorder %s515, %s529
      %p531 = scmp.eq.s32.totalorder %s39, 0
      %p532 = por %p530, %p531
      %s534 = sadd.s32 %s533, 1
      %p537 = scmp.eq.s32.totalorder %s33, 7
      %p538 = scmp.ne.s32.totalorder %s533, %s535
      %p539 = scmp.eq.s32.totalorder %s33, 0
      %p540 = por %p538, %p539
      %p541 = scmp.ne.s32.totalorder %s533, %s535
      %p542 = scmp.eq.s32.totalorder %s38, 7
      %p543 = por %p541, %p542
      %p544 = scmp.ne.s32.totalorder %s535, %s536
      %p545 = scmp.eq.s32.totalorder %s38, 0
      %p546 = por %p544, %p545
      %p547 = scmp.ne.s32.totalorder %s535, %s536
      %p548 = scmp.eq.s32.totalorder %s39, 7
      %p549 = por %p547, %p548
      %p551 = scmp.ne.s32.totalorder %s536, %s550
      %p552 = scmp.eq.s32.totalorder %s39, 0
      %p553 = por %p551, %p552
      %s554 = ssub.s32 %s40, %s52
      %p555 = scmp.eq.s32.totalorder %s554, 0
      %s557 = sadd.s32 %s556, 1
      %s558 = scalar_select %p555, %s556, %s557
      %p561 = pneg %p555
      %p562 = scmp.eq.s32.totalorder %s33, 7
      %p563 = por %p561, %p562
      %p564 = scmp.ne.s32.totalorder %s556, %s559
      %p565 = scmp.eq.s32.totalorder %s33, 0
      %p566 = por %p564, %p565
      %p567 = scmp.ne.s32.totalorder %s556, %s559
      %p568 = scmp.eq.s32.totalorder %s38, 7
      %p569 = por %p567, %p568
      %p570 = scmp.ne.s32.totalorder %s559, %s560
      %p571 = scmp.eq.s32.totalorder %s38, 0
      %p572 = por %p570, %p571
      %p573 = scmp.ne.s32.totalorder %s559, %s560
      %p574 = scmp.eq.s32.totalorder %s39, 7
      %p575 = por %p573, %p574
      %p577 = scmp.ne.s32.totalorder %s560, %s576
      %p578 = scmp.eq.s32.totalorder %s39, 0
      %p579 = por %p577, %p578
      %p580 = scmp.le.s32.totalorder 1, %s33
      %p581 = scmp.lt.s32.totalorder %s33, 9
      %p582 = pnand %p580, %p581
      %p583 = pneg %p582
      // Predicated region
      $region9: #{tpu_custom_call.1} parent=5 // pred_check
        _
      $region10: #{tpu_custom_call.1} parent=5 // pred_check_branch
        %585 = sbr.rel (%p582) target = $region12
      $region11: #{tpu_custom_call.1} parent=5 // pred_region
        %s586 = ssub.s32 %s33, 1
        // Predicated region
        $region13: #{tpu_custom_call.1} parent=11 // pred_check
          %p587 = pneg %p92
        $region14: #{tpu_custom_call.1} parent=11 // pred_check_branch
          %589 = sbr.rel (%p587) target = $region16
        $region15: #{tpu_custom_call.1} parent=11 // pred_region
          _
        $region16: #{tpu_custom_call.1} parent=11 // pred_fallthru
          _
        // Predicated region
        $region17: #{tpu_custom_call.1} parent=11 // pred_check
          %p590 = pneg %p113
        $region18: #{tpu_custom_call.1} parent=11 // pred_check_branch
          %592 = sbr.rel (%p590) target = $region20
        $region19: #{tpu_custom_call.1} parent=11 // pred_region
          %s594 = ssub.s32 128, 128
          %595 = vsyncadd [#allocation4], %s594
          %s597 = sshll.u32 [#allocation3], 4
          %s598 = int_to_ptr.vmem [resolvable:$true] %s597
          %600 = dma.hbm_to_vmem [thread:$0]  %s2, 128, %s598, [#allocation4]
        $region20: #{tpu_custom_call.1} parent=11 // pred_fallthru
          _
        // Predicated region
        $region21: #{tpu_custom_call.1} parent=11 // pred_check
          %p601 = pneg %p134
        $region22: #{tpu_custom_call.1} parent=11 // pred_check_branch
          %603 = sbr.rel (%p601) target = $region24
        $region23: #{tpu_custom_call.1} parent=11 // pred_region
          _
        $region24: #{tpu_custom_call.1} parent=11 // pred_fallthru
          _
        // Predicated region
        $region25: #{tpu_custom_call.1} parent=11 // pred_check
          %p604 = pneg %p155
        $region26: #{tpu_custom_call.1} parent=11 // pred_check_branch
          %606 = sbr.rel (%p604) target = $region28
        $region27: #{tpu_custom_call.1} parent=11 // pred_region
          _
        $region28: #{tpu_custom_call.1} parent=11 // pred_fallthru
          _
        // Predicated region
        $region29: #{tpu_custom_call.1} parent=11 // pred_check
          %p607 = pneg %p176
        $region30: #{tpu_custom_call.1} parent=11 // pred_check_branch
          %609 = sbr.rel (%p607) target = $region32
        $region31: #{tpu_custom_call.1} parent=11 // pred_region
          %s611 = ssub.s32 16, 16
          %612 = vsyncadd [#allocation7], %s611
          %s614 = sshll.u32 [#allocation6], 4
          %s615 = int_to_ptr.vmem [resolvable:$true] %s614
          %617 = dma.hbm_to_vmem [thread:$0]  %s5, 16, %s615, [#allocation7]
        $region32: #{tpu_custom_call.1} parent=11 // pred_fallthru
          _
        // Predicated region
        $region33: #{tpu_custom_call.1} parent=11 // pred_check
          %p618 = pneg %p197
        $region34: #{tpu_custom_call.1} parent=11 // pred_check_branch
          %620 = sbr.rel (%p618) target = $region36
        $region35: #{tpu_custom_call.1} parent=11 // pred_region
          %s622 = ssub.s32 2048, 2048
          %623 = vsyncadd [#allocation7], %s622
          %s624 = sshll.u32 [#allocation8], 4
          %s625 = int_to_ptr.vmem [resolvable:$true] %s624
          %630 = dma.hbm_to_vmem [thread:$0]  %s6, 2048, %s625, [#allocation7], 128, 128, 8
        $region36: #{tpu_custom_call.1} parent=11 // pred_fallthru
          _
        // Predicated region
        $region37: #{tpu_custom_call.1} parent=11 // pred_check
          %p631 = pneg %p218
        $region38: #{tpu_custom_call.1} parent=11 // pred_check_branch
          %633 = sbr.rel (%p631) target = $region40
        $region39: #{tpu_custom_call.1} parent=11 // pred_region
          %s635 = ssub.s32 16, 16
          %636 = vsyncadd [#allocation10], %s635
          %s638 = sshll.u32 [#allocation9], 4
          %s639 = int_to_ptr.vmem [resolvable:$true] %s638
          %641 = dma.hbm_to_vmem [thread:$0]  %s7, 16, %s639, [#allocation10]
        $region40: #{tpu_custom_call.1} parent=11 // pred_fallthru
          _
        // Predicated region
        $region41: #{tpu_custom_call.1} parent=11 // pred_check
          %p642 = pneg %p525
        $region42: #{tpu_custom_call.1} parent=11 // pred_check_branch
          %644 = sbr.rel (%p642) target = $region44
        $region43: #{tpu_custom_call.1} parent=11 // pred_region
          _
        $region44: #{tpu_custom_call.1} parent=11 // pred_fallthru
          _
        // Predicated region
        $region45: #{tpu_custom_call.1} parent=11 // pred_check
          %p645 = pneg %p546
        $region46: #{tpu_custom_call.1} parent=11 // pred_check_branch
          %647 = sbr.rel (%p645) target = $region48
        $region47: #{tpu_custom_call.1} parent=11 // pred_region
          _
        $region48: #{tpu_custom_call.1} parent=11 // pred_fallthru
          _
      $region12: #{tpu_custom_call.1} parent=5 // pred_fallthru
        _
      %p648 = scmp.lt.s32.totalorder %s33, 8
      // Predicated region
      $region49: #{tpu_custom_call.1} parent=5 // pred_check
        %p649 = pneg %p648
      $region50: #{tpu_custom_call.1} parent=5 // pred_check_branch
        %651 = sbr.rel (%p649) target = $region52
      $region51: #{tpu_custom_call.1} parent=5 // pred_region
        // Predicated region
        $region53: #{tpu_custom_call.1} parent=51 // pred_check
          %p652 = pneg %p65
        $region54: #{tpu_custom_call.1} parent=51 // pred_check_branch
          %654 = sbr.rel (%p652) target = $region56
        $region55: #{tpu_custom_call.1} parent=51 // pred_region
          %s655 = smul.u32 16, %s40
          %p656 = scmp.lt.s32.totalorder %s655, 31
          %s657 = scalar_select %p656, %s655, 31
          %s658 = smul.addr %s657, 8
          %s659 = scalar_lea.vmem %s0, %s658
          %s660 = smul.u32 16, %s40
        $region56: #{tpu_custom_call.1} parent=51 // pred_fallthru
          _
        // Predicated region
        $region57: #{tpu_custom_call.1} parent=51 // pred_check
          %p661 = pneg %p238
        $region58: #{tpu_custom_call.1} parent=51 // pred_check_branch
          %663 = sbr.rel (%p661) target = $region60
        $region59: #{tpu_custom_call.1} parent=51 // pred_region
          %p664 = scmp.lt.s32.totalorder %s41, 3
          %s665 = scalar_select %p664, %s41, 3
          %s666 = scalar_lea.vmem %s8, %s665
        $region60: #{tpu_custom_call.1} parent=51 // pred_fallthru
          _
        // Predicated region
        $region61: #{tpu_custom_call.1} parent=51 // pred_check
          %p667 = pneg %p264
        $region62: #{tpu_custom_call.1} parent=51 // pred_check_branch
          %669 = sbr.rel (%p667) target = $region64
        $region63: #{tpu_custom_call.1} parent=51 // pred_region
          %p670 = scmp.lt.s32.totalorder %s41, 3
          %s671 = scalar_select %p670, %s41, 3
          %s672 = scalar_lea.vmem %s9, %s671
        $region64: #{tpu_custom_call.1} parent=51 // pred_fallthru
          _
        // Predicated region
        $region65: #{tpu_custom_call.1} parent=51 // pred_check
          %p673 = pneg %p290
        $region66: #{tpu_custom_call.1} parent=51 // pred_check_branch
          %675 = sbr.rel (%p673) target = $region68
        $region67: #{tpu_custom_call.1} parent=51 // pred_region
          %s676 = sand.u32 %s33, 1
          %s677 = scalar_lea.sflag [#allocation4], %s676
          %s678 = sand.u32 %s280, 1
          %s679 = smul.addr %s678, 384
          %s680 = scalar_lea.vmem [#allocation11], %s679
          %s682 = ssub.s32 6144, 6144
          %683 = vsyncadd %s677, %s682
          %s684 = smul.addr %s41, 48
          %s685 = smul.addr %s684, 128
          %s686 = scalar_lea.hbm %s10, %s685
          %s687 = sshll.u32 %s680, 4
          %s688 = int_to_ptr.vmem [resolvable:$true] %s687
          %693 = dma.hbm_to_vmem [thread:$0]  %s686, 6144, %s688, %s677, 384, 384, 24
        $region68: #{tpu_custom_call.1} parent=51 // pred_fallthru
          _
        // Predicated region
        $region69: #{tpu_custom_call.1} parent=51 // pred_check
          %p694 = pneg %p316
        $region70: #{tpu_custom_call.1} parent=51 // pred_check_branch
          %696 = sbr.rel (%p694) target = $region72
        $region71: #{tpu_custom_call.1} parent=51 // pred_region
          %p697 = scmp.lt.s32.totalorder %s41, 3
          %s698 = scalar_select %p697, %s41, 3
          %s699 = smul.addr %s698, 3
          %s700 = scalar_lea.vmem %s11, %s699
        $region72: #{tpu_custom_call.1} parent=51 // pred_fallthru
          _
        // Predicated region
        $region73: #{tpu_custom_call.1} parent=51 // pred_check
          %p701 = pneg %p342
        $region74: #{tpu_custom_call.1} parent=51 // pred_check_branch
          %703 = sbr.rel (%p701) target = $region76
        $region75: #{tpu_custom_call.1} parent=51 // pred_region
          %p704 = scmp.lt.s32.totalorder %s41, 3
          %s705 = scalar_select %p704, %s41, 3
          %s706 = scalar_lea.vmem %s12, %s705
        $region76: #{tpu_custom_call.1} parent=51 // pred_fallthru
          _
        // Predicated region
        $region77: #{tpu_custom_call.1} parent=51 // pred_check
          %p707 = pneg %p368
        $region78: #{tpu_custom_call.1} parent=51 // pred_check_branch
          %709 = sbr.rel (%p707) target = $region80
        $region79: #{tpu_custom_call.1} parent=51 // pred_region
          %p710 = scmp.lt.s32.totalorder %s41, 3
          %s711 = scalar_select %p710, %s41, 3
          %s712 = scalar_lea.vmem %s13, %s711
        $region80: #{tpu_custom_call.1} parent=51 // pred_fallthru
          _
        // Predicated region
        $region81: #{tpu_custom_call.1} parent=51 // pred_check
          %p713 = pneg %p394
        $region82: #{tpu_custom_call.1} parent=51 // pred_check_branch
          %715 = sbr.rel (%p713) target = $region84
        $region83: #{tpu_custom_call.1} parent=51 // pred_region
          %p716 = scmp.lt.s32.totalorder %s41, 3
          %s717 = scalar_select %p716, %s41, 3
          %s718 = scalar_lea.vmem %s14, %s717
        $region84: #{tpu_custom_call.1} parent=51 // pred_fallthru
          _
        // Predicated region
        $region85: #{tpu_custom_call.1} parent=51 // pred_check
          %p719 = pneg %p420
        $region86: #{tpu_custom_call.1} parent=51 // pred_check_branch
          %721 = sbr.rel (%p719) target = $region88
        $region87: #{tpu_custom_call.1} parent=51 // pred_region
          %s722 = sand.u32 %s33, 1
          %s723 = scalar_lea.sflag [#allocation4], %s722
          %s724 = sand.u32 %s410, 1
          %s725 = smul.addr %s724, 512
          %s726 = scalar_lea.vmem [#allocation12], %s725
          %s728 = ssub.s32 8192, 8192
          %729 = vsyncadd %s723, %s728
          %s730 = smul.addr %s41, 64
          %s731 = smul.addr %s730, 128
          %s732 = scalar_lea.hbm %s15, %s731
          %s733 = sshll.u32 %s726, 4
          %s734 = int_to_ptr.vmem [resolvable:$true] %s733
          %739 = dma.hbm_to_vmem [thread:$0]  %s732, 8192, %s734, %s723, 512, 512, 32
        $region88: #{tpu_custom_call.1} parent=51 // pred_fallthru
          _
        // Predicated region
        $region89: #{tpu_custom_call.1} parent=51 // pred_check
          %p740 = pneg %p446
        $region90: #{tpu_custom_call.1} parent=51 // pred_check_branch
          %742 = sbr.rel (%p740) target = $region92
        $region91: #{tpu_custom_call.1} parent=51 // pred_region
          %p743 = scmp.lt.s32.totalorder %s41, 3
          %s744 = scalar_select %p743, %s41, 3
          %s745 = smul.addr %s744, 4
          %s746 = scalar_lea.vmem %s16, %s745
        $region92: #{tpu_custom_call.1} parent=51 // pred_fallthru
          _
        // Predicated region
        $region93: #{tpu_custom_call.1} parent=51 // pred_check
          %p747 = pneg %p472
        $region94: #{tpu_custom_call.1} parent=51 // pred_check_branch
          %749 = sbr.rel (%p747) target = $region96
        $region95: #{tpu_custom_call.1} parent=51 // pred_region
          %s750 = sand.u32 %s33, 1
          %s751 = scalar_lea.sflag [#allocation4], %s750
          %s752 = sand.u32 %s462, 1
          %s753 = smul.addr %s752, 512
          %s754 = scalar_lea.vmem [#allocation13], %s753
          %s756 = ssub.s32 8192, 8192
          %757 = vsyncadd %s751, %s756
          %s758 = smul.addr %s41, 64
          %s759 = smul.addr %s758, 128
          %s760 = scalar_lea.hbm %s17, %s759
          %s761 = sshll.u32 %s754, 4
          %s762 = int_to_ptr.vmem [resolvable:$true] %s761
          %767 = dma.hbm_to_vmem [thread:$0]  %s760, 8192, %s762, %s751, 128, 128, 8
        $region96: #{tpu_custom_call.1} parent=51 // pred_fallthru
          _
        // Predicated region
        $region97: #{tpu_custom_call.1} parent=51 // pred_check
          %p768 = pneg %p498
        $region98: #{tpu_custom_call.1} parent=51 // pred_check_branch
          %770 = sbr.rel (%p768) target = $region100
        $region99: #{tpu_custom_call.1} parent=51 // pred_region
          %p771 = scmp.lt.s32.totalorder %s41, 3
          %s772 = scalar_select %p771, %s41, 3
          %s773 = scalar_lea.vmem %s18, %s772
        $region100: #{tpu_custom_call.1} parent=51 // pred_fallthru
          _
      $region52: #{tpu_custom_call.1} parent=5 // pred_fallthru
        _
      %p774 = scmp.le.s32.totalorder 1, %s33
      %p775 = scmp.lt.s32.totalorder %s33, 9
      %p776 = pnand %p774, %p775
      %p777 = pneg %p776
      // Predicated region
      $region101: #{tpu_custom_call.1} parent=5 // pred_check
        _
      $region102: #{tpu_custom_call.1} parent=5 // pred_check_branch
        %779 = sbr.rel (%p776) target = $region104
      $region103: #{tpu_custom_call.1} parent=5 // pred_region
        %s780 = ssub.s32 %s33, 1
        // Predicated region
        $region105: #{tpu_custom_call.1} parent=103 // pred_check
          %p781 = pneg %p113
        $region106: #{tpu_custom_call.1} parent=103 // pred_check_branch
          %783 = sbr.rel (%p781) target = $region108
        $region107: #{tpu_custom_call.1} parent=103 // pred_region
          %784 = dma.done [#allocation4], 128
        $region108: #{tpu_custom_call.1} parent=103 // pred_fallthru
          _
        // Predicated region
        $region109: #{tpu_custom_call.1} parent=103 // pred_check
          %p785 = pneg %p176
        $region110: #{tpu_custom_call.1} parent=103 // pred_check_branch
          %787 = sbr.rel (%p785) target = $region112
        $region111: #{tpu_custom_call.1} parent=103 // pred_region
          %788 = dma.done [#allocation7], 16
        $region112: #{tpu_custom_call.1} parent=103 // pred_fallthru
          _
        // Predicated region
        $region113: #{tpu_custom_call.1} parent=103 // pred_check
          %p789 = pneg %p197
        $region114: #{tpu_custom_call.1} parent=103 // pred_check_branch
          %791 = sbr.rel (%p789) target = $region116
        $region115: #{tpu_custom_call.1} parent=103 // pred_region
          %792 = dma.done [#allocation7], 2048
        $region116: #{tpu_custom_call.1} parent=103 // pred_fallthru
          _
        // Predicated region
        $region117: #{tpu_custom_call.1} parent=103 // pred_check
          %p793 = pneg %p218
        $region118: #{tpu_custom_call.1} parent=103 // pred_check_branch
          %795 = sbr.rel (%p793) target = $region120
        $region119: #{tpu_custom_call.1} parent=103 // pred_region
          %796 = dma.done [#allocation10], 16
        $region120: #{tpu_custom_call.1} parent=103 // pred_fallthru
          _
        %s797 = sand.u32 %s38, 1
        %s798 = scalar_lea.sflag [#allocation4], %s797
        %s799 = sand.u32 %s283, 1
        %s800 = smul.addr %s799, 384
        %s801 = scalar_lea.vmem [#allocation11], %s800
        // Predicated region
        $region121: #{tpu_custom_call.1} parent=103 // pred_check
          %p802 = pneg %p296
        $region122: #{tpu_custom_call.1} parent=103 // pred_check_branch
          %804 = sbr.rel (%p802) target = $region124
        $region123: #{tpu_custom_call.1} parent=103 // pred_region
          %805 = dma.done %s798, 6144
        $region124: #{tpu_custom_call.1} parent=103 // pred_fallthru
          _
        %s806 = sand.u32 %s38, 1
        %s807 = scalar_lea.sflag [#allocation4], %s806
        %s808 = sand.u32 %s413, 1
        %s809 = smul.addr %s808, 512
        %s810 = scalar_lea.vmem [#allocation12], %s809
        // Predicated region
        $region125: #{tpu_custom_call.1} parent=103 // pred_check
          %p811 = pneg %p426
        $region126: #{tpu_custom_call.1} parent=103 // pred_check_branch
          %813 = sbr.rel (%p811) target = $region128
        $region127: #{tpu_custom_call.1} parent=103 // pred_region
          %814 = dma.done %s807, 8192
        $region128: #{tpu_custom_call.1} parent=103 // pred_fallthru
          _
        %s815 = sand.u32 %s38, 1
        %s816 = scalar_lea.sflag [#allocation4], %s815
        %s817 = sand.u32 %s465, 1
        %s818 = smul.addr %s817, 512
        %s819 = scalar_lea.vmem [#allocation13], %s818
        // Predicated region
        $region129: #{tpu_custom_call.1} parent=103 // pred_check
          %p820 = pneg %p478
        $region130: #{tpu_custom_call.1} parent=103 // pred_check_branch
          %822 = sbr.rel (%p820) target = $region132
        $region131: #{tpu_custom_call.1} parent=103 // pred_region
          %823 = dma.done %s816, 8192
        $region132: #{tpu_custom_call.1} parent=103 // pred_fallthru
          _
        %s824 = smul.u32 16, %s42
        %p825 = scmp.lt.s32.totalorder %s824, 31
        %s826 = scalar_select %p825, %s824, 31
        %s827 = smul.addr %s826, 8
        %s828 = scalar_lea.vmem %s0, %s827
        %p829 = pneg %p71
        %p830 = pneg %p68
        %p831 = pneg %p92
        %p832 = pneg %p89
        %p833 = pneg %p113
        %p834 = pneg %p110
        %p835 = pneg %p134
        %p836 = pneg %p131
        %p837 = pneg %p155
        %p838 = pneg %p152
        %p839 = pneg %p176
        %p840 = pneg %p173
        %p841 = pneg %p197
        %p842 = pneg %p194
        %p843 = pneg %p218
        %p844 = pneg %p215
        %p845 = scmp.lt.s32.totalorder %s43, 3
        %s846 = scalar_select %p845, %s43, 3
        %s847 = scalar_lea.vmem %s8, %s846
        %p848 = pneg %p244
        %p849 = pneg %p241
        %p850 = scmp.lt.s32.totalorder %s43, 3
        %s851 = scalar_select %p850, %s43, 3
        %s852 = scalar_lea.vmem %s9, %s851
        %p853 = pneg %p270
        %p854 = pneg %p267
        %s855 = sand.u32 %s38, 1
        %s856 = scalar_lea.sflag [#allocation4], %s855
        %s857 = sand.u32 %s283, 1
        %s858 = smul.addr %s857, 384
        %s859 = scalar_lea.vmem [#allocation11], %s858
        %p860 = pneg %p296
        %p861 = pneg %p293
        %p862 = scmp.lt.s32.totalorder %s43, 3
        %s863 = scalar_select %p862, %s43, 3
        %s864 = smul.addr %s863, 3
        %s865 = scalar_lea.vmem %s11, %s864
        %p866 = pneg %p322
        %p867 = pneg %p319
        %p868 = scmp.lt.s32.totalorder %s43, 3
        %s869 = scalar_select %p868, %s43, 3
        %s870 = scalar_lea.vmem %s12, %s869
        %p871 = pneg %p348
        %p872 = pneg %p345
        %p873 = scmp.lt.s32.totalorder %s43, 3
        %s874 = scalar_select %p873, %s43, 3
        %s875 = scalar_lea.vmem %s13, %s874
        %p876 = pneg %p374
        %p877 = pneg %p371
        %p878 = scmp.lt.s32.totalorder %s43, 3
        %s879 = scalar_select %p878, %s43, 3
        %s880 = scalar_lea.vmem %s14, %s879
        %p881 = pneg %p400
        %p882 = pneg %p397
        %s883 = sand.u32 %s38, 1
        %s884 = scalar_lea.sflag [#allocation4], %s883
        %s885 = sand.u32 %s413, 1
        %s886 = smul.addr %s885, 512
        %s887 = scalar_lea.vmem [#allocation12], %s886
        %p888 = pneg %p426
        %p889 = pneg %p423
        %p890 = scmp.lt.s32.totalorder %s43, 3
        %s891 = scalar_select %p890, %s43, 3
        %s892 = smul.addr %s891, 4
        %s893 = scalar_lea.vmem %s16, %s892
        %p894 = pneg %p452
        %p895 = pneg %p449
        %s896 = sand.u32 %s38, 1
        %s897 = scalar_lea.sflag [#allocation4], %s896
        %s898 = sand.u32 %s465, 1
        %s899 = smul.addr %s898, 512
        %s900 = scalar_lea.vmem [#allocation13], %s899
        %p901 = pneg %p478
        %p902 = pneg %p475
        %p903 = scmp.lt.s32.totalorder %s43, 3
        %s904 = scalar_select %p903, %s43, 3
        %s905 = scalar_lea.vmem %s18, %s904
        %p906 = pneg %p504
        %p907 = pneg %p501
        %p908 = pneg %p525
        %p909 = pneg %p522
        %p910 = pneg %p546
        %p911 = pneg %p543
        %p912 = pneg %p572
        %p913 = pneg %p569
        %s914 = sand.u32 %s559, 1
        %s915 = scalar_lea.sflag [#allocation5], %s914
        %s916 = sand.u32 %s559, 1
        %s917 = smul.addr %s916, 128
        %s918 = scalar_lea.vmem [#allocation14], %s917
        %s919 = smul.u32 16, %s42
        %p920 = scmp.lt.s32.totalorder %s919, 31
        %s921 = scalar_select %p920, %s919, 31
        %s922 = smul.addr %s921, 8
        %s923 = scalar_lea.vmem %s0, %s922
        %s924 = smul.u32 16, %s42
        %p925 = scmp.lt.s32.totalorder %s43, 3
        %s926 = scalar_select %p925, %s43, 3
        %s927 = scalar_lea.vmem %s8, %s926
        %p928 = scmp.lt.s32.totalorder %s43, 3
        %s929 = scalar_select %p928, %s43, 3
        %s930 = scalar_lea.vmem %s9, %s929
        %p931 = scmp.lt.s32.totalorder %s43, 3
        %s932 = scalar_select %p931, %s43, 3
        %s933 = smul.addr %s932, 3
        %s934 = scalar_lea.vmem %s11, %s933
        %p935 = scmp.lt.s32.totalorder %s43, 3
        %s936 = scalar_select %p935, %s43, 3
        %s937 = scalar_lea.vmem %s12, %s936
        %p938 = scmp.lt.s32.totalorder %s43, 3
        %s939 = scalar_select %p938, %s43, 3
        %s940 = scalar_lea.vmem %s13, %s939
        %p941 = scmp.lt.s32.totalorder %s43, 3
        %s942 = scalar_select %p941, %s43, 3
        %s943 = scalar_lea.vmem %s14, %s942
        %p944 = scmp.lt.s32.totalorder %s43, 3
        %s945 = scalar_select %p944, %s43, 3
        %s946 = smul.addr %s945, 4
        %s947 = scalar_lea.vmem %s16, %s946
        %p948 = scmp.lt.s32.totalorder %s43, 3
        %s949 = scalar_select %p948, %s43, 3
        %s950 = scalar_lea.vmem %s18, %s949
        %s951 = smul.u32 16, %s42
        %p952 = scmp.eq.s32.totalorder %s43, 0
        // Predicated region
        $region133: #{tpu_custom_call.1} parent=103 // pred_check
          %p953 = pneg %p952
        $region134: #{tpu_custom_call.1} parent=103 // pred_check_branch
          %955 = sbr.rel (%p953) target = $region136
        $region135: #{tpu_custom_call.1} parent=103 // pred_region
          %v956 = vld [vmem:[%s923] sm:$0xff]
          %v957 = vld [vmem:[%s923 + $0x8] sm:$0xff]
          %v958 = vld [vmem:[%s923 + $0x10] sm:$0xff]
          %v959 = vld [vmem:[%s923 + $0x18] sm:$0xff]
          %v960 = vld [vmem:[%s923 + $0x20] sm:$0xff]
          %v961 = vld [vmem:[%s923 + $0x28] sm:$0xff]
          %v962 = vld [vmem:[%s923 + $0x30] sm:$0xff]
          %v963 = vld [vmem:[%s923 + $0x38] sm:$0xff]
          %v964 = vld [vmem:[%s923 + $0x40] sm:$0xff]
          %v965 = vld [vmem:[%s923 + $0x48] sm:$0xff]
          %v966 = vld [vmem:[%s923 + $0x50] sm:$0xff]
          %v967 = vld [vmem:[%s923 + $0x58] sm:$0xff]
          %v968 = vld [vmem:[%s923 + $0x60] sm:$0xff]
          %v969 = vld [vmem:[%s923 + $0x68] sm:$0xff]
          %v970 = vld [vmem:[%s923 + $0x70] sm:$0xff]
          %v971 = vld [vmem:[%s923 + $0x78] sm:$0xff]
          %v972 = vld [vmem:[#allocation3] sm:$0xff]
          %v973 = vld [vmem:[%s3] sm:$0x1]
          %v975 = vlaneseq
          %v976 = vshrl.u32 %v975, 7
          %v977 = vsub.s32 0, %v976
          %v978 = vrot.slane %v973, %v977
          %vm980 = vcmask 64512
          %v982 = vsel %vm980, %v956, 0
          %v985 = vsel %vm980, %v957, 0
          %v988 = vsel %vm980, %v958, 0
          %v991 = vsel %vm980, %v959, 0
          %v994 = vsel %vm980, %v960, 0
          %v997 = vsel %vm980, %v961, 0
          %v1000 = vsel %vm980, %v962, 0
          %v1003 = vsel %vm980, %v963, 0
          %v1006 = vsel %vm980, %v964, 0
          %v1009 = vsel %vm980, %v965, 0
          %v1012 = vsel %vm980, %v966, 0
          %v1015 = vsel %vm980, %v967, 0
          %v1018 = vsel %vm980, %v968, 0
          %v1021 = vsel %vm980, %v969, 0
          %v1024 = vsel %vm980, %v970, 0
          %v1027 = vsel %vm980, %v971, 0
          %1029 = vmatprep.subr.mxu0 0.0
          %1030 = vmatpush1.msra.mxu0 %v972
          %1031 = vmatprep.subr.mxu0 0.0
          %1032 = vmatpush1.msra.mxu0 0.0
          %1033 = vmatprep.subr.mxu0 0.0
          %1034 = vmatpush1.msra.mxu0 0.0
          %1035 = vmatprep.subr.mxu0 0.0
          %1036 = vmatpush1.msra.mxu0 0.0
          %1037 = vmatprep.subr.mxu0 0.0
          %1038 = vmatpush1.msra.mxu0 0.0
          %1039 = vmatprep.subr.mxu0 0.0
          %1040 = vmatpush1.msra.mxu0 0.0
          %1041 = vmatprep.subr.mxu0 0.0
          %1042 = vmatpush1.msra.mxu0 0.0
          %1043 = vmatprep.subr.mxu0 0.0
          %1044 = vmatpush1.msra.mxu0 0.0
          %1045 = vmatprep.subr.mxu0 0.0
          %1046 = vmatpush1.msra.mxu0 0.0
          %1047 = vmatprep.subr.mxu0 0.0
          %1048 = vmatpush1.msra.mxu0 0.0
          %1049 = vmatprep.subr.mxu0 0.0
          %1050 = vmatpush1.msra.mxu0 0.0
          %1051 = vmatprep.subr.mxu0 0.0
          %1052 = vmatpush1.msra.mxu0 0.0
          %1053 = vmatprep.subr.mxu0 0.0
          %1054 = vmatpush1.msra.mxu0 0.0
          %1055 = vmatprep.subr.mxu0 0.0
          %1056 = vmatpush1.msra.mxu0 0.0
          %1057 = vmatprep.subr.mxu0 0.0
          %1058 = vmatpush1.msra.mxu0 0.0
          %1059 = vmatprep.subr.mxu0 0.0
          %1060 = vmatpush1.msra.mxu0 0.0
          %1061 = vmatprep.subr.mxu0 0.0
          %1062 = vmatpush1.msra.mxu0 0.0
          %1063 = vmatprep.subr.mxu0 0.0
          %1064 = vmatpush1.msra.mxu0 0.0
          %1065 = vmatprep.subr.mxu0 0.0
          %1066 = vmatpush1.msra.mxu0 0.0
          %1067 = vmatprep.subr.mxu0 0.0
          %1068 = vmatpush1.msra.mxu0 0.0
          %1069 = vmatprep.subr.mxu0 0.0
          %1070 = vmatpush1.msra.mxu0 0.0
          %1071 = vmatprep.subr.mxu0 0.0
          %1072 = vmatpush1.msra.mxu0 0.0
          %1073 = vmatprep.subr.mxu0 0.0
          %1074 = vmatpush1.msra.mxu0 0.0
          %1075 = vmatprep.subr.mxu0 0.0
          %1076 = vmatpush1.msra.mxu0 0.0
          %1077 = vmatprep.subr.mxu0 0.0
          %1078 = vmatpush1.msra.mxu0 0.0
          %1079 = vmatprep.subr.mxu0 0.0
          %1080 = vmatpush1.msra.mxu0 0.0
          %1081 = vmatprep.subr.mxu0 0.0
          %1082 = vmatpush1.msra.mxu0 0.0
          %1083 = vmatprep.subr.mxu0 0.0
          %1084 = vmatpush1.msra.mxu0 0.0
          %1085 = vmatprep.subr.mxu0 0.0
          %1086 = vmatpush1.msra.mxu0 0.0
          %1087 = vmatprep.subr.mxu0 0.0
          %1088 = vmatpush1.msra.mxu0 0.0
          %1089 = vmatprep.subr.mxu0 0.0
          %1090 = vmatpush1.msra.mxu0 0.0
          %1091 = vmatprep.subr.mxu0 0.0
          %1092 = vmatpush1.msra.mxu0 0.0
          %1093 = vmatprep.mubr.f32.mxu0 0.0
          %1094 = vmatmul.mubr.f32.gmra.mrb[0].mxu0 %v982
          %v1095 = vpop.f32.mrb[0].mxu0
          %v1096 = vadd.f32 %v978, %v1095
          %v1097 = vpop.f32.mrb[0].mxu0
          %1098 = vmatprep.mubr.f32.mxu0 0.0
          %1099 = vmatmul.mubr.f32.gmra.mrb[0].mxu0 %v985
          %v1100 = vpop.f32.mrb[0].mxu0
          %v1101 = vadd.f32 %v978, %v1100
          %v1102 = vpop.f32.mrb[0].mxu0
          %1103 = vmatprep.mubr.f32.mxu0 0.0
          %1104 = vmatmul.mubr.f32.gmra.mrb[0].mxu0 %v988
          %v1105 = vpop.f32.mrb[0].mxu0
          %v1106 = vadd.f32 %v978, %v1105
          %v1107 = vpop.f32.mrb[0].mxu0
          %1108 = vmatprep.mubr.f32.mxu0 0.0
          %1109 = vmatmul.mubr.f32.gmra.mrb[0].mxu0 %v991
          %v1110 = vpop.f32.mrb[0].mxu0
          %v1111 = vadd.f32 %v978, %v1110
          %v1112 = vpop.f32.mrb[0].mxu0
          %1113 = vmatprep.mubr.f32.mxu0 0.0
          %1114 = vmatmul.mubr.f32.gmra.mrb[0].mxu0 %v994
          %v1115 = vpop.f32.mrb[0].mxu0
          %v1116 = vadd.f32 %v978, %v1115
          %v1117 = vpop.f32.mrb[0].mxu0
          %1118 = vmatprep.mubr.f32.mxu0 0.0
          %1119 = vmatmul.mubr.f32.gmra.mrb[0].mxu0 %v997
          %v1120 = vpop.f32.mrb[0].mxu0
          %v1121 = vadd.f32 %v978, %v1120
          %v1122 = vpop.f32.mrb[0].mxu0
          %1123 = vmatprep.mubr.f32.mxu0 0.0
          %1124 = vmatmul.mubr.f32.gmra.mrb[0].mxu0 %v1000
          %v1125 = vpop.f32.mrb[0].mxu0
          %v1126 = vadd.f32 %v978, %v1125
          %v1127 = vpop.f32.mrb[0].mxu0
          %1128 = vmatprep.mubr.f32.mxu0 0.0
          %1129 = vmatmul.mubr.f32.gmra.mrb[0].mxu0 %v1003
          %v1130 = vpop.f32.mrb[0].mxu0
          %v1131 = vadd.f32 %v978, %v1130
          %v1132 = vpop.f32.mrb[0].mxu0
          %1133 = vmatprep.mubr.f32.mxu0 0.0
          %1134 = vmatmul.mubr.f32.gmra.mrb[0].mxu0 %v1006
          %v1135 = vpop.f32.mrb[0].mxu0
          %v1136 = vadd.f32 %v978, %v1135
          %v1137 = vpop.f32.mrb[0].mxu0
          %1138 = vmatprep.mubr.f32.mxu0 0.0
          %1139 = vmatmul.mubr.f32.gmra.mrb[0].mxu0 %v1009
          %v1140 = vpop.f32.mrb[0].mxu0
          %v1141 = vadd.f32 %v978, %v1140
          %v1142 = vpop.f32.mrb[0].mxu0
          %1143 = vmatprep.mubr.f32.mxu0 0.0
          %1144 = vmatmul.mubr.f32.gmra.mrb[0].mxu0 %v1012
          %v1145 = vpop.f32.mrb[0].mxu0
          %v1146 = vadd.f32 %v978, %v1145
          %v1147 = vpop.f32.mrb[0].mxu0
          %1148 = vmatprep.mubr.f32.mxu0 0.0
          %1149 = vmatmul.mubr.f32.gmra.mrb[0].mxu0 %v1015
          %v1150 = vpop.f32.mrb[0].mxu0
          %v1151 = vadd.f32 %v978, %v1150
          %v1152 = vpop.f32.mrb[0].mxu0
          %1153 = vmatprep.mubr.f32.mxu0 0.0
          %1154 = vmatmul.mubr.f32.gmra.mrb[0].mxu0 %v1018
          %v1155 = vpop.f32.mrb[0].mxu0
          %v1156 = vadd.f32 %v978, %v1155
          %v1157 = vpop.f32.mrb[0].mxu0
          %1158 = vmatprep.mubr.f32.mxu0 0.0
          %1159 = vmatmul.mubr.f32.gmra.mrb[0].mxu0 %v1021
          %v1160 = vpop.f32.mrb[0].mxu0
          %v1161 = vadd.f32 %v978, %v1160
          %v1162 = vpop.f32.mrb[0].mxu0
          %1163 = vmatprep.mubr.f32.mxu0 0.0
          %1164 = vmatmul.mubr.f32.gmra.mrb[0].mxu0 %v1024
          %v1165 = vpop.f32.mrb[0].mxu0
          %v1166 = vadd.f32 %v978, %v1165
          %v1167 = vpop.f32.mrb[0].mxu0
          %1168 = vmatprep.mubr.f32.mxu0 0.0
          %1169 = vmatmul.mubr.f32.gmra.mrb[0].mxu0 %v1027
          %v1170 = vpop.f32.mrb[0].mxu0
          %v1171 = vadd.f32 %v978, %v1170
          %v1172 = vpop.f32.mrb[0].mxu0
          %1173 = vdwg.mxu0
          %vm1174 = vcmp.ge.f32.partialorder %v1096, 0.0
          %vm1175 = vcmp.ge.f32.partialorder %v1101, 0.0
          %vm1176 = vcmp.ge.f32.partialorder %v1106, 0.0
          %vm1177 = vcmp.ge.f32.partialorder %v1111, 0.0
          %vm1178 = vcmp.ge.f32.partialorder %v1116, 0.0
          %vm1179 = vcmp.ge.f32.partialorder %v1121, 0.0
          %vm1180 = vcmp.ge.f32.partialorder %v1126, 0.0
          %vm1181 = vcmp.ge.f32.partialorder %v1131, 0.0
          %vm1182 = vcmp.ge.f32.partialorder %v1136, 0.0
          %vm1183 = vcmp.ge.f32.partialorder %v1141, 0.0
          %vm1184 = vcmp.ge.f32.partialorder %v1146, 0.0
          %vm1185 = vcmp.ge.f32.partialorder %v1151, 0.0
          %vm1186 = vcmp.ge.f32.partialorder %v1156, 0.0
          %vm1187 = vcmp.ge.f32.partialorder %v1161, 0.0
          %vm1188 = vcmp.ge.f32.partialorder %v1166, 0.0
          %vm1189 = vcmp.ge.f32.partialorder %v1171, 0.0
          %v1190 = vmul.f32 %v1096, 0.01
          %v1191 = vmul.f32 %v1101, 0.01
          %v1192 = vmul.f32 %v1106, 0.01
          %v1193 = vmul.f32 %v1111, 0.01
          %v1194 = vmul.f32 %v1116, 0.01
          %v1195 = vmul.f32 %v1121, 0.01
          %v1196 = vmul.f32 %v1126, 0.01
          %v1197 = vmul.f32 %v1131, 0.01
          %v1198 = vmul.f32 %v1136, 0.01
          %v1199 = vmul.f32 %v1141, 0.01
          %v1200 = vmul.f32 %v1146, 0.01
          %v1201 = vmul.f32 %v1151, 0.01
          %v1202 = vmul.f32 %v1156, 0.01
          %v1203 = vmul.f32 %v1161, 0.01
          %v1204 = vmul.f32 %v1166, 0.01
          %v1205 = vmul.f32 %v1171, 0.01
          %v1206 = vsel %vm1174, %v1096, %v1190
          %v1207 = vsel %vm1175, %v1101, %v1191
          %v1208 = vsel %vm1176, %v1106, %v1192
          %v1209 = vsel %vm1177, %v1111, %v1193
          %v1210 = vsel %vm1178, %v1116, %v1194
          %v1211 = vsel %vm1179, %v1121, %v1195
          %v1212 = vsel %vm1180, %v1126, %v1196
          %v1213 = vsel %vm1181, %v1131, %v1197
          %v1214 = vsel %vm1182, %v1136, %v1198
          %v1215 = vsel %vm1183, %v1141, %v1199
          %v1216 = vsel %vm1184, %v1146, %v1200
          %v1217 = vsel %vm1185, %v1151, %v1201
          %v1218 = vsel %vm1186, %v1156, %v1202
          %v1219 = vsel %vm1187, %v1161, %v1203
          %v1220 = vsel %vm1188, %v1166, %v1204
          %v1221 = vsel %vm1189, %v1171, %v1205
          %v1222 = vld [vmem:[%s4] sm:$0xff]
          %v1223 = vld [vmem:[%s4 + $0x8] sm:$0xff]
          %v1224 = vld [vmem:[%s4 + $0x10] sm:$0xff]
          %v1225 = vld [vmem:[%s4 + $0x18] sm:$0xff]
          %v1226 = vld [vmem:[%s4 + $0x20] sm:$0xff]
          %v1227 = vld [vmem:[%s4 + $0x28] sm:$0xff]
          %v1228 = vld [vmem:[%s4 + $0x30] sm:$0xff]
          %v1229 = vld [vmem:[%s4 + $0x38] sm:$0xff]
          %v1230 = vld [vmem:[%s4 + $0x40] sm:$0xff]
          %v1231 = vld [vmem:[%s4 + $0x48] sm:$0xff]
          %v1232 = vld [vmem:[%s4 + $0x50] sm:$0xff]
          %v1233 = vld [vmem:[%s4 + $0x58] sm:$0xff]
          %v1234 = vld [vmem:[%s4 + $0x60] sm:$0xff]
          %v1235 = vld [vmem:[%s4 + $0x68] sm:$0xff]
          %v1236 = vld [vmem:[%s4 + $0x70] sm:$0xff]
          %v1237 = vld [vmem:[%s4 + $0x78] sm:$0xff]
          %v1238 = vld [vmem:[#allocation6] sm:$0x1]
          %v1240 = vlaneseq
          %v1241 = vshrl.u32 %v1240, 7
          %v1242 = vsub.s32 0, %v1241
          %v1243 = vrot.slane %v1238, %v1242
          %1245 = vmatprep.subr.mxu0 0.0
          %1246 = vmatpush1.msra.mxu0 %v1222
          %1247 = vmatprep.subr.mxu0 0.0
          %1248 = vmatpush1.msra.mxu0 %v1223
          %1249 = vmatprep.subr.mxu0 0.0
          %1250 = vmatpush1.msra.mxu0 %v1224
          %1251 = vmatprep.subr.mxu0 0.0
          %1252 = vmatpush1.msra.mxu0 %v1225
          %1253 = vmatprep.subr.mxu0 0.0
          %1254 = vmatpush1.msra.mxu0 %v1226
          %1255 = vmatprep.subr.mxu0 0.0
          %1256 = vmatpush1.msra.mxu0 %v1227
          %1257 = vmatprep.subr.mxu0 0.0
          %1258 = vmatpush1.msra.mxu0 %v1228
          %1259 = vmatprep.subr.mxu0 0.0
          %1260 = vmatpush1.msra.mxu0 %v1229
          %1261 = vmatprep.subr.mxu0 0.0
          %1262 = vmatpush1.msra.mxu0 %v1230
          %1263 = vmatprep.subr.mxu0 0.0
          %1264 = vmatpush1.msra.mxu0 %v1231
          %1265 = vmatprep.subr.mxu0 0.0
          %1266 = vmatpush1.msra.mxu0 %v1232
          %1267 = vmatprep.subr.mxu0 0.0
          %1268 = vmatpush1.msra.mxu0 %v1233
          %1269 = vmatprep.subr.mxu0 0.0
          %1270 = vmatpush1.msra.mxu0 %v1234
          %1271 = vmatprep.subr.mxu0 0.0
          %1272 = vmatpush1.msra.mxu0 %v1235
          %1273 = vmatprep.subr.mxu0 0.0
          %1274 = vmatpush1.msra.mxu0 %v1236
          %1275 = vmatprep.subr.mxu0 0.0
          %1276 = vmatpush1.msra.mxu0 %v1237
          %1277 = vmatprep.subr.mxu0 0.0
          %1278 = vmatpush1.msra.mxu0 0.0
          %1279 = vmatprep.subr.mxu0 0.0
          %1280 = vmatpush1.msra.mxu0 0.0
          %1281 = vmatprep.subr.mxu0 0.0
          %1282 = vmatpush1.msra.mxu0 0.0
          %1283 = vmatprep.subr.mxu0 0.0
          %1284 = vmatpush1.msra.mxu0 0.0
          %1285 = vmatprep.subr.mxu0 0.0
          %1286 = vmatpush1.msra.mxu0 0.0
          %1287 = vmatprep.subr.mxu0 0.0
          %1288 = vmatpush1.msra.mxu0 0.0
          %1289 = vmatprep.subr.mxu0 0.0
          %1290 = vmatpush1.msra.mxu0 0.0
          %1291 = vmatprep.subr.mxu0 0.0
          %1292 = vmatpush1.msra.mxu0 0.0
          %1293 = vmatprep.subr.mxu0 0.0
          %1294 = vmatpush1.msra.mxu0 0.0
          %1295 = vmatprep.subr.mxu0 0.0
          %1296 = vmatpush1.msra.mxu0 0.0
          %1297 = vmatprep.subr.mxu0 0.0
          %1298 = vmatpush1.msra.mxu0 0.0
          %1299 = vmatprep.subr.mxu0 0.0
          %1300 = vmatpush1.msra.mxu0 0.0
          %1301 = vmatprep.subr.mxu0 0.0
          %1302 = vmatpush1.msra.mxu0 0.0
          %1303 = vmatprep.subr.mxu0 0.0
          %1304 = vmatpush1.msra.mxu0 0.0
          %1305 = vmatprep.subr.mxu0 0.0
          %1306 = vmatpush1.msra.mxu0 0.0
          %1307 = vmatprep.subr.mxu0 0.0
          %1308 = vmatpush1.msra.mxu0 0.0
          %1309 = vmatprep.mubr.f32.mxu0 0.0
          %1310 = vmatmul.mubr.f32.gmra.mrb[0].mxu0 %v1206
          %v1311 = vpop.f32.mrb[0].mxu0
          %v1312 = vadd.f32 %v1243, %v1311
          %v1313 = vpop.f32.mrb[0].mxu0
          %1314 = vmatprep.mubr.f32.mxu0 0.0
          %1315 = vmatmul.mubr.f32.gmra.mrb[0].mxu0 %v1207
          %v1316 = vpop.f32.mrb[0].mxu0
          %v1317 = vadd.f32 %v1243, %v1316
          %v1318 = vpop.f32.mrb[0].mxu0
          %1319 = vmatprep.mubr.f32.mxu0 0.0
          %1320 = vmatmul.mubr.f32.gmra.mrb[0].mxu0 %v1208
          %v1321 = vpop.f32.mrb[0].mxu0
          %v1322 = vadd.f32 %v1243, %v1321
          %v1323 = vpop.f32.mrb[0].mxu0
          %1324 = vmatprep.mubr.f32.mxu0 0.0
          %1325 = vmatmul.mubr.f32.gmra.mrb[0].mxu0 %v1209
          %v1326 = vpop.f32.mrb[0].mxu0
          %v1327 = vadd.f32 %v1243, %v1326
          %v1328 = vpop.f32.mrb[0].mxu0
          %1329 = vmatprep.mubr.f32.mxu0 0.0
          %1330 = vmatmul.mubr.f32.gmra.mrb[0].mxu0 %v1210
          %v1331 = vpop.f32.mrb[0].mxu0
          %v1332 = vadd.f32 %v1243, %v1331
          %v1333 = vpop.f32.mrb[0].mxu0
          %1334 = vmatprep.mubr.f32.mxu0 0.0
          %1335 = vmatmul.mubr.f32.gmra.mrb[0].mxu0 %v1211
          %v1336 = vpop.f32.mrb[0].mxu0
          %v1337 = vadd.f32 %v1243, %v1336
          %v1338 = vpop.f32.mrb[0].mxu0
          %1339 = vmatprep.mubr.f32.mxu0 0.0
          %1340 = vmatmul.mubr.f32.gmra.mrb[0].mxu0 %v1212
          %v1341 = vpop.f32.mrb[0].mxu0
          %v1342 = vadd.f32 %v1243, %v1341
          %v1343 = vpop.f32.mrb[0].mxu0
          %1344 = vmatprep.mubr.f32.mxu0 0.0
          %1345 = vmatmul.mubr.f32.gmra.mrb[0].mxu0 %v1213
          %v1346 = vpop.f32.mrb[0].mxu0
          %v1347 = vadd.f32 %v1243, %v1346
          %v1348 = vpop.f32.mrb[0].mxu0
          %1349 = vmatprep.mubr.f32.mxu0 0.0
          %1350 = vmatmul.mubr.f32.gmra.mrb[0].mxu0 %v1214
          %v1351 = vpop.f32.mrb[0].mxu0
          %v1352 = vadd.f32 %v1243, %v1351
          %v1353 = vpop.f32.mrb[0].mxu0
          %1354 = vmatprep.mubr.f32.mxu0 0.0
          %1355 = vmatmul.mubr.f32.gmra.mrb[0].mxu0 %v1215
          %v1356 = vpop.f32.mrb[0].mxu0
          %v1357 = vadd.f32 %v1243, %v1356
          %v1358 = vpop.f32.mrb[0].mxu0
          %1359 = vmatprep.mubr.f32.mxu0 0.0
          %1360 = vmatmul.mubr.f32.gmra.mrb[0].mxu0 %v1216
          %v1361 = vpop.f32.mrb[0].mxu0
          %v1362 = vadd.f32 %v1243, %v1361
          %v1363 = vpop.f32.mrb[0].mxu0
          %1364 = vmatprep.mubr.f32.mxu0 0.0
          %1365 = vmatmul.mubr.f32.gmra.mrb[0].mxu0 %v1217
          %v1366 = vpop.f32.mrb[0].mxu0
          %v1367 = vadd.f32 %v1243, %v1366
          %v1368 = vpop.f32.mrb[0].mxu0
          %1369 = vmatprep.mubr.f32.mxu0 0.0
          %1370 = vmatmul.mubr.f32.gmra.mrb[0].mxu0 %v1218
          %v1371 = vpop.f32.mrb[0].mxu0
          %v1372 = vadd.f32 %v1243, %v1371
          %v1373 = vpop.f32.mrb[0].mxu0
          %1374 = vmatprep.mubr.f32.mxu0 0.0
          %1375 = vmatmul.mubr.f32.gmra.mrb[0].mxu0 %v1219
          %v1376 = vpop.f32.mrb[0].mxu0
          %v1377 = vadd.f32 %v1243, %v1376
          %v1378 = vpop.f32.mrb[0].mxu0
          %1379 = vmatprep.mubr.f32.mxu0 0.0
          %1380 = vmatmul.mubr.f32.gmra.mrb[0].mxu0 %v1220
          %v1381 = vpop.f32.mrb[0].mxu0
          %v1382 = vadd.f32 %v1243, %v1381
          %v1383 = vpop.f32.mrb[0].mxu0
          %1384 = vmatprep.mubr.f32.mxu0 0.0
          %1385 = vmatmul.mubr.f32.gmra.mrb[0].mxu0 %v1221
          %v1386 = vpop.f32.mrb[0].mxu0
          %v1387 = vadd.f32 %v1243, %v1386
          %v1388 = vpop.f32.mrb[0].mxu0
          %1389 = vdwg.mxu0
          %vm1390 = vcmp.ge.f32.partialorder %v1312, 0.0
          %vm1391 = vcmp.ge.f32.partialorder %v1317, 0.0
          %vm1392 = vcmp.ge.f32.partialorder %v1322, 0.0
          %vm1393 = vcmp.ge.f32.partialorder %v1327, 0.0
          %vm1394 = vcmp.ge.f32.partialorder %v1332, 0.0
          %vm1395 = vcmp.ge.f32.partialorder %v1337, 0.0
          %vm1396 = vcmp.ge.f32.partialorder %v1342, 0.0
          %vm1397 = vcmp.ge.f32.partialorder %v1347, 0.0
          %vm1398 = vcmp.ge.f32.partialorder %v1352, 0.0
          %vm1399 = vcmp.ge.f32.partialorder %v1357, 0.0
          %vm1400 = vcmp.ge.f32.partialorder %v1362, 0.0
          %vm1401 = vcmp.ge.f32.partialorder %v1367, 0.0
          %vm1402 = vcmp.ge.f32.partialorder %v1372, 0.0
          %vm1403 = vcmp.ge.f32.partialorder %v1377, 0.0
          %vm1404 = vcmp.ge.f32.partialorder %v1382, 0.0
          %vm1405 = vcmp.ge.f32.partialorder %v1387, 0.0
          %v1406 = vmul.f32 %v1312, 0.01
          %v1407 = vmul.f32 %v1317, 0.01
          %v1408 = vmul.f32 %v1322, 0.01
          %v1409 = vmul.f32 %v1327, 0.01
          %v1410 = vmul.f32 %v1332, 0.01
          %v1411 = vmul.f32 %v1337, 0.01
          %v1412 = vmul.f32 %v1342, 0.01
          %v1413 = vmul.f32 %v1347, 0.01
          %v1414 = vmul.f32 %v1352, 0.01
          %v1415 = vmul.f32 %v1357, 0.01
          %v1416 = vmul.f32 %v1362, 0.01
          %v1417 = vmul.f32 %v1367, 0.01
          %v1418 = vmul.f32 %v1372, 0.01
          %v1419 = vmul.f32 %v1377, 0.01
          %v1420 = vmul.f32 %v1382, 0.01
          %v1421 = vmul.f32 %v1387, 0.01
          %v1422 = vsel %vm1390, %v1312, %v1406
          %v1423 = vsel %vm1391, %v1317, %v1407
          %v1424 = vsel %vm1392, %v1322, %v1408
          %v1425 = vsel %vm1393, %v1327, %v1409
          %v1426 = vsel %vm1394, %v1332, %v1410
          %v1427 = vsel %vm1395, %v1337, %v1411
          %v1428 = vsel %vm1396, %v1342, %v1412
          %v1429 = vsel %vm1397, %v1347, %v1413
          %v1430 = vsel %vm1398, %v1352, %v1414
          %v1431 = vsel %vm1399, %v1357, %v1415
          %v1432 = vsel %vm1400, %v1362, %v1416
          %v1433 = vsel %vm1401, %v1367, %v1417
          %v1434 = vsel %vm1402, %v1372, %v1418
          %v1435 = vsel %vm1403, %v1377, %v1419
          %v1436 = vsel %vm1404, %v1382, %v1420
          %v1437 = vsel %vm1405, %v1387, %v1421
          %v1438 = vld [vmem:[#allocation8] sm:$0xff]
          %v1439 = vld [vmem:[#allocation8 + $0x8] sm:$0xff]
          %v1440 = vld [vmem:[#allocation8 + $0x10] sm:$0xff]
          %v1441 = vld [vmem:[#allocation8 + $0x18] sm:$0xff]
          %v1442 = vld [vmem:[#allocation8 + $0x20] sm:$0xff]
          %v1443 = vld [vmem:[#allocation8 + $0x28] sm:$0xff]
          %v1444 = vld [vmem:[#allocation8 + $0x30] sm:$0xff]
          %v1445 = vld [vmem:[#allocation8 + $0x38] sm:$0xff]
          %v1446 = vld [vmem:[#allocation8 + $0x40] sm:$0xff]
          %v1447 = vld [vmem:[#allocation8 + $0x48] sm:$0xff]
          %v1448 = vld [vmem:[#allocation8 + $0x50] sm:$0xff]
          %v1449 = vld [vmem:[#allocation8 + $0x58] sm:$0xff]
          %v1450 = vld [vmem:[#allocation8 + $0x60] sm:$0xff]
          %v1451 = vld [vmem:[#allocation8 + $0x68] sm:$0xff]
          %v1452 = vld [vmem:[#allocation8 + $0x70] sm:$0xff]
          %v1453 = vld [vmem:[#allocation8 + $0x78] sm:$0xff]
          %v1454 = vld [vmem:[#allocation9] sm:$0x1]
          %v1456 = vlaneseq
          %v1457 = vshrl.u32 %v1456, 7
          %v1458 = vsub.s32 0, %v1457
          %v1459 = vrot.slane %v1454, %v1458
          %1461 = vmatprep.subr.mxu0 0.0
          %1462 = vmatpush1.msra.mxu0 %v1438
          %1463 = vmatprep.subr.mxu0 0.0
          %1464 = vmatpush1.msra.mxu0 %v1439
          %1465 = vmatprep.subr.mxu0 0.0
          %1466 = vmatpush1.msra.mxu0 %v1440
          %1467 = vmatprep.subr.mxu0 0.0
          %1468 = vmatpush1.msra.mxu0 %v1441
          %1469 = vmatprep.subr.mxu0 0.0
          %1470 = vmatpush1.msra.mxu0 %v1442
          %1471 = vmatprep.subr.mxu0 0.0
          %1472 = vmatpush1.msra.mxu0 %v1443
          %1473 = vmatprep.subr.mxu0 0.0
          %1474 = vmatpush1.msra.mxu0 %v1444
          %1475 = vmatprep.subr.mxu0 0.0
          %1476 = vmatpush1.msra.mxu0 %v1445
          %1477 = vmatprep.subr.mxu0 0.0
          %1478 = vmatpush1.msra.mxu0 %v1446
          %1479 = vmatprep.subr.mxu0 0.0
          %1480 = vmatpush1.msra.mxu0 %v1447
          %1481 = vmatprep.subr.mxu0 0.0
          %1482 = vmatpush1.msra.mxu0 %v1448
          %1483 = vmatprep.subr.mxu0 0.0
          %1484 = vmatpush1.msra.mxu0 %v1449
          %1485 = vmatprep.subr.mxu0 0.0
          %1486 = vmatpush1.msra.mxu0 %v1450
          %1487 = vmatprep.subr.mxu0 0.0
          %1488 = vmatpush1.msra.mxu0 %v1451
          %1489 = vmatprep.subr.mxu0 0.0
          %1490 = vmatpush1.msra.mxu0 %v1452
          %1491 = vmatprep.subr.mxu0 0.0
          %1492 = vmatpush1.msra.mxu0 %v1453
          %1493 = vmatprep.subr.mxu0 0.0
          %1494 = vmatpush1.msra.mxu0 0.0
          %1495 = vmatprep.subr.mxu0 0.0
          %1496 = vmatpush1.msra.mxu0 0.0
          %1497 = vmatprep.subr.mxu0 0.0
          %1498 = vmatpush1.msra.mxu0 0.0
          %1499 = vmatprep.subr.mxu0 0.0
          %1500 = vmatpush1.msra.mxu0 0.0
          %1501 = vmatprep.subr.mxu0 0.0
          %1502 = vmatpush1.msra.mxu0 0.0
          %1503 = vmatprep.subr.mxu0 0.0
          %1504 = vmatpush1.msra.mxu0 0.0
          %1505 = vmatprep.subr.mxu0 0.0
          %1506 = vmatpush1.msra.mxu0 0.0
          %1507 = vmatprep.subr.mxu0 0.0
          %1508 = vmatpush1.msra.mxu0 0.0
          %1509 = vmatprep.subr.mxu0 0.0
          %1510 = vmatpush1.msra.mxu0 0.0
          %1511 = vmatprep.subr.mxu0 0.0
          %1512 = vmatpush1.msra.mxu0 0.0
          %1513 = vmatprep.subr.mxu0 0.0
          %1514 = vmatpush1.msra.mxu0 0.0
          %1515 = vmatprep.subr.mxu0 0.0
          %1516 = vmatpush1.msra.mxu0 0.0
          %1517 = vmatprep.subr.mxu0 0.0
          %1518 = vmatpush1.msra.mxu0 0.0
          %1519 = vmatprep.subr.mxu0 0.0
          %1520 = vmatpush1.msra.mxu0 0.0
          %1521 = vmatprep.subr.mxu0 0.0
          %1522 = vmatpush1.msra.mxu0 0.0
          %1523 = vmatprep.subr.mxu0 0.0
          %1524 = vmatpush1.msra.mxu0 0.0
          %1525 = vmatprep.mubr.f32.mxu0 0.0
          %1526 = vmatmul.mubr.f32.gmra.mrb[0].mxu0 %v1422
          %v1527 = vpop.f32.mrb[0].mxu0
          %v1528 = vadd.f32 %v1459, %v1527
          %v1529 = vpop.f32.mrb[0].mxu0
          %1530 = vmatprep.mubr.f32.mxu0 0.0
          %1531 = vmatmul.mubr.f32.gmra.mrb[0].mxu0 %v1423
          %v1532 = vpop.f32.mrb[0].mxu0
          %v1533 = vadd.f32 %v1459, %v1532
          %v1534 = vpop.f32.mrb[0].mxu0
          %1535 = vmatprep.mubr.f32.mxu0 0.0
          %1536 = vmatmul.mubr.f32.gmra.mrb[0].mxu0 %v1424
          %v1537 = vpop.f32.mrb[0].mxu0
          %v1538 = vadd.f32 %v1459, %v1537
          %v1539 = vpop.f32.mrb[0].mxu0
          %1540 = vmatprep.mubr.f32.mxu0 0.0
          %1541 = vmatmul.mubr.f32.gmra.mrb[0].mxu0 %v1425
          %v1542 = vpop.f32.mrb[0].mxu0
          %v1543 = vadd.f32 %v1459, %v1542
          %v1544 = vpop.f32.mrb[0].mxu0
          %1545 = vmatprep.mubr.f32.mxu0 0.0
          %1546 = vmatmul.mubr.f32.gmra.mrb[0].mxu0 %v1426
          %v1547 = vpop.f32.mrb[0].mxu0
          %v1548 = vadd.f32 %v1459, %v1547
          %v1549 = vpop.f32.mrb[0].mxu0
          %1550 = vmatprep.mubr.f32.mxu0 0.0
          %1551 = vmatmul.mubr.f32.gmra.mrb[0].mxu0 %v1427
          %v1552 = vpop.f32.mrb[0].mxu0
          %v1553 = vadd.f32 %v1459, %v1552
          %v1554 = vpop.f32.mrb[0].mxu0
          %1555 = vmatprep.mubr.f32.mxu0 0.0
          %1556 = vmatmul.mubr.f32.gmra.mrb[0].mxu0 %v1428
          %v1557 = vpop.f32.mrb[0].mxu0
          %v1558 = vadd.f32 %v1459, %v1557
          %v1559 = vpop.f32.mrb[0].mxu0
          %1560 = vmatprep.mubr.f32.mxu0 0.0
          %1561 = vmatmul.mubr.f32.gmra.mrb[0].mxu0 %v1429
          %v1562 = vpop.f32.mrb[0].mxu0
          %v1563 = vadd.f32 %v1459, %v1562
          %v1564 = vpop.f32.mrb[0].mxu0
          %1565 = vmatprep.mubr.f32.mxu0 0.0
          %1566 = vmatmul.mubr.f32.gmra.mrb[0].mxu0 %v1430
          %v1567 = vpop.f32.mrb[0].mxu0
          %v1568 = vadd.f32 %v1459, %v1567
          %v1569 = vpop.f32.mrb[0].mxu0
          %1570 = vmatprep.mubr.f32.mxu0 0.0
          %1571 = vmatmul.mubr.f32.gmra.mrb[0].mxu0 %v1431
          %v1572 = vpop.f32.mrb[0].mxu0
          %v1573 = vadd.f32 %v1459, %v1572
          %v1574 = vpop.f32.mrb[0].mxu0
          %1575 = vmatprep.mubr.f32.mxu0 0.0
          %1576 = vmatmul.mubr.f32.gmra.mrb[0].mxu0 %v1432
          %v1577 = vpop.f32.mrb[0].mxu0
          %v1578 = vadd.f32 %v1459, %v1577
          %v1579 = vpop.f32.mrb[0].mxu0
          %1580 = vmatprep.mubr.f32.mxu0 0.0
          %1581 = vmatmul.mubr.f32.gmra.mrb[0].mxu0 %v1433
          %v1582 = vpop.f32.mrb[0].mxu0
          %v1583 = vadd.f32 %v1459, %v1582
          %v1584 = vpop.f32.mrb[0].mxu0
          %1585 = vmatprep.mubr.f32.mxu0 0.0
          %1586 = vmatmul.mubr.f32.gmra.mrb[0].mxu0 %v1434
          %v1587 = vpop.f32.mrb[0].mxu0
          %v1588 = vadd.f32 %v1459, %v1587
          %v1589 = vpop.f32.mrb[0].mxu0
          %1590 = vmatprep.mubr.f32.mxu0 0.0
          %1591 = vmatmul.mubr.f32.gmra.mrb[0].mxu0 %v1435
          %v1592 = vpop.f32.mrb[0].mxu0
          %v1593 = vadd.f32 %v1459, %v1592
          %v1594 = vpop.f32.mrb[0].mxu0
          %1595 = vmatprep.mubr.f32.mxu0 0.0
          %1596 = vmatmul.mubr.f32.gmra.mrb[0].mxu0 %v1436
          %v1597 = vpop.f32.mrb[0].mxu0
          %v1598 = vadd.f32 %v1459, %v1597
          %v1599 = vpop.f32.mrb[0].mxu0
          %1600 = vmatprep.mubr.f32.mxu0 0.0
          %1601 = vmatmul.mubr.f32.gmra.mrb[0].mxu0 %v1437
          %v1602 = vpop.f32.mrb[0].mxu0
          %v1603 = vadd.f32 %v1459, %v1602
          %v1604 = vpop.f32.mrb[0].mxu0
          %1605 = vdwg.mxu0
          %1606 = vst [vmem:[#allocation2] sm:$0xff] %v1528
          %1607 = vst [vmem:[#allocation2 + $0x8] sm:$0xff] %v1533
          %1608 = vst [vmem:[#allocation2 + $0x10] sm:$0xff] %v1538
          %1609 = vst [vmem:[#allocation2 + $0x18] sm:$0xff] %v1543
          %1610 = vst [vmem:[#allocation2 + $0x20] sm:$0xff] %v1548
          %1611 = vst [vmem:[#allocation2 + $0x28] sm:$0xff] %v1553
          %1612 = vst [vmem:[#allocation2 + $0x30] sm:$0xff] %v1558
          %1613 = vst [vmem:[#allocation2 + $0x38] sm:$0xff] %v1563
          %1614 = vst [vmem:[#allocation2 + $0x40] sm:$0xff] %v1568
          %1615 = vst [vmem:[#allocation2 + $0x48] sm:$0xff] %v1573
          %1616 = vst [vmem:[#allocation2 + $0x50] sm:$0xff] %v1578
          %1617 = vst [vmem:[#allocation2 + $0x58] sm:$0xff] %v1583
          %1618 = vst [vmem:[#allocation2 + $0x60] sm:$0xff] %v1588
          %1619 = vst [vmem:[#allocation2 + $0x68] sm:$0xff] %v1593
          %1620 = vst [vmem:[#allocation2 + $0x70] sm:$0xff] %v1598
          %1621 = vst [vmem:[#allocation2 + $0x78] sm:$0xff] %v1603
        $region136: #{tpu_custom_call.1} parent=103 // pred_fallthru
          _
        %v1622 = vld [vmem:[#allocation2] sm:$0xff]
        %v1623 = vld [vmem:[#allocation2 + $0x8] sm:$0xff]
        %v1624 = vld [vmem:[#allocation2 + $0x10] sm:$0xff]
        %v1625 = vld [vmem:[#allocation2 + $0x18] sm:$0xff]
        %v1626 = vld [vmem:[#allocation2 + $0x20] sm:$0xff]
        %v1627 = vld [vmem:[#allocation2 + $0x28] sm:$0xff]
        %v1628 = vld [vmem:[#allocation2 + $0x30] sm:$0xff]
        %v1629 = vld [vmem:[#allocation2 + $0x38] sm:$0xff]
        %v1630 = vld [vmem:[#allocation2 + $0x40] sm:$0xff]
        %v1631 = vld [vmem:[#allocation2 + $0x48] sm:$0xff]
        %v1632 = vld [vmem:[#allocation2 + $0x50] sm:$0xff]
        %v1633 = vld [vmem:[#allocation2 + $0x58] sm:$0xff]
        %v1634 = vld [vmem:[#allocation2 + $0x60] sm:$0xff]
        %v1635 = vld [vmem:[#allocation2 + $0x68] sm:$0xff]
        %v1636 = vld [vmem:[#allocation2 + $0x70] sm:$0xff]
        %v1637 = vld [vmem:[#allocation2 + $0x78] sm:$0xff]
        %v1638 = vld [vmem:[%s927] sm:$0x1]
        %v1639 = vld [vmem:[%s930] sm:$0x1]
        %1640 = vadd.xlane.f32.xlu0 %v1622
        %v1641 = vpop.xlane.xlu0 %1640
        %1642 = vadd.xlane.f32.xlu0 %v1623
        %v1643 = vpop.xlane.xlu0 %1642
        %1644 = vadd.xlane.f32.xlu0 %v1624
        %v1645 = vpop.xlane.xlu0 %1644
        %1646 = vadd.xlane.f32.xlu0 %v1625
        %v1647 = vpop.xlane.xlu0 %1646
        %1648 = vadd.xlane.f32.xlu0 %v1626
        %v1649 = vpop.xlane.xlu0 %1648
        %1650 = vadd.xlane.f32.xlu0 %v1627
        %v1651 = vpop.xlane.xlu0 %1650
        %1652 = vadd.xlane.f32.xlu0 %v1628
        %v1653 = vpop.xlane.xlu0 %1652
        %1654 = vadd.xlane.f32.xlu0 %v1629
        %v1655 = vpop.xlane.xlu0 %1654
        %1656 = vadd.xlane.f32.xlu0 %v1630
        %v1657 = vpop.xlane.xlu0 %1656
        %1658 = vadd.xlane.f32.xlu0 %v1631
        %v1659 = vpop.xlane.xlu0 %1658
        %1660 = vadd.xlane.f32.xlu0 %v1632
        %v1661 = vpop.xlane.xlu0 %1660
        %1662 = vadd.xlane.f32.xlu0 %v1633
        %v1663 = vpop.xlane.xlu0 %1662
        %1664 = vadd.xlane.f32.xlu0 %v1634
        %v1665 = vpop.xlane.xlu0 %1664
        %1666 = vadd.xlane.f32.xlu0 %v1635
        %v1667 = vpop.xlane.xlu0 %1666
        %1668 = vadd.xlane.f32.xlu0 %v1636
        %v1669 = vpop.xlane.xlu0 %1668
        %1670 = vadd.xlane.f32.xlu0 %v1637
        %v1671 = vpop.xlane.xlu0 %1670
        %v1672 = vrcp.pop 128.0
        %v1673 = vmul.f32 %v1641, %v1672
        %v1674 = vmul.f32 %v1643, %v1672
        %v1675 = vmul.f32 %v1645, %v1672
        %v1676 = vmul.f32 %v1647, %v1672
        %v1677 = vmul.f32 %v1649, %v1672
        %v1678 = vmul.f32 %v1651, %v1672
        %v1679 = vmul.f32 %v1653, %v1672
        %v1680 = vmul.f32 %v1655, %v1672
        %v1681 = vmul.f32 %v1657, %v1672
        %v1682 = vmul.f32 %v1659, %v1672
        %v1683 = vmul.f32 %v1661, %v1672
        %v1684 = vmul.f32 %v1663, %v1672
        %v1685 = vmul.f32 %v1665, %v1672
        %v1686 = vmul.f32 %v1667, %v1672
        %v1687 = vmul.f32 %v1669, %v1672
        %v1688 = vmul.f32 %v1671, %v1672
        %v1689 = vmul.f32 %v1622, %v1622
        %v1690 = vmul.f32 %v1623, %v1623
        %v1691 = vmul.f32 %v1624, %v1624
        %v1692 = vmul.f32 %v1625, %v1625
        %v1693 = vmul.f32 %v1626, %v1626
        %v1694 = vmul.f32 %v1627, %v1627
        %v1695 = vmul.f32 %v1628, %v1628
        %v1696 = vmul.f32 %v1629, %v1629
        %v1697 = vmul.f32 %v1630, %v1630
        %v1698 = vmul.f32 %v1631, %v1631
        %v1699 = vmul.f32 %v1632, %v1632
        %v1700 = vmul.f32 %v1633, %v1633
        %v1701 = vmul.f32 %v1634, %v1634
        %v1702 = vmul.f32 %v1635, %v1635
        %v1703 = vmul.f32 %v1636, %v1636
        %v1704 = vmul.f32 %v1637, %v1637
        %1705 = vadd.xlane.f32.xlu0 %v1689
        %v1706 = vpop.xlane.xlu0 %1705
        %1707 = vadd.xlane.f32.xlu0 %v1690
        %v1708 = vpop.xlane.xlu0 %1707
        %1709 = vadd.xlane.f32.xlu0 %v1691
        %v1710 = vpop.xlane.xlu0 %1709
        %1711 = vadd.xlane.f32.xlu0 %v1692
        %v1712 = vpop.xlane.xlu0 %1711
        %1713 = vadd.xlane.f32.xlu0 %v1693
        %v1714 = vpop.xlane.xlu0 %1713
        %1715 = vadd.xlane.f32.xlu0 %v1694
        %v1716 = vpop.xlane.xlu0 %1715
        %1717 = vadd.xlane.f32.xlu0 %v1695
        %v1718 = vpop.xlane.xlu0 %1717
        %1719 = vadd.xlane.f32.xlu0 %v1696
        %v1720 = vpop.xlane.xlu0 %1719
        %1721 = vadd.xlane.f32.xlu0 %v1697
        %v1722 = vpop.xlane.xlu0 %1721
        %1723 = vadd.xlane.f32.xlu0 %v1698
        %v1724 = vpop.xlane.xlu0 %1723
        %1725 = vadd.xlane.f32.xlu0 %v1699
        %v1726 = vpop.xlane.xlu0 %1725
        %1727 = vadd.xlane.f32.xlu0 %v1700
        %v1728 = vpop.xlane.xlu0 %1727
        %1729 = vadd.xlane.f32.xlu0 %v1701
        %v1730 = vpop.xlane.xlu0 %1729
        %1731 = vadd.xlane.f32.xlu0 %v1702
        %v1732 = vpop.xlane.xlu0 %1731
        %1733 = vadd.xlane.f32.xlu0 %v1703
        %v1734 = vpop.xlane.xlu0 %1733
        %1735 = vadd.xlane.f32.xlu0 %v1704
        %v1736 = vpop.xlane.xlu0 %1735
        %v1737 = vmul.f32 %v1706, %v1672
        %v1738 = vmul.f32 %v1708, %v1672
        %v1739 = vmul.f32 %v1710, %v1672
        %v1740 = vmul.f32 %v1712, %v1672
        %v1741 = vmul.f32 %v1714, %v1672
        %v1742 = vmul.f32 %v1716, %v1672
        %v1743 = vmul.f32 %v1718, %v1672
        %v1744 = vmul.f32 %v1720, %v1672
        %v1745 = vmul.f32 %v1722, %v1672
        %v1746 = vmul.f32 %v1724, %v1672
        %v1747 = vmul.f32 %v1726, %v1672
        %v1748 = vmul.f32 %v1728, %v1672
        %v1749 = vmul.f32 %v1730, %v1672
        %v1750 = vmul.f32 %v1732, %v1672
        %v1751 = vmul.f32 %v1734, %v1672
        %v1752 = vmul.f32 %v1736, %v1672
        %v1753 = vmul.f32 %v1673, %v1673
        %v1754 = vmul.f32 %v1674, %v1674
        %v1755 = vmul.f32 %v1675, %v1675
        %v1756 = vmul.f32 %v1676, %v1676
        %v1757 = vmul.f32 %v1677, %v1677
        %v1758 = vmul.f32 %v1678, %v1678
        %v1759 = vmul.f32 %v1679, %v1679
        %v1760 = vmul.f32 %v1680, %v1680
        %v1761 = vmul.f32 %v1681, %v1681
        %v1762 = vmul.f32 %v1682, %v1682
        %v1763 = vmul.f32 %v1683, %v1683
        %v1764 = vmul.f32 %v1684, %v1684
        %v1765 = vmul.f32 %v1685, %v1685
        %v1766 = vmul.f32 %v1686, %v1686
        %v1767 = vmul.f32 %v1687, %v1687
        %v1768 = vmul.f32 %v1688, %v1688
        %v1769 = vsub.f32 %v1737, %v1753
        %v1770 = vsub.f32 %v1738, %v1754
        %v1771 = vsub.f32 %v1739, %v1755
        %v1772 = vsub.f32 %v1740, %v1756
        %v1773 = vsub.f32 %v1741, %v1757
        %v1774 = vsub.f32 %v1742, %v1758
        %v1775 = vsub.f32 %v1743, %v1759
        %v1776 = vsub.f32 %v1744, %v1760
        %v1777 = vsub.f32 %v1745, %v1761
        %v1778 = vsub.f32 %v1746, %v1762
        %v1779 = vsub.f32 %v1747, %v1763
        %v1780 = vsub.f32 %v1748, %v1764
        %v1781 = vsub.f32 %v1749, %v1765
        %v1782 = vsub.f32 %v1750, %v1766
        %v1783 = vsub.f32 %v1751, %v1767
        %v1784 = vsub.f32 %v1752, %v1768
        %v1785 = vmax.f32 %v1769, 0.0
        %v1786 = vmax.f32 %v1770, 0.0
        %v1787 = vmax.f32 %v1771, 0.0
        %v1788 = vmax.f32 %v1772, 0.0
        %v1789 = vmax.f32 %v1773, 0.0
        %v1790 = vmax.f32 %v1774, 0.0
        %v1791 = vmax.f32 %v1775, 0.0
        %v1792 = vmax.f32 %v1776, 0.0
        %v1793 = vmax.f32 %v1777, 0.0
        %v1794 = vmax.f32 %v1778, 0.0
        %v1795 = vmax.f32 %v1779, 0.0
        %v1796 = vmax.f32 %v1780, 0.0
        %v1797 = vmax.f32 %v1781, 0.0
        %v1798 = vmax.f32 %v1782, 0.0
        %v1799 = vmax.f32 %v1783, 0.0
        %v1800 = vmax.f32 %v1784, 0.0
        %v1801 = vsub.f32 %v1622, %v1673
        %v1802 = vsub.f32 %v1623, %v1674
        %v1803 = vsub.f32 %v1624, %v1675
        %v1804 = vsub.f32 %v1625, %v1676
        %v1805 = vsub.f32 %v1626, %v1677
        %v1806 = vsub.f32 %v1627, %v1678
        %v1807 = vsub.f32 %v1628, %v1679
        %v1808 = vsub.f32 %v1629, %v1680
        %v1809 = vsub.f32 %v1630, %v1681
        %v1810 = vsub.f32 %v1631, %v1682
        %v1811 = vsub.f32 %v1632, %v1683
        %v1812 = vsub.f32 %v1633, %v1684
        %v1813 = vsub.f32 %v1634, %v1685
        %v1814 = vsub.f32 %v1635, %v1686
        %v1815 = vsub.f32 %v1636, %v1687
        %v1816 = vsub.f32 %v1637, %v1688
        %v1817 = vadd.f32 %v1785, 1e-05
        %v1818 = vadd.f32 %v1786, 1e-05
        %v1819 = vadd.f32 %v1787, 1e-05
        %v1820 = vadd.f32 %v1788, 1e-05
        %v1821 = vadd.f32 %v1789, 1e-05
        %v1822 = vadd.f32 %v1790, 1e-05
        %v1823 = vadd.f32 %v1791, 1e-05
        %v1824 = vadd.f32 %v1792, 1e-05
        %v1825 = vadd.f32 %v1793, 1e-05
        %v1826 = vadd.f32 %v1794, 1e-05
        %v1827 = vadd.f32 %v1795, 1e-05
        %v1828 = vadd.f32 %v1796, 1e-05
        %v1829 = vadd.f32 %v1797, 1e-05
        %v1830 = vadd.f32 %v1798, 1e-05
        %v1831 = vadd.f32 %v1799, 1e-05
        %v1832 = vadd.f32 %v1800, 1e-05
        %v1833 = vrsqrt.pop %v1817
        %v1834 = vrsqrt.pop %v1818
        %v1835 = vrsqrt.pop %v1819
        %v1836 = vrsqrt.pop %v1820
        %v1837 = vrsqrt.pop %v1821
        %v1838 = vrsqrt.pop %v1822
        %v1839 = vrsqrt.pop %v1823
        %v1840 = vrsqrt.pop %v1824
        %v1841 = vrsqrt.pop %v1825
        %v1842 = vrsqrt.pop %v1826
        %v1843 = vrsqrt.pop %v1827
        %v1844 = vrsqrt.pop %v1828
        %v1845 = vrsqrt.pop %v1829
        %v1846 = vrsqrt.pop %v1830
        %v1847 = vrsqrt.pop %v1831
        %v1848 = vrsqrt.pop %v1832
        %v1849 = vmul.f32 %v1801, %v1833
        %v1850 = vmul.f32 %v1802, %v1834
        %v1851 = vmul.f32 %v1803, %v1835
        %v1852 = vmul.f32 %v1804, %v1836
        %v1853 = vmul.f32 %v1805, %v1837
        %v1854 = vmul.f32 %v1806, %v1838
        %v1855 = vmul.f32 %v1807, %v1839
        %v1856 = vmul.f32 %v1808, %v1840
        %v1857 = vmul.f32 %v1809, %v1841
        %v1858 = vmul.f32 %v1810, %v1842
        %v1859 = vmul.f32 %v1811, %v1843
        %v1860 = vmul.f32 %v1812, %v1844
        %v1861 = vmul.f32 %v1813, %v1845
        %v1862 = vmul.f32 %v1814, %v1846
        %v1863 = vmul.f32 %v1815, %v1847
        %v1864 = vmul.f32 %v1816, %v1848
        %v1866 = vlaneseq
        %v1867 = vshrl.u32 %v1866, 7
        %v1868 = vsub.s32 0, %v1867
        %v1869 = vrot.slane %v1638, %v1868
        %v1871 = vmul.f32 %v1849, %v1869
        %v1872 = vmul.f32 %v1850, %v1869
        %v1873 = vmul.f32 %v1851, %v1869
        %v1874 = vmul.f32 %v1852, %v1869
        %v1875 = vmul.f32 %v1853, %v1869
        %v1876 = vmul.f32 %v1854, %v1869
        %v1877 = vmul.f32 %v1855, %v1869
        %v1878 = vmul.f32 %v1856, %v1869
        %v1879 = vmul.f32 %v1857, %v1869
        %v1880 = vmul.f32 %v1858, %v1869
        %v1881 = vmul.f32 %v1859, %v1869
        %v1882 = vmul.f32 %v1860, %v1869
        %v1883 = vmul.f32 %v1861, %v1869
        %v1884 = vmul.f32 %v1862, %v1869
        %v1885 = vmul.f32 %v1863, %v1869
        %v1886 = vmul.f32 %v1864, %v1869
        %v1888 = vlaneseq
        %v1889 = vshrl.u32 %v1888, 7
        %v1890 = vsub.s32 0, %v1889
        %v1891 = vrot.slane %v1639, %v1890
        %v1893 = vadd.f32 %v1871, %v1891
        %v1894 = vadd.f32 %v1872, %v1891
        %v1895 = vadd.f32 %v1873, %v1891
        %v1896 = vadd.f32 %v1874, %v1891
        %v1897 = vadd.f32 %v1875, %v1891
        %v1898 = vadd.f32 %v1876, %v1891
        %v1899 = vadd.f32 %v1877, %v1891
        %v1900 = vadd.f32 %v1878, %v1891
        %v1901 = vadd.f32 %v1879, %v1891
        %v1902 = vadd.f32 %v1880, %v1891
        %v1903 = vadd.f32 %v1881, %v1891
        %v1904 = vadd.f32 %v1882, %v1891
        %v1905 = vadd.f32 %v1883, %v1891
        %v1906 = vadd.f32 %v1884, %v1891
        %v1907 = vadd.f32 %v1885, %v1891
        %v1908 = vadd.f32 %v1886, %v1891
        %v1909 = vld [vmem:[%s801] sm:$0xff]
        %v1910 = vld [vmem:[%s801 + $0x8] sm:$0xff]
        %v1911 = vld [vmem:[%s801 + $0x10] sm:$0xff]
        %v1912 = vld [vmem:[%s801 + $0x18] sm:$0xff]
        %v1913 = vld [vmem:[%s801 + $0x20] sm:$0xff]
        %v1914 = vld [vmem:[%s801 + $0x28] sm:$0xff]
        %v1915 = vld [vmem:[%s801 + $0x30] sm:$0xff]
        %v1916 = vld [vmem:[%s801 + $0x38] sm:$0xff]
        %v1917 = vld [vmem:[%s801 + $0x40] sm:$0xff]
        %v1918 = vld [vmem:[%s801 + $0x48] sm:$0xff]
        %v1919 = vld [vmem:[%s801 + $0x50] sm:$0xff]
        %v1920 = vld [vmem:[%s801 + $0x58] sm:$0xff]
        %v1921 = vld [vmem:[%s801 + $0x60] sm:$0xff]
        %v1922 = vld [vmem:[%s801 + $0x68] sm:$0xff]
        %v1923 = vld [vmem:[%s801 + $0x70] sm:$0xff]
        %v1924 = vld [vmem:[%s801 + $0x78] sm:$0xff]
        %v1925 = vld [vmem:[%s801 + $0x80] sm:$0xff]
        %v1926 = vld [vmem:[%s801 + $0x88] sm:$0xff]
        %v1927 = vld [vmem:[%s801 + $0x90] sm:$0xff]
        %v1928 = vld [vmem:[%s801 + $0x98] sm:$0xff]
        %v1929 = vld [vmem:[%s801 + $0xa0] sm:$0xff]
        %v1930 = vld [vmem:[%s801 + $0xa8] sm:$0xff]
        %v1931 = vld [vmem:[%s801 + $0xb0] sm:$0xff]
        %v1932 = vld [vmem:[%s801 + $0xb8] sm:$0xff]
        %v1933 = vld [vmem:[%s801 + $0xc0] sm:$0xff]
        %v1934 = vld [vmem:[%s801 + $0xc8] sm:$0xff]
        %v1935 = vld [vmem:[%s801 + $0xd0] sm:$0xff]
        %v1936 = vld [vmem:[%s801 + $0xd8] sm:$0xff]
        %v1937 = vld [vmem:[%s801 + $0xe0] sm:$0xff]
        %v1938 = vld [vmem:[%s801 + $0xe8] sm:$0xff]
        %v1939 = vld [vmem:[%s801 + $0xf0] sm:$0xff]
        %v1940 = vld [vmem:[%s801 + $0xf8] sm:$0xff]
        %v1941 = vld [vmem:[%s801 + $0x100] sm:$0xff]
        %v1942 = vld [vmem:[%s801 + $0x108] sm:$0xff]
        %v1943 = vld [vmem:[%s801 + $0x110] sm:$0xff]
        %v1944 = vld [vmem:[%s801 + $0x118] sm:$0xff]
        %v1945 = vld [vmem:[%s801 + $0x120] sm:$0xff]
        %v1946 = vld [vmem:[%s801 + $0x128] sm:$0xff]
        %v1947 = vld [vmem:[%s801 + $0x130] sm:$0xff]
        %v1948 = vld [vmem:[%s801 + $0x138] sm:$0xff]
        %v1949 = vld [vmem:[%s801 + $0x140] sm:$0xff]
        %v1950 = vld [vmem:[%s801 + $0x148] sm:$0xff]
        %v1951 = vld [vmem:[%s801 + $0x150] sm:$0xff]
        %v1952 = vld [vmem:[%s801 + $0x158] sm:$0xff]
        %v1953 = vld [vmem:[%s801 + $0x160] sm:$0xff]
        %v1954 = vld [vmem:[%s801 + $0x168] sm:$0xff]
        %v1955 = vld [vmem:[%s801 + $0x170] sm:$0xff]
        %v1956 = vld [vmem:[%s801 + $0x178] sm:$0xff]
        %v1957 = vld [vmem:[%s934] sm:$0x7]
        %v1959 = vlaneseq
        %v1960 = vshrl.u32 %v1959, 7
        %v1961 = vsub.s32 0, %v1960
        %v1962 = vrot.slane %v1957, %v1961
        %v1963 = vlaneseq
        %v1964 = vshrl.u32 %v1963, 7
        %v1965 = vsub.s32 1, %v1964
        %v1966 = vrot.slane %v1957, %v1965
        %v1967 = vlaneseq
        %v1968 = vshrl.u32 %v1967, 7
        %v1969 = vsub.s32 2, %v1968
        %v1970 = vrot.slane %v1957, %v1969
        %1974 = vmatprep.subr.mxu0 %v1910
        %1975 = vmatpush1.msra.mxu0 %v1909
        %1976 = vmatprep.subr.mxu0 %v1913
        %1977 = vmatpush1.msra.mxu0 %v1912
        %1978 = vmatprep.subr.mxu0 %v1916
        %1979 = vmatpush1.msra.mxu0 %v1915
        %1980 = vmatprep.subr.mxu0 %v1919
        %1981 = vmatpush1.msra.mxu0 %v1918
        %1982 = vmatprep.subr.mxu0 %v1922
        %1983 = vmatpush1.msra.mxu0 %v1921
        %1984 = vmatprep.subr.mxu0 %v1925
        %1985 = vmatpush1.msra.mxu0 %v1924
        %1986 = vmatprep.subr.mxu0 %v1928
        %1987 = vmatpush1.msra.mxu0 %v1927
        %1988 = vmatprep.subr.mxu0 %v1931
        %1989 = vmatpush1.msra.mxu0 %v1930
        %1990 = vmatprep.subr.mxu0 %v1934
        %1991 = vmatpush1.msra.mxu0 %v1933
        %1992 = vmatprep.subr.mxu0 %v1937
        %1993 = vmatpush1.msra.mxu0 %v1936
        %1994 = vmatprep.subr.mxu0 %v1940
        %1995 = vmatpush1.msra.mxu0 %v1939
        %1996 = vmatprep.subr.mxu0 %v1943
        %1997 = vmatpush1.msra.mxu0 %v1942
        %1998 = vmatprep.subr.mxu0 %v1946
        %1999 = vmatpush1.msra.mxu0 %v1945
        %2000 = vmatprep.subr.mxu0 %v1949
        %2001 = vmatpush1.msra.mxu0 %v1948
        %2002 = vmatprep.subr.mxu0 %v1952
        %2003 = vmatpush1.msra.mxu0 %v1951
        %2004 = vmatprep.subr.mxu0 %v1955
        %2005 = vmatpush1.msra.mxu0 %v1954
        %2006 = vmatprep.subr.mxu0 0.0
        %2007 = vmatpush1.msra.mxu0 0.0
        %2008 = vmatprep.subr.mxu0 0.0
        %2009 = vmatpush1.msra.mxu0 0.0
        %2010 = vmatprep.subr.mxu0 0.0
        %2011 = vmatpush1.msra.mxu0 0.0
        %2012 = vmatprep.subr.mxu0 0.0
        %2013 = vmatpush1.msra.mxu0 0.0
        %2014 = vmatprep.subr.mxu0 0.0
        %2015 = vmatpush1.msra.mxu0 0.0
        %2016 = vmatprep.subr.mxu0 0.0
        %2017 = vmatpush1.msra.mxu0 0.0
        %2018 = vmatprep.subr.mxu0 0.0
        %2019 = vmatpush1.msra.mxu0 0.0
        %2020 = vmatprep.subr.mxu0 0.0
        %2021 = vmatpush1.msra.mxu0 0.0
        %2022 = vmatprep.subr.mxu0 0.0
        %2023 = vmatpush1.msra.mxu0 0.0
        %2024 = vmatprep.subr.mxu0 0.0
        %2025 = vmatpush1.msra.mxu0 0.0
        %2026 = vmatprep.subr.mxu0 0.0
        %2027 = vmatpush1.msra.mxu0 0.0
        %2028 = vmatprep.subr.mxu0 0.0
        %2029 = vmatpush1.msra.mxu0 0.0
        %2030 = vmatprep.subr.mxu0 0.0
        %2031 = vmatpush1.msra.mxu0 0.0
        %2032 = vmatprep.subr.mxu0 0.0
        %2033 = vmatpush1.msra.mxu0 0.0
        %2034 = vmatprep.subr.mxu0 0.0
        %2035 = vmatpush1.msra.mxu0 0.0
        %2036 = vmatprep.subr.mxu0 0.0
        %2037 = vmatpush1.msra.mxu0 0.0
        %2038 = vmatprep.mubr.f32.mxu0 0.0
        %2039 = vmatmul.mubr.f32.gmra.mrb[0].mxu0 %v1893
        %v2040 = vpop.f32.mrb[0].mxu0
        %v2041 = vadd.f32 %v1962, %v2040
        %v2042 = vpop.f32.mrb[0].mxu0
        %v2043 = vadd.f32 %v1966, %v2042
        %2044 = vmatprep.mubr.f32.mxu0 0.0
        %2045 = vmatmul.mubr.f32.gmra.mrb[0].mxu0 %v1894
        %v2046 = vpop.f32.mrb[0].mxu0
        %v2047 = vadd.f32 %v1962, %v2046
        %v2048 = vpop.f32.mrb[0].mxu0
        %v2049 = vadd.f32 %v1966, %v2048
        %2050 = vmatprep.mubr.f32.mxu0 0.0
        %2051 = vmatmul.mubr.f32.gmra.mrb[0].mxu0 %v1895
        %v2052 = vpop.f32.mrb[0].mxu0
        %v2053 = vadd.f32 %v1962, %v2052
        %v2054 = vpop.f32.mrb[0].mxu0
        %v2055 = vadd.f32 %v1966, %v2054
        %2056 = vmatprep.mubr.f32.mxu0 0.0
        %2057 = vmatmul.mubr.f32.gmra.mrb[0].mxu0 %v1896
        %v2058 = vpop.f32.mrb[0].mxu0
        %v2059 = vadd.f32 %v1962, %v2058
        %v2060 = vpop.f32.mrb[0].mxu0
        %v2061 = vadd.f32 %v1966, %v2060
        %2062 = vmatprep.mubr.f32.mxu0 0.0
        %2063 = vmatmul.mubr.f32.gmra.mrb[0].mxu0 %v1897
        %v2064 = vpop.f32.mrb[0].mxu0
        %v2065 = vadd.f32 %v1962, %v2064
        %v2066 = vpop.f32.mrb[0].mxu0
        %v2067 = vadd.f32 %v1966, %v2066
        %2068 = vmatprep.mubr.f32.mxu0 0.0
        %2069 = vmatmul.mubr.f32.gmra.mrb[0].mxu0 %v1898
        %v2070 = vpop.f32.mrb[0].mxu0
        %v2071 = vadd.f32 %v1962, %v2070
        %v2072 = vpop.f32.mrb[0].mxu0
        %v2073 = vadd.f32 %v1966, %v2072
        %2074 = vmatprep.mubr.f32.mxu0 0.0
        %2075 = vmatmul.mubr.f32.gmra.mrb[0].mxu0 %v1899
        %v2076 = vpop.f32.mrb[0].mxu0
        %v2077 = vadd.f32 %v1962, %v2076
        %v2078 = vpop.f32.mrb[0].mxu0
        %v2079 = vadd.f32 %v1966, %v2078
        %2080 = vmatprep.mubr.f32.mxu0 0.0
        %2081 = vmatmul.mubr.f32.gmra.mrb[0].mxu0 %v1900
        %v2082 = vpop.f32.mrb[0].mxu0
        %v2083 = vadd.f32 %v1962, %v2082
        %v2084 = vpop.f32.mrb[0].mxu0
        %v2085 = vadd.f32 %v1966, %v2084
        %2086 = vmatprep.mubr.f32.mxu0 0.0
        %2087 = vmatmul.mubr.f32.gmra.mrb[0].mxu0 %v1901
        %v2088 = vpop.f32.mrb[0].mxu0
        %v2089 = vadd.f32 %v1962, %v2088
        %v2090 = vpop.f32.mrb[0].mxu0
        %v2091 = vadd.f32 %v1966, %v2090
        %2092 = vmatprep.mubr.f32.mxu0 0.0
        %2093 = vmatmul.mubr.f32.gmra.mrb[0].mxu0 %v1902
        %v2094 = vpop.f32.mrb[0].mxu0
        %v2095 = vadd.f32 %v1962, %v2094
        %v2096 = vpop.f32.mrb[0].mxu0
        %v2097 = vadd.f32 %v1966, %v2096
        %2098 = vmatprep.mubr.f32.mxu0 0.0
        %2099 = vmatmul.mubr.f32.gmra.mrb[0].mxu0 %v1903
        %v2100 = vpop.f32.mrb[0].mxu0
        %v2101 = vadd.f32 %v1962, %v2100
        %v2102 = vpop.f32.mrb[0].mxu0
        %v2103 = vadd.f32 %v1966, %v2102
        %2104 = vmatprep.mubr.f32.mxu0 0.0
        %2105 = vmatmul.mubr.f32.gmra.mrb[0].mxu0 %v1904
        %v2106 = vpop.f32.mrb[0].mxu0
        %v2107 = vadd.f32 %v1962, %v2106
        %v2108 = vpop.f32.mrb[0].mxu0
        %v2109 = vadd.f32 %v1966, %v2108
        %2110 = vmatprep.mubr.f32.mxu0 0.0
        %2111 = vmatmul.mubr.f32.gmra.mrb[0].mxu0 %v1905
        %v2112 = vpop.f32.mrb[0].mxu0
        %v2113 = vadd.f32 %v1962, %v2112
        %v2114 = vpop.f32.mrb[0].mxu0
        %v2115 = vadd.f32 %v1966, %v2114
        %2116 = vmatprep.mubr.f32.mxu0 0.0
        %2117 = vmatmul.mubr.f32.gmra.mrb[0].mxu0 %v1906
        %v2118 = vpop.f32.mrb[0].mxu0
        %v2119 = vadd.f32 %v1962, %v2118
        %v2120 = vpop.f32.mrb[0].mxu0
        %v2121 = vadd.f32 %v1966, %v2120
        %2122 = vmatprep.mubr.f32.mxu0 0.0
        %2123 = vmatmul.mubr.f32.gmra.mrb[0].mxu0 %v1907
        %v2124 = vpop.f32.mrb[0].mxu0
        %v2125 = vadd.f32 %v1962, %v2124
        %v2126 = vpop.f32.mrb[0].mxu0
        %v2127 = vadd.f32 %v1966, %v2126
        %2128 = vmatprep.mubr.f32.mxu0 0.0
        %2129 = vmatmul.mubr.f32.gmra.mrb[0].mxu0 %v1908
        %v2130 = vpop.f32.mrb[0].mxu0
        %v2131 = vadd.f32 %v1962, %v2130
        %v2132 = vpop.f32.mrb[0].mxu0
        %v2133 = vadd.f32 %v1966, %v2132
        %2134 = vdwg.mxu0
        %2135 = vmatprep.subr.mxu0 0.0
        %2136 = vmatpush1.msra.mxu0 %v1911
        %2137 = vmatprep.subr.mxu0 0.0
        %2138 = vmatpush1.msra.mxu0 %v1914
        %2139 = vmatprep.subr.mxu0 0.0
        %2140 = vmatpush1.msra.mxu0 %v1917
        %2141 = vmatprep.subr.mxu0 0.0
        %2142 = vmatpush1.msra.mxu0 %v1920
        %2143 = vmatprep.subr.mxu0 0.0
        %2144 = vmatpush1.msra.mxu0 %v1923
        %2145 = vmatprep.subr.mxu0 0.0
        %2146 = vmatpush1.msra.mxu0 %v1926
        %2147 = vmatprep.subr.mxu0 0.0
        %2148 = vmatpush1.msra.mxu0 %v1929
        %2149 = vmatprep.subr.mxu0 0.0
        %2150 = vmatpush1.msra.mxu0 %v1932
        %2151 = vmatprep.subr.mxu0 0.0
        %2152 = vmatpush1.msra.mxu0 %v1935
        %2153 = vmatprep.subr.mxu0 0.0
        %2154 = vmatpush1.msra.mxu0 %v1938
        %2155 = vmatprep.subr.mxu0 0.0
        %2156 = vmatpush1.msra.mxu0 %v1941
        %2157 = vmatprep.subr.mxu0 0.0
        %2158 = vmatpush1.msra.mxu0 %v1944
        %2159 = vmatprep.subr.mxu0 0.0
        %2160 = vmatpush1.msra.mxu0 %v1947
        %2161 = vmatprep.subr.mxu0 0.0
        %2162 = vmatpush1.msra.mxu0 %v1950
        %2163 = vmatprep.subr.mxu0 0.0
        %2164 = vmatpush1.msra.mxu0 %v1953
        %2165 = vmatprep.subr.mxu0 0.0
        %2166 = vmatpush1.msra.mxu0 %v1956
        %2167 = vmatprep.subr.mxu0 0.0
        %2168 = vmatpush1.msra.mxu0 0.0
        %2169 = vmatprep.subr.mxu0 0.0
        %2170 = vmatpush1.msra.mxu0 0.0
        %2171 = vmatprep.subr.mxu0 0.0
        %2172 = vmatpush1.msra.mxu0 0.0
        %2173 = vmatprep.subr.mxu0 0.0
        %2174 = vmatpush1.msra.mxu0 0.0
        %2175 = vmatprep.subr.mxu0 0.0
        %2176 = vmatpush1.msra.mxu0 0.0
        %2177 = vmatprep.subr.mxu0 0.0
        %2178 = vmatpush1.msra.mxu0 0.0
        %2179 = vmatprep.subr.mxu0 0.0
        %2180 = vmatpush1.msra.mxu0 0.0
        %2181 = vmatprep.subr.mxu0 0.0
        %2182 = vmatpush1.msra.mxu0 0.0
        %2183 = vmatprep.subr.mxu0 0.0
        %2184 = vmatpush1.msra.mxu0 0.0
        %2185 = vmatprep.subr.mxu0 0.0
        %2186 = vmatpush1.msra.mxu0 0.0
        %2187 = vmatprep.subr.mxu0 0.0
        %2188 = vmatpush1.msra.mxu0 0.0
        %2189 = vmatprep.subr.mxu0 0.0
        %2190 = vmatpush1.msra.mxu0 0.0
        %2191 = vmatprep.subr.mxu0 0.0
        %2192 = vmatpush1.msra.mxu0 0.0
        %2193 = vmatprep.subr.mxu0 0.0
        %2194 = vmatpush1.msra.mxu0 0.0
        %2195 = vmatprep.subr.mxu0 0.0
        %2196 = vmatpush1.msra.mxu0 0.0
        %2197 = vmatprep.subr.mxu0 0.0
        %2198 = vmatpush1.msra.mxu0 0.0
        %2199 = vmatprep.mubr.f32.mxu0 0.0
        %2200 = vmatmul.mubr.f32.gmra.mrb[0].mxu0 %v1893
        %v2201 = vpop.f32.mrb[0].mxu0
        %v2202 = vadd.f32 %v1970, %v2201
        %v2203 = vpop.f32.mrb[0].mxu0
        %2204 = vmatprep.mubr.f32.mxu0 0.0
        %2205 = vmatmul.mubr.f32.gmra.mrb[0].mxu0 %v1894
        %v2206 = vpop.f32.mrb[0].mxu0
        %v2207 = vadd.f32 %v1970, %v2206
        %v2208 = vpop.f32.mrb[0].mxu0
        %2209 = vmatprep.mubr.f32.mxu0 0.0
        %2210 = vmatmul.mubr.f32.gmra.mrb[0].mxu0 %v1895
        %v2211 = vpop.f32.mrb[0].mxu0
        %v2212 = vadd.f32 %v1970, %v2211
        %v2213 = vpop.f32.mrb[0].mxu0
        %2214 = vmatprep.mubr.f32.mxu0 0.0
        %2215 = vmatmul.mubr.f32.gmra.mrb[0].mxu0 %v1896
        %v2216 = vpop.f32.mrb[0].mxu0
        %v2217 = vadd.f32 %v1970, %v2216
        %v2218 = vpop.f32.mrb[0].mxu0
        %2219 = vmatprep.mubr.f32.mxu0 0.0
        %2220 = vmatmul.mubr.f32.gmra.mrb[0].mxu0 %v1897
        %v2221 = vpop.f32.mrb[0].mxu0
        %v2222 = vadd.f32 %v1970, %v2221
        %v2223 = vpop.f32.mrb[0].mxu0
        %2224 = vmatprep.mubr.f32.mxu0 0.0
        %2225 = vmatmul.mubr.f32.gmra.mrb[0].mxu0 %v1898
        %v2226 = vpop.f32.mrb[0].mxu0
        %v2227 = vadd.f32 %v1970, %v2226
        %v2228 = vpop.f32.mrb[0].mxu0
        %2229 = vmatprep.mubr.f32.mxu0 0.0
        %2230 = vmatmul.mubr.f32.gmra.mrb[0].mxu0 %v1899
        %v2231 = vpop.f32.mrb[0].mxu0
        %v2232 = vadd.f32 %v1970, %v2231
        %v2233 = vpop.f32.mrb[0].mxu0
        %2234 = vmatprep.mubr.f32.mxu0 0.0
        %2235 = vmatmul.mubr.f32.gmra.mrb[0].mxu0 %v1900
        %v2236 = vpop.f32.mrb[0].mxu0
        %v2237 = vadd.f32 %v1970, %v2236
        %v2238 = vpop.f32.mrb[0].mxu0
        %2239 = vmatprep.mubr.f32.mxu0 0.0
        %2240 = vmatmul.mubr.f32.gmra.mrb[0].mxu0 %v1901
        %v2241 = vpop.f32.mrb[0].mxu0
        %v2242 = vadd.f32 %v1970, %v2241
        %v2243 = vpop.f32.mrb[0].mxu0
        %2244 = vmatprep.mubr.f32.mxu0 0.0
        %2245 = vmatmul.mubr.f32.gmra.mrb[0].mxu0 %v1902
        %v2246 = vpop.f32.mrb[0].mxu0
        %v2247 = vadd.f32 %v1970, %v2246
        %v2248 = vpop.f32.mrb[0].mxu0
        %2249 = vmatprep.mubr.f32.mxu0 0.0
        %2250 = vmatmul.mubr.f32.gmra.mrb[0].mxu0 %v1903
        %v2251 = vpop.f32.mrb[0].mxu0
        %v2252 = vadd.f32 %v1970, %v2251
        %v2253 = vpop.f32.mrb[0].mxu0
        %2254 = vmatprep.mubr.f32.mxu0 0.0
        %2255 = vmatmul.mubr.f32.gmra.mrb[0].mxu0 %v1904
        %v2256 = vpop.f32.mrb[0].mxu0
        %v2257 = vadd.f32 %v1970, %v2256
        %v2258 = vpop.f32.mrb[0].mxu0
        %2259 = vmatprep.mubr.f32.mxu0 0.0
        %2260 = vmatmul.mubr.f32.gmra.mrb[0].mxu0 %v1905
        %v2261 = vpop.f32.mrb[0].mxu0
        %v2262 = vadd.f32 %v1970, %v2261
        %v2263 = vpop.f32.mrb[0].mxu0
        %2264 = vmatprep.mubr.f32.mxu0 0.0
        %2265 = vmatmul.mubr.f32.gmra.mrb[0].mxu0 %v1906
        %v2266 = vpop.f32.mrb[0].mxu0
        %v2267 = vadd.f32 %v1970, %v2266
        %v2268 = vpop.f32.mrb[0].mxu0
        %2269 = vmatprep.mubr.f32.mxu0 0.0
        %2270 = vmatmul.mubr.f32.gmra.mrb[0].mxu0 %v1907
        %v2271 = vpop.f32.mrb[0].mxu0
        %v2272 = vadd.f32 %v1970, %v2271
        %v2273 = vpop.f32.mrb[0].mxu0
        %2274 = vmatprep.mubr.f32.mxu0 0.0
        %2275 = vmatmul.mubr.f32.gmra.mrb[0].mxu0 %v1908
        %v2276 = vpop.f32.mrb[0].mxu0
        %v2277 = vadd.f32 %v1970, %v2276
        %v2278 = vpop.f32.mrb[0].mxu0
        %2279 = vdwg.mxu0
        %v2280 = vld [vmem:[%s1] sm:$0xff]
        %v2281 = vld [vmem:[%s1 + $0x8] sm:$0xff]
        %v2282 = vld [vmem:[%s1 + $0x10] sm:$0xff]
        %v2283 = vld [vmem:[%s1 + $0x18] sm:$0xff]
        %v2284 = vld [vmem:[%s1 + $0x20] sm:$0xff]
        %v2285 = vld [vmem:[%s1 + $0x28] sm:$0xff]
        %v2286 = vld [vmem:[%s1 + $0x30] sm:$0xff]
        %v2287 = vld [vmem:[%s1 + $0x38] sm:$0xff]
        %v2288 = vld [vmem:[%s1 + $0x40] sm:$0xff]
        %v2289 = vld [vmem:[%s1 + $0x48] sm:$0xff]
        %v2290 = vld [vmem:[%s1 + $0x50] sm:$0xff]
        %v2291 = vld [vmem:[%s1 + $0x58] sm:$0xff]
        %v2292 = vld [vmem:[%s1 + $0x60] sm:$0xff]
        %v2293 = vld [vmem:[%s1 + $0x68] sm:$0xff]
        %v2294 = vld [vmem:[%s1 + $0x70] sm:$0xff]
        %v2295 = vld [vmem:[%s1 + $0x78] sm:$0xff]
        %2296 = vmatprep.subr.mxu0 0.0
        %2297 = vmatpush1.xpose.msra.mxu0 %v2043
        %2298 = vmatprep.subr.mxu0 0.0
        %2299 = vmatpush1.xpose.msra.mxu0 %v2049
        %2300 = vmatprep.subr.mxu0 0.0
        %2301 = vmatpush1.xpose.msra.mxu0 %v2055
        %2302 = vmatprep.subr.mxu0 0.0
        %2303 = vmatpush1.xpose.msra.mxu0 %v2061
        %2304 = vmatprep.subr.mxu0 0.0
        %2305 = vmatpush1.xpose.msra.mxu0 %v2067
        %2306 = vmatprep.subr.mxu0 0.0
        %2307 = vmatpush1.xpose.msra.mxu0 %v2073
        %2308 = vmatprep.subr.mxu0 0.0
        %2309 = vmatpush1.xpose.msra.mxu0 %v2079
        %2310 = vmatprep.subr.mxu0 0.0
        %2311 = vmatpush1.xpose.msra.mxu0 %v2085
        %2312 = vmatprep.subr.mxu0 0.0
        %2313 = vmatpush1.xpose.msra.mxu0 %v2091
        %2314 = vmatprep.subr.mxu0 0.0
        %2315 = vmatpush1.xpose.msra.mxu0 %v2097
        %2316 = vmatprep.subr.mxu0 0.0
        %2317 = vmatpush1.xpose.msra.mxu0 %v2103
        %2318 = vmatprep.subr.mxu0 0.0
        %2319 = vmatpush1.xpose.msra.mxu0 %v2109
        %2320 = vmatprep.subr.mxu0 0.0
        %2321 = vmatpush1.xpose.msra.mxu0 %v2115
        %2322 = vmatprep.subr.mxu0 0.0
        %2323 = vmatpush1.xpose.msra.mxu0 %v2121
        %2324 = vmatprep.subr.mxu0 0.0
        %2325 = vmatpush1.xpose.msra.mxu0 %v2127
        %2326 = vmatprep.subr.mxu0 0.0
        %2327 = vmatpush1.xpose.msra.mxu0 %v2133
        %2328 = vmatprep.subr.mxu0 0.0
        %2329 = vmatpush1.xpose.msra.mxu0 0.0
        %2330 = vmatprep.subr.mxu0 0.0
        %2331 = vmatpush1.xpose.msra.mxu0 0.0
        %2332 = vmatprep.subr.mxu0 0.0
        %2333 = vmatpush1.xpose.msra.mxu0 0.0
        %2334 = vmatprep.subr.mxu0 0.0
        %2335 = vmatpush1.xpose.msra.mxu0 0.0
        %2336 = vmatprep.subr.mxu0 0.0
        %2337 = vmatpush1.xpose.msra.mxu0 0.0
        %2338 = vmatprep.subr.mxu0 0.0
        %2339 = vmatpush1.xpose.msra.mxu0 0.0
        %2340 = vmatprep.subr.mxu0 0.0
        %2341 = vmatpush1.xpose.msra.mxu0 0.0
        %2342 = vmatprep.subr.mxu0 0.0
        %2343 = vmatpush1.xpose.msra.mxu0 0.0
        %2344 = vmatprep.subr.mxu0 0.0
        %2345 = vmatpush1.xpose.msra.mxu0 0.0
        %2346 = vmatprep.subr.mxu0 0.0
        %2347 = vmatpush1.xpose.msra.mxu0 0.0
        %2348 = vmatprep.subr.mxu0 0.0
        %2349 = vmatpush1.xpose.msra.mxu0 0.0
        %2350 = vmatprep.subr.mxu0 0.0
        %2351 = vmatpush1.xpose.msra.mxu0 0.0
        %2352 = vmatprep.subr.mxu0 0.0
        %2353 = vmatpush1.xpose.msra.mxu0 0.0
        %2354 = vmatprep.subr.mxu0 0.0
        %2355 = vmatpush1.xpose.msra.mxu0 0.0
        %2356 = vmatprep.subr.mxu0 0.0
        %2357 = vmatpush1.xpose.msra.mxu0 0.0
        %2358 = vmatprep.subr.mxu0 0.0
        %2359 = vmatpush1.xpose.msra.mxu0 0.0
        %2360 = vmatprep.mubr.f32.mxu0 0.0
        %2361 = vmatmul.mubr.f32.gmra.mrb[0].mxu0 %v2041
        %v2362 = vpop.f32.mrb[0].mxu0
        %v2363 = vadd.f32 %v2280, %v2362
        %v2364 = vpop.f32.mrb[0].mxu0
        %2365 = vmatprep.mubr.f32.mxu0 0.0
        %2366 = vmatmul.mubr.f32.gmra.mrb[0].mxu0 %v2047
        %v2367 = vpop.f32.mrb[0].mxu0
        %v2368 = vadd.f32 %v2281, %v2367
        %v2369 = vpop.f32.mrb[0].mxu0
        %2370 = vmatprep.mubr.f32.mxu0 0.0
        %2371 = vmatmul.mubr.f32.gmra.mrb[0].mxu0 %v2053
        %v2372 = vpop.f32.mrb[0].mxu0
        %v2373 = vadd.f32 %v2282, %v2372
        %v2374 = vpop.f32.mrb[0].mxu0
        %2375 = vmatprep.mubr.f32.mxu0 0.0
        %2376 = vmatmul.mubr.f32.gmra.mrb[0].mxu0 %v2059
        %v2377 = vpop.f32.mrb[0].mxu0
        %v2378 = vadd.f32 %v2283, %v2377
        %v2379 = vpop.f32.mrb[0].mxu0
        %2380 = vmatprep.mubr.f32.mxu0 0.0
        %2381 = vmatmul.mubr.f32.gmra.mrb[0].mxu0 %v2065
        %v2382 = vpop.f32.mrb[0].mxu0
        %v2383 = vadd.f32 %v2284, %v2382
        %v2384 = vpop.f32.mrb[0].mxu0
        %2385 = vmatprep.mubr.f32.mxu0 0.0
        %2386 = vmatmul.mubr.f32.gmra.mrb[0].mxu0 %v2071
        %v2387 = vpop.f32.mrb[0].mxu0
        %v2388 = vadd.f32 %v2285, %v2387
        %v2389 = vpop.f32.mrb[0].mxu0
        %2390 = vmatprep.mubr.f32.mxu0 0.0
        %2391 = vmatmul.mubr.f32.gmra.mrb[0].mxu0 %v2077
        %v2392 = vpop.f32.mrb[0].mxu0
        %v2393 = vadd.f32 %v2286, %v2392
        %v2394 = vpop.f32.mrb[0].mxu0
        %2395 = vmatprep.mubr.f32.mxu0 0.0
        %2396 = vmatmul.mubr.f32.gmra.mrb[0].mxu0 %v2083
        %v2397 = vpop.f32.mrb[0].mxu0
        %v2398 = vadd.f32 %v2287, %v2397
        %v2399 = vpop.f32.mrb[0].mxu0
        %2400 = vmatprep.mubr.f32.mxu0 0.0
        %2401 = vmatmul.mubr.f32.gmra.mrb[0].mxu0 %v2089
        %v2402 = vpop.f32.mrb[0].mxu0
        %v2403 = vadd.f32 %v2288, %v2402
        %v2404 = vpop.f32.mrb[0].mxu0
        %2405 = vmatprep.mubr.f32.mxu0 0.0
        %2406 = vmatmul.mubr.f32.gmra.mrb[0].mxu0 %v2095
        %v2407 = vpop.f32.mrb[0].mxu0
        %v2408 = vadd.f32 %v2289, %v2407
        %v2409 = vpop.f32.mrb[0].mxu0
        %2410 = vmatprep.mubr.f32.mxu0 0.0
        %2411 = vmatmul.mubr.f32.gmra.mrb[0].mxu0 %v2101
        %v2412 = vpop.f32.mrb[0].mxu0
        %v2413 = vadd.f32 %v2290, %v2412
        %v2414 = vpop.f32.mrb[0].mxu0
        %2415 = vmatprep.mubr.f32.mxu0 0.0
        %2416 = vmatmul.mubr.f32.gmra.mrb[0].mxu0 %v2107
        %v2417 = vpop.f32.mrb[0].mxu0
        %v2418 = vadd.f32 %v2291, %v2417
        %v2419 = vpop.f32.mrb[0].mxu0
        %2420 = vmatprep.mubr.f32.mxu0 0.0
        %2421 = vmatmul.mubr.f32.gmra.mrb[0].mxu0 %v2113
        %v2422 = vpop.f32.mrb[0].mxu0
        %v2423 = vadd.f32 %v2292, %v2422
        %v2424 = vpop.f32.mrb[0].mxu0
        %2425 = vmatprep.mubr.f32.mxu0 0.0
        %2426 = vmatmul.mubr.f32.gmra.mrb[0].mxu0 %v2119
        %v2427 = vpop.f32.mrb[0].mxu0
        %v2428 = vadd.f32 %v2293, %v2427
        %v2429 = vpop.f32.mrb[0].mxu0
        %2430 = vmatprep.mubr.f32.mxu0 0.0
        %2431 = vmatmul.mubr.f32.gmra.mrb[0].mxu0 %v2125
        %v2432 = vpop.f32.mrb[0].mxu0
        %v2433 = vadd.f32 %v2294, %v2432
        %v2434 = vpop.f32.mrb[0].mxu0
        %2435 = vmatprep.mubr.f32.mxu0 0.0
        %2436 = vmatmul.mubr.f32.gmra.mrb[0].mxu0 %v2131
        %v2437 = vpop.f32.mrb[0].mxu0
        %v2438 = vadd.f32 %v2295, %v2437
        %v2439 = vpop.f32.mrb[0].mxu0
        %2440 = vdwg.mxu0
        %2441 = vmax.xlane.f32.xlu0 %v2363
        %v2442 = vpop.xlane.xlu0 %2441
        %2443 = vmax.xlane.f32.xlu0 %v2368
        %v2444 = vpop.xlane.xlu0 %2443
        %2445 = vmax.xlane.f32.xlu0 %v2373
        %v2446 = vpop.xlane.xlu0 %2445
        %2447 = vmax.xlane.f32.xlu0 %v2378
        %v2448 = vpop.xlane.xlu0 %2447
        %2449 = vmax.xlane.f32.xlu0 %v2383
        %v2450 = vpop.xlane.xlu0 %2449
        %2451 = vmax.xlane.f32.xlu0 %v2388
        %v2452 = vpop.xlane.xlu0 %2451
        %2453 = vmax.xlane.f32.xlu0 %v2393
        %v2454 = vpop.xlane.xlu0 %2453
        %2455 = vmax.xlane.f32.xlu0 %v2398
        %v2456 = vpop.xlane.xlu0 %2455
        %2457 = vmax.xlane.f32.xlu0 %v2403
        %v2458 = vpop.xlane.xlu0 %2457
        %2459 = vmax.xlane.f32.xlu0 %v2408
        %v2460 = vpop.xlane.xlu0 %2459
        %2461 = vmax.xlane.f32.xlu0 %v2413
        %v2462 = vpop.xlane.xlu0 %2461
        %2463 = vmax.xlane.f32.xlu0 %v2418
        %v2464 = vpop.xlane.xlu0 %2463
        %2465 = vmax.xlane.f32.xlu0 %v2423
        %v2466 = vpop.xlane.xlu0 %2465
        %2467 = vmax.xlane.f32.xlu0 %v2428
        %v2468 = vpop.xlane.xlu0 %2467
        %2469 = vmax.xlane.f32.xlu0 %v2433
        %v2470 = vpop.xlane.xlu0 %2469
        %2471 = vmax.xlane.f32.xlu0 %v2438
        %v2472 = vpop.xlane.xlu0 %2471
        %v2473 = vsub.f32 %v2363, %v2442
        %v2474 = vsub.f32 %v2368, %v2444
        %v2475 = vsub.f32 %v2373, %v2446
        %v2476 = vsub.f32 %v2378, %v2448
        %v2477 = vsub.f32 %v2383, %v2450
        %v2478 = vsub.f32 %v2388, %v2452
        %v2479 = vsub.f32 %v2393, %v2454
        %v2480 = vsub.f32 %v2398, %v2456
        %v2481 = vsub.f32 %v2403, %v2458
        %v2482 = vsub.f32 %v2408, %v2460
        %v2483 = vsub.f32 %v2413, %v2462
        %v2484 = vsub.f32 %v2418, %v2464
        %v2485 = vsub.f32 %v2423, %v2466
        %v2486 = vsub.f32 %v2428, %v2468
        %v2487 = vsub.f32 %v2433, %v2470
        %v2488 = vsub.f32 %v2438, %v2472
        %v2489 = vmul.f32 %v2473, 1.442695
        %v2490 = vpow.pop %v2489
        %v2491 = vmul.f32 %v2474, 1.442695
        %v2492 = vpow.pop %v2491
        %v2493 = vmul.f32 %v2475, 1.442695
        %v2494 = vpow.pop %v2493
        %v2495 = vmul.f32 %v2476, 1.442695
        %v2496 = vpow.pop %v2495
        %v2497 = vmul.f32 %v2477, 1.442695
        %v2498 = vpow.pop %v2497
        %v2499 = vmul.f32 %v2478, 1.442695
        %v2500 = vpow.pop %v2499
        %v2501 = vmul.f32 %v2479, 1.442695
        %v2502 = vpow.pop %v2501
        %v2503 = vmul.f32 %v2480, 1.442695
        %v2504 = vpow.pop %v2503
        %v2505 = vmul.f32 %v2481, 1.442695
        %v2506 = vpow.pop %v2505
        %v2507 = vmul.f32 %v2482, 1.442695
        %v2508 = vpow.pop %v2507
        %v2509 = vmul.f32 %v2483, 1.442695
        %v2510 = vpow.pop %v2509
        %v2511 = vmul.f32 %v2484, 1.442695
        %v2512 = vpow.pop %v2511
        %v2513 = vmul.f32 %v2485, 1.442695
        %v2514 = vpow.pop %v2513
        %v2515 = vmul.f32 %v2486, 1.442695
        %v2516 = vpow.pop %v2515
        %v2517 = vmul.f32 %v2487, 1.442695
        %v2518 = vpow.pop %v2517
        %v2519 = vmul.f32 %v2488, 1.442695
        %v2520 = vpow.pop %v2519
        %2521 = vadd.xlane.f32.xlu0 %v2490
        %v2522 = vpop.xlane.xlu0 %2521
        %2523 = vadd.xlane.f32.xlu0 %v2492
        %v2524 = vpop.xlane.xlu0 %2523
        %2525 = vadd.xlane.f32.xlu0 %v2494
        %v2526 = vpop.xlane.xlu0 %2525
        %2527 = vadd.xlane.f32.xlu0 %v2496
        %v2528 = vpop.xlane.xlu0 %2527
        %2529 = vadd.xlane.f32.xlu0 %v2498
        %v2530 = vpop.xlane.xlu0 %2529
        %2531 = vadd.xlane.f32.xlu0 %v2500
        %v2532 = vpop.xlane.xlu0 %2531
        %2533 = vadd.xlane.f32.xlu0 %v2502
        %v2534 = vpop.xlane.xlu0 %2533
        %2535 = vadd.xlane.f32.xlu0 %v2504
        %v2536 = vpop.xlane.xlu0 %2535
        %2537 = vadd.xlane.f32.xlu0 %v2506
        %v2538 = vpop.xlane.xlu0 %2537
        %2539 = vadd.xlane.f32.xlu0 %v2508
        %v2540 = vpop.xlane.xlu0 %2539
        %2541 = vadd.xlane.f32.xlu0 %v2510
        %v2542 = vpop.xlane.xlu0 %2541
        %2543 = vadd.xlane.f32.xlu0 %v2512
        %v2544 = vpop.xlane.xlu0 %2543
        %2545 = vadd.xlane.f32.xlu0 %v2514
        %v2546 = vpop.xlane.xlu0 %2545
        %2547 = vadd.xlane.f32.xlu0 %v2516
        %v2548 = vpop.xlane.xlu0 %2547
        %2549 = vadd.xlane.f32.xlu0 %v2518
        %v2550 = vpop.xlane.xlu0 %2549
        %2551 = vadd.xlane.f32.xlu0 %v2520
        %v2552 = vpop.xlane.xlu0 %2551
        %v2553 = vrcp.pop %v2522
        %v2554 = vmul.f32 %v2490, %v2553
        %v2555 = vrcp.pop %v2524
        %v2556 = vmul.f32 %v2492, %v2555
        %v2557 = vrcp.pop %v2526
        %v2558 = vmul.f32 %v2494, %v2557
        %v2559 = vrcp.pop %v2528
        %v2560 = vmul.f32 %v2496, %v2559
        %v2561 = vrcp.pop %v2530
        %v2562 = vmul.f32 %v2498, %v2561
        %v2563 = vrcp.pop %v2532
        %v2564 = vmul.f32 %v2500, %v2563
        %v2565 = vrcp.pop %v2534
        %v2566 = vmul.f32 %v2502, %v2565
        %v2567 = vrcp.pop %v2536
        %v2568 = vmul.f32 %v2504, %v2567
        %v2569 = vrcp.pop %v2538
        %v2570 = vmul.f32 %v2506, %v2569
        %v2571 = vrcp.pop %v2540
        %v2572 = vmul.f32 %v2508, %v2571
        %v2573 = vrcp.pop %v2542
        %v2574 = vmul.f32 %v2510, %v2573
        %v2575 = vrcp.pop %v2544
        %v2576 = vmul.f32 %v2512, %v2575
        %v2577 = vrcp.pop %v2546
        %v2578 = vmul.f32 %v2514, %v2577
        %v2579 = vrcp.pop %v2548
        %v2580 = vmul.f32 %v2516, %v2579
        %v2581 = vrcp.pop %v2550
        %v2582 = vmul.f32 %v2518, %v2581
        %v2583 = vrcp.pop %v2552
        %v2584 = vmul.f32 %v2520, %v2583
        %v2585 = vld [vmem:[%s937] sm:$0x1]
        %v2587 = vlaneseq
        %v2588 = vshrl.u32 %v2587, 7
        %v2589 = vsub.s32 0, %v2588
        %v2590 = vrot.slane %v2585, %v2589
        %2592 = vmatprep.subr.mxu0 0.0
        %2593 = vmatpush1.msra.mxu0 %v2202
        %2594 = vmatprep.subr.mxu0 0.0
        %2595 = vmatpush1.msra.mxu0 %v2207
        %2596 = vmatprep.subr.mxu0 0.0
        %2597 = vmatpush1.msra.mxu0 %v2212
        %2598 = vmatprep.subr.mxu0 0.0
        %2599 = vmatpush1.msra.mxu0 %v2217
        %2600 = vmatprep.subr.mxu0 0.0
        %2601 = vmatpush1.msra.mxu0 %v2222
        %2602 = vmatprep.subr.mxu0 0.0
        %2603 = vmatpush1.msra.mxu0 %v2227
        %2604 = vmatprep.subr.mxu0 0.0
        %2605 = vmatpush1.msra.mxu0 %v2232
        %2606 = vmatprep.subr.mxu0 0.0
        %2607 = vmatpush1.msra.mxu0 %v2237
        %2608 = vmatprep.subr.mxu0 0.0
        %2609 = vmatpush1.msra.mxu0 %v2242
        %2610 = vmatprep.subr.mxu0 0.0
        %2611 = vmatpush1.msra.mxu0 %v2247
        %2612 = vmatprep.subr.mxu0 0.0
        %2613 = vmatpush1.msra.mxu0 %v2252
        %2614 = vmatprep.subr.mxu0 0.0
        %2615 = vmatpush1.msra.mxu0 %v2257
        %2616 = vmatprep.subr.mxu0 0.0
        %2617 = vmatpush1.msra.mxu0 %v2262
        %2618 = vmatprep.subr.mxu0 0.0
        %2619 = vmatpush1.msra.mxu0 %v2267
        %2620 = vmatprep.subr.mxu0 0.0
        %2621 = vmatpush1.msra.mxu0 %v2272
        %2622 = vmatprep.subr.mxu0 0.0
        %2623 = vmatpush1.msra.mxu0 %v2277
        %2624 = vmatprep.subr.mxu0 0.0
        %2625 = vmatpush1.msra.mxu0 0.0
        %2626 = vmatprep.subr.mxu0 0.0
        %2627 = vmatpush1.msra.mxu0 0.0
        %2628 = vmatprep.subr.mxu0 0.0
        %2629 = vmatpush1.msra.mxu0 0.0
        %2630 = vmatprep.subr.mxu0 0.0
        %2631 = vmatpush1.msra.mxu0 0.0
        %2632 = vmatprep.subr.mxu0 0.0
        %2633 = vmatpush1.msra.mxu0 0.0
        %2634 = vmatprep.subr.mxu0 0.0
        %2635 = vmatpush1.msra.mxu0 0.0
        %2636 = vmatprep.subr.mxu0 0.0
        %2637 = vmatpush1.msra.mxu0 0.0
        %2638 = vmatprep.subr.mxu0 0.0
        %2639 = vmatpush1.msra.mxu0 0.0
        %2640 = vmatprep.subr.mxu0 0.0
        %2641 = vmatpush1.msra.mxu0 0.0
        %2642 = vmatprep.subr.mxu0 0.0
        %2643 = vmatpush1.msra.mxu0 0.0
        %2644 = vmatprep.subr.mxu0 0.0
        %2645 = vmatpush1.msra.mxu0 0.0
        %2646 = vmatprep.subr.mxu0 0.0
        %2647 = vmatpush1.msra.mxu0 0.0
        %2648 = vmatprep.subr.mxu0 0.0
        %2649 = vmatpush1.msra.mxu0 0.0
        %2650 = vmatprep.subr.mxu0 0.0
        %2651 = vmatpush1.msra.mxu0 0.0
        %2652 = vmatprep.subr.mxu0 0.0
        %2653 = vmatpush1.msra.mxu0 0.0
        %2654 = vmatprep.subr.mxu0 0.0
        %2655 = vmatpush1.msra.mxu0 0.0
        %2656 = vmatprep.mubr.f32.mxu0 0.0
        %2657 = vmatmul.mubr.f32.gmra.mrb[0].mxu0 %v2554
        %v2658 = vpop.f32.mrb[0].mxu0
        %v2659 = vadd.f32 %v2590, %v2658
        %v2660 = vpop.f32.mrb[0].mxu0
        %2661 = vmatprep.mubr.f32.mxu0 0.0
        %2662 = vmatmul.mubr.f32.gmra.mrb[0].mxu0 %v2556
        %v2663 = vpop.f32.mrb[0].mxu0
        %v2664 = vadd.f32 %v2590, %v2663
        %v2665 = vpop.f32.mrb[0].mxu0
        %2666 = vmatprep.mubr.f32.mxu0 0.0
        %2667 = vmatmul.mubr.f32.gmra.mrb[0].mxu0 %v2558
        %v2668 = vpop.f32.mrb[0].mxu0
        %v2669 = vadd.f32 %v2590, %v2668
        %v2670 = vpop.f32.mrb[0].mxu0
        %2671 = vmatprep.mubr.f32.mxu0 0.0
        %2672 = vmatmul.mubr.f32.gmra.mrb[0].mxu0 %v2560
        %v2673 = vpop.f32.mrb[0].mxu0
        %v2674 = vadd.f32 %v2590, %v2673
        %v2675 = vpop.f32.mrb[0].mxu0
        %2676 = vmatprep.mubr.f32.mxu0 0.0
        %2677 = vmatmul.mubr.f32.gmra.mrb[0].mxu0 %v2562
        %v2678 = vpop.f32.mrb[0].mxu0
        %v2679 = vadd.f32 %v2590, %v2678
        %v2680 = vpop.f32.mrb[0].mxu0
        %2681 = vmatprep.mubr.f32.mxu0 0.0
        %2682 = vmatmul.mubr.f32.gmra.mrb[0].mxu0 %v2564
        %v2683 = vpop.f32.mrb[0].mxu0
        %v2684 = vadd.f32 %v2590, %v2683
        %v2685 = vpop.f32.mrb[0].mxu0
        %2686 = vmatprep.mubr.f32.mxu0 0.0
        %2687 = vmatmul.mubr.f32.gmra.mrb[0].mxu0 %v2566
        %v2688 = vpop.f32.mrb[0].mxu0
        %v2689 = vadd.f32 %v2590, %v2688
        %v2690 = vpop.f32.mrb[0].mxu0
        %2691 = vmatprep.mubr.f32.mxu0 0.0
        %2692 = vmatmul.mubr.f32.gmra.mrb[0].mxu0 %v2568
        %v2693 = vpop.f32.mrb[0].mxu0
        %v2694 = vadd.f32 %v2590, %v2693
        %v2695 = vpop.f32.mrb[0].mxu0
        %2696 = vmatprep.mubr.f32.mxu0 0.0
        %2697 = vmatmul.mubr.f32.gmra.mrb[0].mxu0 %v2570
        %v2698 = vpop.f32.mrb[0].mxu0
        %v2699 = vadd.f32 %v2590, %v2698
        %v2700 = vpop.f32.mrb[0].mxu0
        %2701 = vmatprep.mubr.f32.mxu0 0.0
        %2702 = vmatmul.mubr.f32.gmra.mrb[0].mxu0 %v2572
        %v2703 = vpop.f32.mrb[0].mxu0
        %v2704 = vadd.f32 %v2590, %v2703
        %v2705 = vpop.f32.mrb[0].mxu0
        %2706 = vmatprep.mubr.f32.mxu0 0.0
        %2707 = vmatmul.mubr.f32.gmra.mrb[0].mxu0 %v2574
        %v2708 = vpop.f32.mrb[0].mxu0
        %v2709 = vadd.f32 %v2590, %v2708
        %v2710 = vpop.f32.mrb[0].mxu0
        %2711 = vmatprep.mubr.f32.mxu0 0.0
        %2712 = vmatmul.mubr.f32.gmra.mrb[0].mxu0 %v2576
        %v2713 = vpop.f32.mrb[0].mxu0
        %v2714 = vadd.f32 %v2590, %v2713
        %v2715 = vpop.f32.mrb[0].mxu0
        %2716 = vmatprep.mubr.f32.mxu0 0.0
        %2717 = vmatmul.mubr.f32.gmra.mrb[0].mxu0 %v2578
        %v2718 = vpop.f32.mrb[0].mxu0
        %v2719 = vadd.f32 %v2590, %v2718
        %v2720 = vpop.f32.mrb[0].mxu0
        %2721 = vmatprep.mubr.f32.mxu0 0.0
        %2722 = vmatmul.mubr.f32.gmra.mrb[0].mxu0 %v2580
        %v2723 = vpop.f32.mrb[0].mxu0
        %v2724 = vadd.f32 %v2590, %v2723
        %v2725 = vpop.f32.mrb[0].mxu0
        %2726 = vmatprep.mubr.f32.mxu0 0.0
        %2727 = vmatmul.mubr.f32.gmra.mrb[0].mxu0 %v2582
        %v2728 = vpop.f32.mrb[0].mxu0
        %v2729 = vadd.f32 %v2590, %v2728
        %v2730 = vpop.f32.mrb[0].mxu0
        %2731 = vmatprep.mubr.f32.mxu0 0.0
        %2732 = vmatmul.mubr.f32.gmra.mrb[0].mxu0 %v2584
        %v2733 = vpop.f32.mrb[0].mxu0
        %v2734 = vadd.f32 %v2590, %v2733
        %v2735 = vpop.f32.mrb[0].mxu0
        %2736 = vdwg.mxu0
        %v2737 = vadd.f32 %v1893, %v2659
        %v2738 = vadd.f32 %v1894, %v2664
        %v2739 = vadd.f32 %v1895, %v2669
        %v2740 = vadd.f32 %v1896, %v2674
        %v2741 = vadd.f32 %v1897, %v2679
        %v2742 = vadd.f32 %v1898, %v2684
        %v2743 = vadd.f32 %v1899, %v2689
        %v2744 = vadd.f32 %v1900, %v2694
        %v2745 = vadd.f32 %v1901, %v2699
        %v2746 = vadd.f32 %v1902, %v2704
        %v2747 = vadd.f32 %v1903, %v2709
        %v2748 = vadd.f32 %v1904, %v2714
        %v2749 = vadd.f32 %v1905, %v2719
        %v2750 = vadd.f32 %v1906, %v2724
        %v2751 = vadd.f32 %v1907, %v2729
        %v2752 = vadd.f32 %v1908, %v2734
        %v2753 = vld [vmem:[%s940] sm:$0x1]
        %v2754 = vld [vmem:[%s943] sm:$0x1]
        %2755 = vadd.xlane.f32.xlu0 %v2737
        %v2756 = vpop.xlane.xlu0 %2755
        %2757 = vadd.xlane.f32.xlu0 %v2738
        %v2758 = vpop.xlane.xlu0 %2757
        %2759 = vadd.xlane.f32.xlu0 %v2739
        %v2760 = vpop.xlane.xlu0 %2759
        %2761 = vadd.xlane.f32.xlu0 %v2740
        %v2762 = vpop.xlane.xlu0 %2761
        %2763 = vadd.xlane.f32.xlu0 %v2741
        %v2764 = vpop.xlane.xlu0 %2763
        %2765 = vadd.xlane.f32.xlu0 %v2742
        %v2766 = vpop.xlane.xlu0 %2765
        %2767 = vadd.xlane.f32.xlu0 %v2743
        %v2768 = vpop.xlane.xlu0 %2767
        %2769 = vadd.xlane.f32.xlu0 %v2744
        %v2770 = vpop.xlane.xlu0 %2769
        %2771 = vadd.xlane.f32.xlu0 %v2745
        %v2772 = vpop.xlane.xlu0 %2771
        %2773 = vadd.xlane.f32.xlu0 %v2746
        %v2774 = vpop.xlane.xlu0 %2773
        %2775 = vadd.xlane.f32.xlu0 %v2747
        %v2776 = vpop.xlane.xlu0 %2775
        %2777 = vadd.xlane.f32.xlu0 %v2748
        %v2778 = vpop.xlane.xlu0 %2777
        %2779 = vadd.xlane.f32.xlu0 %v2749
        %v2780 = vpop.xlane.xlu0 %2779
        %2781 = vadd.xlane.f32.xlu0 %v2750
        %v2782 = vpop.xlane.xlu0 %2781
        %2783 = vadd.xlane.f32.xlu0 %v2751
        %v2784 = vpop.xlane.xlu0 %2783
        %2785 = vadd.xlane.f32.xlu0 %v2752
        %v2786 = vpop.xlane.xlu0 %2785
        %v2787 = vmul.f32 %v2756, %v1672
        %v2788 = vmul.f32 %v2758, %v1672
        %v2789 = vmul.f32 %v2760, %v1672
        %v2790 = vmul.f32 %v2762, %v1672
        %v2791 = vmul.f32 %v2764, %v1672
        %v2792 = vmul.f32 %v2766, %v1672
        %v2793 = vmul.f32 %v2768, %v1672
        %v2794 = vmul.f32 %v2770, %v1672
        %v2795 = vmul.f32 %v2772, %v1672
        %v2796 = vmul.f32 %v2774, %v1672
        %v2797 = vmul.f32 %v2776, %v1672
        %v2798 = vmul.f32 %v2778, %v1672
        %v2799 = vmul.f32 %v2780, %v1672
        %v2800 = vmul.f32 %v2782, %v1672
        %v2801 = vmul.f32 %v2784, %v1672
        %v2802 = vmul.f32 %v2786, %v1672
        %v2803 = vmul.f32 %v2737, %v2737
        %v2804 = vmul.f32 %v2738, %v2738
        %v2805 = vmul.f32 %v2739, %v2739
        %v2806 = vmul.f32 %v2740, %v2740
        %v2807 = vmul.f32 %v2741, %v2741
        %v2808 = vmul.f32 %v2742, %v2742
        %v2809 = vmul.f32 %v2743, %v2743
        %v2810 = vmul.f32 %v2744, %v2744
        %v2811 = vmul.f32 %v2745, %v2745
        %v2812 = vmul.f32 %v2746, %v2746
        %v2813 = vmul.f32 %v2747, %v2747
        %v2814 = vmul.f32 %v2748, %v2748
        %v2815 = vmul.f32 %v2749, %v2749
        %v2816 = vmul.f32 %v2750, %v2750
        %v2817 = vmul.f32 %v2751, %v2751
        %v2818 = vmul.f32 %v2752, %v2752
        %2819 = vadd.xlane.f32.xlu0 %v2803
        %v2820 = vpop.xlane.xlu0 %2819
        %2821 = vadd.xlane.f32.xlu0 %v2804
        %v2822 = vpop.xlane.xlu0 %2821
        %2823 = vadd.xlane.f32.xlu0 %v2805
        %v2824 = vpop.xlane.xlu0 %2823
        %2825 = vadd.xlane.f32.xlu0 %v2806
        %v2826 = vpop.xlane.xlu0 %2825
        %2827 = vadd.xlane.f32.xlu0 %v2807
        %v2828 = vpop.xlane.xlu0 %2827
        %2829 = vadd.xlane.f32.xlu0 %v2808
        %v2830 = vpop.xlane.xlu0 %2829
        %2831 = vadd.xlane.f32.xlu0 %v2809
        %v2832 = vpop.xlane.xlu0 %2831
        %2833 = vadd.xlane.f32.xlu0 %v2810
        %v2834 = vpop.xlane.xlu0 %2833
        %2835 = vadd.xlane.f32.xlu0 %v2811
        %v2836 = vpop.xlane.xlu0 %2835
        %2837 = vadd.xlane.f32.xlu0 %v2812
        %v2838 = vpop.xlane.xlu0 %2837
        %2839 = vadd.xlane.f32.xlu0 %v2813
        %v2840 = vpop.xlane.xlu0 %2839
        %2841 = vadd.xlane.f32.xlu0 %v2814
        %v2842 = vpop.xlane.xlu0 %2841
        %2843 = vadd.xlane.f32.xlu0 %v2815
        %v2844 = vpop.xlane.xlu0 %2843
        %2845 = vadd.xlane.f32.xlu0 %v2816
        %v2846 = vpop.xlane.xlu0 %2845
        %2847 = vadd.xlane.f32.xlu0 %v2817
        %v2848 = vpop.xlane.xlu0 %2847
        %2849 = vadd.xlane.f32.xlu0 %v2818
        %v2850 = vpop.xlane.xlu0 %2849
        %v2851 = vmul.f32 %v2820, %v1672
        %v2852 = vmul.f32 %v2822, %v1672
        %v2853 = vmul.f32 %v2824, %v1672
        %v2854 = vmul.f32 %v2826, %v1672
        %v2855 = vmul.f32 %v2828, %v1672
        %v2856 = vmul.f32 %v2830, %v1672
        %v2857 = vmul.f32 %v2832, %v1672
        %v2858 = vmul.f32 %v2834, %v1672
        %v2859 = vmul.f32 %v2836, %v1672
        %v2860 = vmul.f32 %v2838, %v1672
        %v2861 = vmul.f32 %v2840, %v1672
        %v2862 = vmul.f32 %v2842, %v1672
        %v2863 = vmul.f32 %v2844, %v1672
        %v2864 = vmul.f32 %v2846, %v1672
        %v2865 = vmul.f32 %v2848, %v1672
        %v2866 = vmul.f32 %v2850, %v1672
        %v2867 = vmul.f32 %v2787, %v2787
        %v2868 = vmul.f32 %v2788, %v2788
        %v2869 = vmul.f32 %v2789, %v2789
        %v2870 = vmul.f32 %v2790, %v2790
        %v2871 = vmul.f32 %v2791, %v2791
        %v2872 = vmul.f32 %v2792, %v2792
        %v2873 = vmul.f32 %v2793, %v2793
        %v2874 = vmul.f32 %v2794, %v2794
        %v2875 = vmul.f32 %v2795, %v2795
        %v2876 = vmul.f32 %v2796, %v2796
        %v2877 = vmul.f32 %v2797, %v2797
        %v2878 = vmul.f32 %v2798, %v2798
        %v2879 = vmul.f32 %v2799, %v2799
        %v2880 = vmul.f32 %v2800, %v2800
        %v2881 = vmul.f32 %v2801, %v2801
        %v2882 = vmul.f32 %v2802, %v2802
        %v2883 = vsub.f32 %v2851, %v2867
        %v2884 = vsub.f32 %v2852, %v2868
        %v2885 = vsub.f32 %v2853, %v2869
        %v2886 = vsub.f32 %v2854, %v2870
        %v2887 = vsub.f32 %v2855, %v2871
        %v2888 = vsub.f32 %v2856, %v2872
        %v2889 = vsub.f32 %v2857, %v2873
        %v2890 = vsub.f32 %v2858, %v2874
        %v2891 = vsub.f32 %v2859, %v2875
        %v2892 = vsub.f32 %v2860, %v2876
        %v2893 = vsub.f32 %v2861, %v2877
        %v2894 = vsub.f32 %v2862, %v2878
        %v2895 = vsub.f32 %v2863, %v2879
        %v2896 = vsub.f32 %v2864, %v2880
        %v2897 = vsub.f32 %v2865, %v2881
        %v2898 = vsub.f32 %v2866, %v2882
        %v2899 = vmax.f32 %v2883, 0.0
        %v2900 = vmax.f32 %v2884, 0.0
        %v2901 = vmax.f32 %v2885, 0.0
        %v2902 = vmax.f32 %v2886, 0.0
        %v2903 = vmax.f32 %v2887, 0.0
        %v2904 = vmax.f32 %v2888, 0.0
        %v2905 = vmax.f32 %v2889, 0.0
        %v2906 = vmax.f32 %v2890, 0.0
        %v2907 = vmax.f32 %v2891, 0.0
        %v2908 = vmax.f32 %v2892, 0.0
        %v2909 = vmax.f32 %v2893, 0.0
        %v2910 = vmax.f32 %v2894, 0.0
        %v2911 = vmax.f32 %v2895, 0.0
        %v2912 = vmax.f32 %v2896, 0.0
        %v2913 = vmax.f32 %v2897, 0.0
        %v2914 = vmax.f32 %v2898, 0.0
        %v2915 = vsub.f32 %v2737, %v2787
        %v2916 = vsub.f32 %v2738, %v2788
        %v2917 = vsub.f32 %v2739, %v2789
        %v2918 = vsub.f32 %v2740, %v2790
        %v2919 = vsub.f32 %v2741, %v2791
        %v2920 = vsub.f32 %v2742, %v2792
        %v2921 = vsub.f32 %v2743, %v2793
        %v2922 = vsub.f32 %v2744, %v2794
        %v2923 = vsub.f32 %v2745, %v2795
        %v2924 = vsub.f32 %v2746, %v2796
        %v2925 = vsub.f32 %v2747, %v2797
        %v2926 = vsub.f32 %v2748, %v2798
        %v2927 = vsub.f32 %v2749, %v2799
        %v2928 = vsub.f32 %v2750, %v2800
        %v2929 = vsub.f32 %v2751, %v2801
        %v2930 = vsub.f32 %v2752, %v2802
        %v2931 = vadd.f32 %v2899, 1e-05
        %v2932 = vadd.f32 %v2900, 1e-05
        %v2933 = vadd.f32 %v2901, 1e-05
        %v2934 = vadd.f32 %v2902, 1e-05
        %v2935 = vadd.f32 %v2903, 1e-05
        %v2936 = vadd.f32 %v2904, 1e-05
        %v2937 = vadd.f32 %v2905, 1e-05
        %v2938 = vadd.f32 %v2906, 1e-05
        %v2939 = vadd.f32 %v2907, 1e-05
        %v2940 = vadd.f32 %v2908, 1e-05
        %v2941 = vadd.f32 %v2909, 1e-05
        %v2942 = vadd.f32 %v2910, 1e-05
        %v2943 = vadd.f32 %v2911, 1e-05
        %v2944 = vadd.f32 %v2912, 1e-05
        %v2945 = vadd.f32 %v2913, 1e-05
        %v2946 = vadd.f32 %v2914, 1e-05
        %v2947 = vrsqrt.pop %v2931
        %v2948 = vrsqrt.pop %v2932
        %v2949 = vrsqrt.pop %v2933
        %v2950 = vrsqrt.pop %v2934
        %v2951 = vrsqrt.pop %v2935
        %v2952 = vrsqrt.pop %v2936
        %v2953 = vrsqrt.pop %v2937
        %v2954 = vrsqrt.pop %v2938
        %v2955 = vrsqrt.pop %v2939
        %v2956 = vrsqrt.pop %v2940
        %v2957 = vrsqrt.pop %v2941
        %v2958 = vrsqrt.pop %v2942
        %v2959 = vrsqrt.pop %v2943
        %v2960 = vrsqrt.pop %v2944
        %v2961 = vrsqrt.pop %v2945
        %v2962 = vrsqrt.pop %v2946
        %v2963 = vmul.f32 %v2915, %v2947
        %v2964 = vmul.f32 %v2916, %v2948
        %v2965 = vmul.f32 %v2917, %v2949
        %v2966 = vmul.f32 %v2918, %v2950
        %v2967 = vmul.f32 %v2919, %v2951
        %v2968 = vmul.f32 %v2920, %v2952
        %v2969 = vmul.f32 %v2921, %v2953
        %v2970 = vmul.f32 %v2922, %v2954
        %v2971 = vmul.f32 %v2923, %v2955
        %v2972 = vmul.f32 %v2924, %v2956
        %v2973 = vmul.f32 %v2925, %v2957
        %v2974 = vmul.f32 %v2926, %v2958
        %v2975 = vmul.f32 %v2927, %v2959
        %v2976 = vmul.f32 %v2928, %v2960
        %v2977 = vmul.f32 %v2929, %v2961
        %v2978 = vmul.f32 %v2930, %v2962
        %v2980 = vlaneseq
        %v2981 = vshrl.u32 %v2980, 7
        %v2982 = vsub.s32 0, %v2981
        %v2983 = vrot.slane %v2753, %v2982
        %v2985 = vmul.f32 %v2963, %v2983
        %v2986 = vmul.f32 %v2964, %v2983
        %v2987 = vmul.f32 %v2965, %v2983
        %v2988 = vmul.f32 %v2966, %v2983
        %v2989 = vmul.f32 %v2967, %v2983
        %v2990 = vmul.f32 %v2968, %v2983
        %v2991 = vmul.f32 %v2969, %v2983
        %v2992 = vmul.f32 %v2970, %v2983
        %v2993 = vmul.f32 %v2971, %v2983
        %v2994 = vmul.f32 %v2972, %v2983
        %v2995 = vmul.f32 %v2973, %v2983
        %v2996 = vmul.f32 %v2974, %v2983
        %v2997 = vmul.f32 %v2975, %v2983
        %v2998 = vmul.f32 %v2976, %v2983
        %v2999 = vmul.f32 %v2977, %v2983
        %v3000 = vmul.f32 %v2978, %v2983
        %v3002 = vlaneseq
        %v3003 = vshrl.u32 %v3002, 7
        %v3004 = vsub.s32 0, %v3003
        %v3005 = vrot.slane %v2754, %v3004
        %v3007 = vadd.f32 %v2985, %v3005
        %v3008 = vadd.f32 %v2986, %v3005
        %v3009 = vadd.f32 %v2987, %v3005
        %v3010 = vadd.f32 %v2988, %v3005
        %v3011 = vadd.f32 %v2989, %v3005
        %v3012 = vadd.f32 %v2990, %v3005
        %v3013 = vadd.f32 %v2991, %v3005
        %v3014 = vadd.f32 %v2992, %v3005
        %v3015 = vadd.f32 %v2993, %v3005
        %v3016 = vadd.f32 %v2994, %v3005
        %v3017 = vadd.f32 %v2995, %v3005
        %v3018 = vadd.f32 %v2996, %v3005
        %v3019 = vadd.f32 %v2997, %v3005
        %v3020 = vadd.f32 %v2998, %v3005
        %v3021 = vadd.f32 %v2999, %v3005
        %v3022 = vadd.f32 %v3000, %v3005
        %v3023 = vld [vmem:[%s810] sm:$0xff]
        %v3024 = vld [vmem:[%s810 + $0x8] sm:$0xff]
        %v3025 = vld [vmem:[%s810 + $0x10] sm:$0xff]
        %v3026 = vld [vmem:[%s810 + $0x18] sm:$0xff]
        %v3027 = vld [vmem:[%s810 + $0x20] sm:$0xff]
        %v3028 = vld [vmem:[%s810 + $0x28] sm:$0xff]
        %v3029 = vld [vmem:[%s810 + $0x30] sm:$0xff]
        %v3030 = vld [vmem:[%s810 + $0x38] sm:$0xff]
        %v3031 = vld [vmem:[%s810 + $0x40] sm:$0xff]
        %v3032 = vld [vmem:[%s810 + $0x48] sm:$0xff]
        %v3033 = vld [vmem:[%s810 + $0x50] sm:$0xff]
        %v3034 = vld [vmem:[%s810 + $0x58] sm:$0xff]
        %v3035 = vld [vmem:[%s810 + $0x60] sm:$0xff]
        %v3036 = vld [vmem:[%s810 + $0x68] sm:$0xff]
        %v3037 = vld [vmem:[%s810 + $0x70] sm:$0xff]
        %v3038 = vld [vmem:[%s810 + $0x78] sm:$0xff]
        %v3039 = vld [vmem:[%s810 + $0x80] sm:$0xff]
        %v3040 = vld [vmem:[%s810 + $0x88] sm:$0xff]
        %v3041 = vld [vmem:[%s810 + $0x90] sm:$0xff]
        %v3042 = vld [vmem:[%s810 + $0x98] sm:$0xff]
        %v3043 = vld [vmem:[%s810 + $0xa0] sm:$0xff]
        %v3044 = vld [vmem:[%s810 + $0xa8] sm:$0xff]
        %v3045 = vld [vmem:[%s810 + $0xb0] sm:$0xff]
        %v3046 = vld [vmem:[%s810 + $0xb8] sm:$0xff]
        %v3047 = vld [vmem:[%s810 + $0xc0] sm:$0xff]
        %v3048 = vld [vmem:[%s810 + $0xc8] sm:$0xff]
        %v3049 = vld [vmem:[%s810 + $0xd0] sm:$0xff]
        %v3050 = vld [vmem:[%s810 + $0xd8] sm:$0xff]
        %v3051 = vld [vmem:[%s810 + $0xe0] sm:$0xff]
        %v3052 = vld [vmem:[%s810 + $0xe8] sm:$0xff]
        %v3053 = vld [vmem:[%s810 + $0xf0] sm:$0xff]
        %v3054 = vld [vmem:[%s810 + $0xf8] sm:$0xff]
        %v3055 = vld [vmem:[%s810 + $0x100] sm:$0xff]
        %v3056 = vld [vmem:[%s810 + $0x108] sm:$0xff]
        %v3057 = vld [vmem:[%s810 + $0x110] sm:$0xff]
        %v3058 = vld [vmem:[%s810 + $0x118] sm:$0xff]
        %v3059 = vld [vmem:[%s810 + $0x120] sm:$0xff]
        %v3060 = vld [vmem:[%s810 + $0x128] sm:$0xff]
        %v3061 = vld [vmem:[%s810 + $0x130] sm:$0xff]
        %v3062 = vld [vmem:[%s810 + $0x138] sm:$0xff]
        %v3063 = vld [vmem:[%s810 + $0x140] sm:$0xff]
        %v3064 = vld [vmem:[%s810 + $0x148] sm:$0xff]
        %v3065 = vld [vmem:[%s810 + $0x150] sm:$0xff]
        %v3066 = vld [vmem:[%s810 + $0x158] sm:$0xff]
        %v3067 = vld [vmem:[%s810 + $0x160] sm:$0xff]
        %v3068 = vld [vmem:[%s810 + $0x168] sm:$0xff]
        %v3069 = vld [vmem:[%s810 + $0x170] sm:$0xff]
        %v3070 = vld [vmem:[%s810 + $0x178] sm:$0xff]
        %v3071 = vld [vmem:[%s810 + $0x180] sm:$0xff]
        %v3072 = vld [vmem:[%s810 + $0x188] sm:$0xff]
        %v3073 = vld [vmem:[%s810 + $0x190] sm:$0xff]
        %v3074 = vld [vmem:[%s810 + $0x198] sm:$0xff]
        %v3075 = vld [vmem:[%s810 + $0x1a0] sm:$0xff]
        %v3076 = vld [vmem:[%s810 + $0x1a8] sm:$0xff]
        %v3077 = vld [vmem:[%s810 + $0x1b0] sm:$0xff]
        %v3078 = vld [vmem:[%s810 + $0x1b8] sm:$0xff]
        %v3079 = vld [vmem:[%s810 + $0x1c0] sm:$0xff]
        %v3080 = vld [vmem:[%s810 + $0x1c8] sm:$0xff]
        %v3081 = vld [vmem:[%s810 + $0x1d0] sm:$0xff]
        %v3082 = vld [vmem:[%s810 + $0x1d8] sm:$0xff]
        %v3083 = vld [vmem:[%s810 + $0x1e0] sm:$0xff]
        %v3084 = vld [vmem:[%s810 + $0x1e8] sm:$0xff]
        %v3085 = vld [vmem:[%s810 + $0x1f0] sm:$0xff]
        %v3086 = vld [vmem:[%s810 + $0x1f8] sm:$0xff]
        %v3087 = vld [vmem:[%s947] sm:$0xf]
        %v3089 = vlaneseq
        %v3090 = vshrl.u32 %v3089, 7
        %v3091 = vsub.s32 0, %v3090
        %v3092 = vrot.slane %v3087, %v3091
        %v3093 = vlaneseq
        %v3094 = vshrl.u32 %v3093, 7
        %v3095 = vsub.s32 1, %v3094
        %v3096 = vrot.slane %v3087, %v3095
        %v3097 = vlaneseq
        %v3098 = vshrl.u32 %v3097, 7
        %v3099 = vsub.s32 2, %v3098
        %v3100 = vrot.slane %v3087, %v3099
        %v3101 = vlaneseq
        %v3102 = vshrl.u32 %v3101, 7
        %v3103 = vsub.s32 3, %v3102
        %v3104 = vrot.slane %v3087, %v3103
        %3109 = vmatprep.subr.mxu0 %v3024
        %3110 = vmatpush1.msra.mxu0 %v3023
        %3111 = vmatprep.subr.mxu0 %v3028
        %3112 = vmatpush1.msra.mxu0 %v3027
        %3113 = vmatprep.subr.mxu0 %v3032
        %3114 = vmatpush1.msra.mxu0 %v3031
        %3115 = vmatprep.subr.mxu0 %v3036
        %3116 = vmatpush1.msra.mxu0 %v3035
        %3117 = vmatprep.subr.mxu0 %v3040
        %3118 = vmatpush1.msra.mxu0 %v3039
        %3119 = vmatprep.subr.mxu0 %v3044
        %3120 = vmatpush1.msra.mxu0 %v3043
        %3121 = vmatprep.subr.mxu0 %v3048
        %3122 = vmatpush1.msra.mxu0 %v3047
        %3123 = vmatprep.subr.mxu0 %v3052
        %3124 = vmatpush1.msra.mxu0 %v3051
        %3125 = vmatprep.subr.mxu0 %v3056
        %3126 = vmatpush1.msra.mxu0 %v3055
        %3127 = vmatprep.subr.mxu0 %v3060
        %3128 = vmatpush1.msra.mxu0 %v3059
        %3129 = vmatprep.subr.mxu0 %v3064
        %3130 = vmatpush1.msra.mxu0 %v3063
        %3131 = vmatprep.subr.mxu0 %v3068
        %3132 = vmatpush1.msra.mxu0 %v3067
        %3133 = vmatprep.subr.mxu0 %v3072
        %3134 = vmatpush1.msra.mxu0 %v3071
        %3135 = vmatprep.subr.mxu0 %v3076
        %3136 = vmatpush1.msra.mxu0 %v3075
        %3137 = vmatprep.subr.mxu0 %v3080
        %3138 = vmatpush1.msra.mxu0 %v3079
        %3139 = vmatprep.subr.mxu0 %v3084
        %3140 = vmatpush1.msra.mxu0 %v3083
        %3141 = vmatprep.subr.mxu0 0.0
        %3142 = vmatpush1.msra.mxu0 0.0
        %3143 = vmatprep.subr.mxu0 0.0
        %3144 = vmatpush1.msra.mxu0 0.0
        %3145 = vmatprep.subr.mxu0 0.0
        %3146 = vmatpush1.msra.mxu0 0.0
        %3147 = vmatprep.subr.mxu0 0.0
        %3148 = vmatpush1.msra.mxu0 0.0
        %3149 = vmatprep.subr.mxu0 0.0
        %3150 = vmatpush1.msra.mxu0 0.0
        %3151 = vmatprep.subr.mxu0 0.0
        %3152 = vmatpush1.msra.mxu0 0.0
        %3153 = vmatprep.subr.mxu0 0.0
        %3154 = vmatpush1.msra.mxu0 0.0
        %3155 = vmatprep.subr.mxu0 0.0
        %3156 = vmatpush1.msra.mxu0 0.0
        %3157 = vmatprep.subr.mxu0 0.0
        %3158 = vmatpush1.msra.mxu0 0.0
        %3159 = vmatprep.subr.mxu0 0.0
        %3160 = vmatpush1.msra.mxu0 0.0
        %3161 = vmatprep.subr.mxu0 0.0
        %3162 = vmatpush1.msra.mxu0 0.0
        %3163 = vmatprep.subr.mxu0 0.0
        %3164 = vmatpush1.msra.mxu0 0.0
        %3165 = vmatprep.subr.mxu0 0.0
        %3166 = vmatpush1.msra.mxu0 0.0
        %3167 = vmatprep.subr.mxu0 0.0
        %3168 = vmatpush1.msra.mxu0 0.0
        %3169 = vmatprep.subr.mxu0 0.0
        %3170 = vmatpush1.msra.mxu0 0.0
        %3171 = vmatprep.subr.mxu0 0.0
        %3172 = vmatpush1.msra.mxu0 0.0
        %3173 = vmatprep.mubr.f32.mxu0 0.0
        %3174 = vmatmul.mubr.f32.gmra.mrb[0].mxu0 %v3007
        %v3175 = vpop.f32.mrb[0].mxu0
        %v3176 = vadd.f32 %v3092, %v3175
        %v3177 = vpop.f32.mrb[0].mxu0
        %v3178 = vadd.f32 %v3096, %v3177
        %3179 = vmatprep.mubr.f32.mxu0 0.0
        %3180 = vmatmul.mubr.f32.gmra.mrb[0].mxu0 %v3008
        %v3181 = vpop.f32.mrb[0].mxu0
        %v3182 = vadd.f32 %v3092, %v3181
        %v3183 = vpop.f32.mrb[0].mxu0
        %v3184 = vadd.f32 %v3096, %v3183
        %3185 = vmatprep.mubr.f32.mxu0 0.0
        %3186 = vmatmul.mubr.f32.gmra.mrb[0].mxu0 %v3009
        %v3187 = vpop.f32.mrb[0].mxu0
        %v3188 = vadd.f32 %v3092, %v3187
        %v3189 = vpop.f32.mrb[0].mxu0
        %v3190 = vadd.f32 %v3096, %v3189
        %3191 = vmatprep.mubr.f32.mxu0 0.0
        %3192 = vmatmul.mubr.f32.gmra.mrb[0].mxu0 %v3010
        %v3193 = vpop.f32.mrb[0].mxu0
        %v3194 = vadd.f32 %v3092, %v3193
        %v3195 = vpop.f32.mrb[0].mxu0
        %v3196 = vadd.f32 %v3096, %v3195
        %3197 = vmatprep.mubr.f32.mxu0 0.0
        %3198 = vmatmul.mubr.f32.gmra.mrb[0].mxu0 %v3011
        %v3199 = vpop.f32.mrb[0].mxu0
        %v3200 = vadd.f32 %v3092, %v3199
        %v3201 = vpop.f32.mrb[0].mxu0
        %v3202 = vadd.f32 %v3096, %v3201
        %3203 = vmatprep.mubr.f32.mxu0 0.0
        %3204 = vmatmul.mubr.f32.gmra.mrb[0].mxu0 %v3012
        %v3205 = vpop.f32.mrb[0].mxu0
        %v3206 = vadd.f32 %v3092, %v3205
        %v3207 = vpop.f32.mrb[0].mxu0
        %v3208 = vadd.f32 %v3096, %v3207
        %3209 = vmatprep.mubr.f32.mxu0 0.0
        %3210 = vmatmul.mubr.f32.gmra.mrb[0].mxu0 %v3013
        %v3211 = vpop.f32.mrb[0].mxu0
        %v3212 = vadd.f32 %v3092, %v3211
        %v3213 = vpop.f32.mrb[0].mxu0
        %v3214 = vadd.f32 %v3096, %v3213
        %3215 = vmatprep.mubr.f32.mxu0 0.0
        %3216 = vmatmul.mubr.f32.gmra.mrb[0].mxu0 %v3014
        %v3217 = vpop.f32.mrb[0].mxu0
        %v3218 = vadd.f32 %v3092, %v3217
        %v3219 = vpop.f32.mrb[0].mxu0
        %v3220 = vadd.f32 %v3096, %v3219
        %3221 = vmatprep.mubr.f32.mxu0 0.0
        %3222 = vmatmul.mubr.f32.gmra.mrb[0].mxu0 %v3015
        %v3223 = vpop.f32.mrb[0].mxu0
        %v3224 = vadd.f32 %v3092, %v3223
        %v3225 = vpop.f32.mrb[0].mxu0
        %v3226 = vadd.f32 %v3096, %v3225
        %3227 = vmatprep.mubr.f32.mxu0 0.0
        %3228 = vmatmul.mubr.f32.gmra.mrb[0].mxu0 %v3016
        %v3229 = vpop.f32.mrb[0].mxu0
        %v3230 = vadd.f32 %v3092, %v3229
        %v3231 = vpop.f32.mrb[0].mxu0
        %v3232 = vadd.f32 %v3096, %v3231
        %3233 = vmatprep.mubr.f32.mxu0 0.0
        %3234 = vmatmul.mubr.f32.gmra.mrb[0].mxu0 %v3017
        %v3235 = vpop.f32.mrb[0].mxu0
        %v3236 = vadd.f32 %v3092, %v3235
        %v3237 = vpop.f32.mrb[0].mxu0
        %v3238 = vadd.f32 %v3096, %v3237
        %3239 = vmatprep.mubr.f32.mxu0 0.0
        %3240 = vmatmul.mubr.f32.gmra.mrb[0].mxu0 %v3018
        %v3241 = vpop.f32.mrb[0].mxu0
        %v3242 = vadd.f32 %v3092, %v3241
        %v3243 = vpop.f32.mrb[0].mxu0
        %v3244 = vadd.f32 %v3096, %v3243
        %3245 = vmatprep.mubr.f32.mxu0 0.0
        %3246 = vmatmul.mubr.f32.gmra.mrb[0].mxu0 %v3019
        %v3247 = vpop.f32.mrb[0].mxu0
        %v3248 = vadd.f32 %v3092, %v3247
        %v3249 = vpop.f32.mrb[0].mxu0
        %v3250 = vadd.f32 %v3096, %v3249
        %3251 = vmatprep.mubr.f32.mxu0 0.0
        %3252 = vmatmul.mubr.f32.gmra.mrb[0].mxu0 %v3020
        %v3253 = vpop.f32.mrb[0].mxu0
        %v3254 = vadd.f32 %v3092, %v3253
        %v3255 = vpop.f32.mrb[0].mxu0
        %v3256 = vadd.f32 %v3096, %v3255
        %3257 = vmatprep.mubr.f32.mxu0 0.0
        %3258 = vmatmul.mubr.f32.gmra.mrb[0].mxu0 %v3021
        %v3259 = vpop.f32.mrb[0].mxu0
        %v3260 = vadd.f32 %v3092, %v3259
        %v3261 = vpop.f32.mrb[0].mxu0
        %v3262 = vadd.f32 %v3096, %v3261
        %3263 = vmatprep.mubr.f32.mxu0 0.0
        %3264 = vmatmul.mubr.f32.gmra.mrb[0].mxu0 %v3022
        %v3265 = vpop.f32.mrb[0].mxu0
        %v3266 = vadd.f32 %v3092, %v3265
        %v3267 = vpop.f32.mrb[0].mxu0
        %v3268 = vadd.f32 %v3096, %v3267
        %3269 = vdwg.mxu0
        %3270 = vmatprep.subr.mxu0 %v3026
        %3271 = vmatpush1.msra.mxu0 %v3025
        %3272 = vmatprep.subr.mxu0 %v3030
        %3273 = vmatpush1.msra.mxu0 %v3029
        %3274 = vmatprep.subr.mxu0 %v3034
        %3275 = vmatpush1.msra.mxu0 %v3033
        %3276 = vmatprep.subr.mxu0 %v3038
        %3277 = vmatpush1.msra.mxu0 %v3037
        %3278 = vmatprep.subr.mxu0 %v3042
        %3279 = vmatpush1.msra.mxu0 %v3041
        %3280 = vmatprep.subr.mxu0 %v3046
        %3281 = vmatpush1.msra.mxu0 %v3045
        %3282 = vmatprep.subr.mxu0 %v3050
        %3283 = vmatpush1.msra.mxu0 %v3049
        %3284 = vmatprep.subr.mxu0 %v3054
        %3285 = vmatpush1.msra.mxu0 %v3053
        %3286 = vmatprep.subr.mxu0 %v3058
        %3287 = vmatpush1.msra.mxu0 %v3057
        %3288 = vmatprep.subr.mxu0 %v3062
        %3289 = vmatpush1.msra.mxu0 %v3061
        %3290 = vmatprep.subr.mxu0 %v3066
        %3291 = vmatpush1.msra.mxu0 %v3065
        %3292 = vmatprep.subr.mxu0 %v3070
        %3293 = vmatpush1.msra.mxu0 %v3069
        %3294 = vmatprep.subr.mxu0 %v3074
        %3295 = vmatpush1.msra.mxu0 %v3073
        %3296 = vmatprep.subr.mxu0 %v3078
        %3297 = vmatpush1.msra.mxu0 %v3077
        %3298 = vmatprep.subr.mxu0 %v3082
        %3299 = vmatpush1.msra.mxu0 %v3081
        %3300 = vmatprep.subr.mxu0 %v3086
        %3301 = vmatpush1.msra.mxu0 %v3085
        %3302 = vmatprep.subr.mxu0 0.0
        %3303 = vmatpush1.msra.mxu0 0.0
        %3304 = vmatprep.subr.mxu0 0.0
        %3305 = vmatpush1.msra.mxu0 0.0
        %3306 = vmatprep.subr.mxu0 0.0
        %3307 = vmatpush1.msra.mxu0 0.0
        %3308 = vmatprep.subr.mxu0 0.0
        %3309 = vmatpush1.msra.mxu0 0.0
        %3310 = vmatprep.subr.mxu0 0.0
        %3311 = vmatpush1.msra.mxu0 0.0
        %3312 = vmatprep.subr.mxu0 0.0
        %3313 = vmatpush1.msra.mxu0 0.0
        %3314 = vmatprep.subr.mxu0 0.0
        %3315 = vmatpush1.msra.mxu0 0.0
        %3316 = vmatprep.subr.mxu0 0.0
        %3317 = vmatpush1.msra.mxu0 0.0
        %3318 = vmatprep.subr.mxu0 0.0
        %3319 = vmatpush1.msra.mxu0 0.0
        %3320 = vmatprep.subr.mxu0 0.0
        %3321 = vmatpush1.msra.mxu0 0.0
        %3322 = vmatprep.subr.mxu0 0.0
        %3323 = vmatpush1.msra.mxu0 0.0
        %3324 = vmatprep.subr.mxu0 0.0
        %3325 = vmatpush1.msra.mxu0 0.0
        %3326 = vmatprep.subr.mxu0 0.0
        %3327 = vmatpush1.msra.mxu0 0.0
        %3328 = vmatprep.subr.mxu0 0.0
        %3329 = vmatpush1.msra.mxu0 0.0
        %3330 = vmatprep.subr.mxu0 0.0
        %3331 = vmatpush1.msra.mxu0 0.0
        %3332 = vmatprep.subr.mxu0 0.0
        %3333 = vmatpush1.msra.mxu0 0.0
        %3334 = vmatprep.mubr.f32.mxu0 0.0
        %3335 = vmatmul.mubr.f32.gmra.mrb[0].mxu0 %v3007
        %v3336 = vpop.f32.mrb[0].mxu0
        %v3337 = vadd.f32 %v3100, %v3336
        %v3338 = vpop.f32.mrb[0].mxu0
        %v3339 = vadd.f32 %v3104, %v3338
        %3340 = vmatprep.mubr.f32.mxu0 0.0
        %3341 = vmatmul.mubr.f32.gmra.mrb[0].mxu0 %v3008
        %v3342 = vpop.f32.mrb[0].mxu0
        %v3343 = vadd.f32 %v3100, %v3342
        %v3344 = vpop.f32.mrb[0].mxu0
        %v3345 = vadd.f32 %v3104, %v3344
        %3346 = vmatprep.mubr.f32.mxu0 0.0
        %3347 = vmatmul.mubr.f32.gmra.mrb[0].mxu0 %v3009
        %v3348 = vpop.f32.mrb[0].mxu0
        %v3349 = vadd.f32 %v3100, %v3348
        %v3350 = vpop.f32.mrb[0].mxu0
        %v3351 = vadd.f32 %v3104, %v3350
        %3352 = vmatprep.mubr.f32.mxu0 0.0
        %3353 = vmatmul.mubr.f32.gmra.mrb[0].mxu0 %v3010
        %v3354 = vpop.f32.mrb[0].mxu0
        %v3355 = vadd.f32 %v3100, %v3354
        %v3356 = vpop.f32.mrb[0].mxu0
        %v3357 = vadd.f32 %v3104, %v3356
        %3358 = vmatprep.mubr.f32.mxu0 0.0
        %3359 = vmatmul.mubr.f32.gmra.mrb[0].mxu0 %v3011
        %v3360 = vpop.f32.mrb[0].mxu0
        %v3361 = vadd.f32 %v3100, %v3360
        %v3362 = vpop.f32.mrb[0].mxu0
        %v3363 = vadd.f32 %v3104, %v3362
        %3364 = vmatprep.mubr.f32.mxu0 0.0
        %3365 = vmatmul.mubr.f32.gmra.mrb[0].mxu0 %v3012
        %v3366 = vpop.f32.mrb[0].mxu0
        %v3367 = vadd.f32 %v3100, %v3366
        %v3368 = vpop.f32.mrb[0].mxu0
        %v3369 = vadd.f32 %v3104, %v3368
        %3370 = vmatprep.mubr.f32.mxu0 0.0
        %3371 = vmatmul.mubr.f32.gmra.mrb[0].mxu0 %v3013
        %v3372 = vpop.f32.mrb[0].mxu0
        %v3373 = vadd.f32 %v3100, %v3372
        %v3374 = vpop.f32.mrb[0].mxu0
        %v3375 = vadd.f32 %v3104, %v3374
        %3376 = vmatprep.mubr.f32.mxu0 0.0
        %3377 = vmatmul.mubr.f32.gmra.mrb[0].mxu0 %v3014
        %v3378 = vpop.f32.mrb[0].mxu0
        %v3379 = vadd.f32 %v3100, %v3378
        %v3380 = vpop.f32.mrb[0].mxu0
        %v3381 = vadd.f32 %v3104, %v3380
        %3382 = vmatprep.mubr.f32.mxu0 0.0
        %3383 = vmatmul.mubr.f32.gmra.mrb[0].mxu0 %v3015
        %v3384 = vpop.f32.mrb[0].mxu0
        %v3385 = vadd.f32 %v3100, %v3384
        %v3386 = vpop.f32.mrb[0].mxu0
        %v3387 = vadd.f32 %v3104, %v3386
        %3388 = vmatprep.mubr.f32.mxu0 0.0
        %3389 = vmatmul.mubr.f32.gmra.mrb[0].mxu0 %v3016
        %v3390 = vpop.f32.mrb[0].mxu0
        %v3391 = vadd.f32 %v3100, %v3390
        %v3392 = vpop.f32.mrb[0].mxu0
        %v3393 = vadd.f32 %v3104, %v3392
        %3394 = vmatprep.mubr.f32.mxu0 0.0
        %3395 = vmatmul.mubr.f32.gmra.mrb[0].mxu0 %v3017
        %v3396 = vpop.f32.mrb[0].mxu0
        %v3397 = vadd.f32 %v3100, %v3396
        %v3398 = vpop.f32.mrb[0].mxu0
        %v3399 = vadd.f32 %v3104, %v3398
        %3400 = vmatprep.mubr.f32.mxu0 0.0
        %3401 = vmatmul.mubr.f32.gmra.mrb[0].mxu0 %v3018
        %v3402 = vpop.f32.mrb[0].mxu0
        %v3403 = vadd.f32 %v3100, %v3402
        %v3404 = vpop.f32.mrb[0].mxu0
        %v3405 = vadd.f32 %v3104, %v3404
        %3406 = vmatprep.mubr.f32.mxu0 0.0
        %3407 = vmatmul.mubr.f32.gmra.mrb[0].mxu0 %v3019
        %v3408 = vpop.f32.mrb[0].mxu0
        %v3409 = vadd.f32 %v3100, %v3408
        %v3410 = vpop.f32.mrb[0].mxu0
        %v3411 = vadd.f32 %v3104, %v3410
        %3412 = vmatprep.mubr.f32.mxu0 0.0
        %3413 = vmatmul.mubr.f32.gmra.mrb[0].mxu0 %v3020
        %v3414 = vpop.f32.mrb[0].mxu0
        %v3415 = vadd.f32 %v3100, %v3414
        %v3416 = vpop.f32.mrb[0].mxu0
        %v3417 = vadd.f32 %v3104, %v3416
        %3418 = vmatprep.mubr.f32.mxu0 0.0
        %3419 = vmatmul.mubr.f32.gmra.mrb[0].mxu0 %v3021
        %v3420 = vpop.f32.mrb[0].mxu0
        %v3421 = vadd.f32 %v3100, %v3420
        %v3422 = vpop.f32.mrb[0].mxu0
        %v3423 = vadd.f32 %v3104, %v3422
        %3424 = vmatprep.mubr.f32.mxu0 0.0
        %3425 = vmatmul.mubr.f32.gmra.mrb[0].mxu0 %v3022
        %v3426 = vpop.f32.mrb[0].mxu0
        %v3427 = vadd.f32 %v3100, %v3426
        %v3428 = vpop.f32.mrb[0].mxu0
        %v3429 = vadd.f32 %v3104, %v3428
        %3430 = vdwg.mxu0
        %v3431 = vmul.f32 %v3176, 0.5
        %v3432 = vmul.f32 %v3178, 0.5
        %v3433 = vmul.f32 %v3337, 0.5
        %v3434 = vmul.f32 %v3339, 0.5
        %v3435 = vmul.f32 %v3182, 0.5
        %v3436 = vmul.f32 %v3184, 0.5
        %v3437 = vmul.f32 %v3343, 0.5
        %v3438 = vmul.f32 %v3345, 0.5
        %v3439 = vmul.f32 %v3188, 0.5
        %v3440 = vmul.f32 %v3190, 0.5
        %v3441 = vmul.f32 %v3349, 0.5
        %v3442 = vmul.f32 %v3351, 0.5
        %v3443 = vmul.f32 %v3194, 0.5
        %v3444 = vmul.f32 %v3196, 0.5
        %v3445 = vmul.f32 %v3355, 0.5
        %v3446 = vmul.f32 %v3357, 0.5
        %v3447 = vmul.f32 %v3200, 0.5
        %v3448 = vmul.f32 %v3202, 0.5
        %v3449 = vmul.f32 %v3361, 0.5
        %v3450 = vmul.f32 %v3363, 0.5
        %v3451 = vmul.f32 %v3206, 0.5
        %v3452 = vmul.f32 %v3208, 0.5
        %v3453 = vmul.f32 %v3367, 0.5
        %v3454 = vmul.f32 %v3369, 0.5
        %v3455 = vmul.f32 %v3212, 0.5
        %v3456 = vmul.f32 %v3214, 0.5
        %v3457 = vmul.f32 %v3373, 0.5
        %v3458 = vmul.f32 %v3375, 0.5
        %v3459 = vmul.f32 %v3218, 0.5
        %v3460 = vmul.f32 %v3220, 0.5
        %v3461 = vmul.f32 %v3379, 0.5
        %v3462 = vmul.f32 %v3381, 0.5
        %v3463 = vmul.f32 %v3224, 0.5
        %v3464 = vmul.f32 %v3226, 0.5
        %v3465 = vmul.f32 %v3385, 0.5
        %v3466 = vmul.f32 %v3387, 0.5
        %v3467 = vmul.f32 %v3230, 0.5
        %v3468 = vmul.f32 %v3232, 0.5
        %v3469 = vmul.f32 %v3391, 0.5
        %v3470 = vmul.f32 %v3393, 0.5
        %v3471 = vmul.f32 %v3236, 0.5
        %v3472 = vmul.f32 %v3238, 0.5
        %v3473 = vmul.f32 %v3397, 0.5
        %v3474 = vmul.f32 %v3399, 0.5
        %v3475 = vmul.f32 %v3242, 0.5
        %v3476 = vmul.f32 %v3244, 0.5
        %v3477 = vmul.f32 %v3403, 0.5
        %v3478 = vmul.f32 %v3405, 0.5
        %v3479 = vmul.f32 %v3248, 0.5
        %v3480 = vmul.f32 %v3250, 0.5
        %v3481 = vmul.f32 %v3409, 0.5
        %v3482 = vmul.f32 %v3411, 0.5
        %v3483 = vmul.f32 %v3254, 0.5
        %v3484 = vmul.f32 %v3256, 0.5
        %v3485 = vmul.f32 %v3415, 0.5
        %v3486 = vmul.f32 %v3417, 0.5
        %v3487 = vmul.f32 %v3260, 0.5
        %v3488 = vmul.f32 %v3262, 0.5
        %v3489 = vmul.f32 %v3421, 0.5
        %v3490 = vmul.f32 %v3423, 0.5
        %v3491 = vmul.f32 %v3266, 0.5
        %v3492 = vmul.f32 %v3268, 0.5
        %v3493 = vmul.f32 %v3427, 0.5
        %v3494 = vmul.f32 %v3429, 0.5
        %v3495 = vmul.f32 %v3176, 0.70710677
        %v3496 = vmul.f32 %v3178, 0.70710677
        %v3497 = vmul.f32 %v3337, 0.70710677
        %v3498 = vmul.f32 %v3339, 0.70710677
        %v3499 = vmul.f32 %v3182, 0.70710677
        %v3500 = vmul.f32 %v3184, 0.70710677
        %v3501 = vmul.f32 %v3343, 0.70710677
        %v3502 = vmul.f32 %v3345, 0.70710677
        %v3503 = vmul.f32 %v3188, 0.70710677
        %v3504 = vmul.f32 %v3190, 0.70710677
        %v3505 = vmul.f32 %v3349, 0.70710677
        %v3506 = vmul.f32 %v3351, 0.70710677
        %v3507 = vmul.f32 %v3194, 0.70710677
        %v3508 = vmul.f32 %v3196, 0.70710677
        %v3509 = vmul.f32 %v3355, 0.70710677
        %v3510 = vmul.f32 %v3357, 0.70710677
        %v3511 = vmul.f32 %v3200, 0.70710677
        %v3512 = vmul.f32 %v3202, 0.70710677
        %v3513 = vmul.f32 %v3361, 0.70710677
        %v3514 = vmul.f32 %v3363, 0.70710677
        %v3515 = vmul.f32 %v3206, 0.70710677
        %v3516 = vmul.f32 %v3208, 0.70710677
        %v3517 = vmul.f32 %v3367, 0.70710677
        %v3518 = vmul.f32 %v3369, 0.70710677
        %v3519 = vmul.f32 %v3212, 0.70710677
        %v3520 = vmul.f32 %v3214, 0.70710677
        %v3521 = vmul.f32 %v3373, 0.70710677
        %v3522 = vmul.f32 %v3375, 0.70710677
        %v3523 = vmul.f32 %v3218, 0.70710677
        %v3524 = vmul.f32 %v3220, 0.70710677
        %v3525 = vmul.f32 %v3379, 0.70710677
        %v3526 = vmul.f32 %v3381, 0.70710677
        %v3527 = vmul.f32 %v3224, 0.70710677
        %v3528 = vmul.f32 %v3226, 0.70710677
        %v3529 = vmul.f32 %v3385, 0.70710677
        %v3530 = vmul.f32 %v3387, 0.70710677
        %v3531 = vmul.f32 %v3230, 0.70710677
        %v3532 = vmul.f32 %v3232, 0.70710677
        %v3533 = vmul.f32 %v3391, 0.70710677
        %v3534 = vmul.f32 %v3393, 0.70710677
        %v3535 = vmul.f32 %v3236, 0.70710677
        %v3536 = vmul.f32 %v3238, 0.70710677
        %v3537 = vmul.f32 %v3397, 0.70710677
        %v3538 = vmul.f32 %v3399, 0.70710677
        %v3539 = vmul.f32 %v3242, 0.70710677
        %v3540 = vmul.f32 %v3244, 0.70710677
        %v3541 = vmul.f32 %v3403, 0.70710677
        %v3542 = vmul.f32 %v3405, 0.70710677
        %v3543 = vmul.f32 %v3248, 0.70710677
        %v3544 = vmul.f32 %v3250, 0.70710677
        %v3545 = vmul.f32 %v3409, 0.70710677
        %v3546 = vmul.f32 %v3411, 0.70710677
        %v3547 = vmul.f32 %v3254, 0.70710677
        %v3548 = vmul.f32 %v3256, 0.70710677
        %v3549 = vmul.f32 %v3415, 0.70710677
        %v3550 = vmul.f32 %v3417, 0.70710677
        %v3551 = vmul.f32 %v3260, 0.70710677
        %v3552 = vmul.f32 %v3262, 0.70710677
        %v3553 = vmul.f32 %v3421, 0.70710677
        %v3554 = vmul.f32 %v3423, 0.70710677
        %v3555 = vmul.f32 %v3266, 0.70710677
        %v3556 = vmul.f32 %v3268, 0.70710677
        %v3557 = vmul.f32 %v3427, 0.70710677
        %v3558 = vmul.f32 %v3429, 0.70710677
        %v3559 = verf.f32.pop %v3495
        %v3560 = verf.f32.pop %v3496
        %v3561 = verf.f32.pop %v3497
        %v3562 = verf.f32.pop %v3498
        %v3563 = verf.f32.pop %v3499
        %v3564 = verf.f32.pop %v3500
        %v3565 = verf.f32.pop %v3501
        %v3566 = verf.f32.pop %v3502
        %v3567 = verf.f32.pop %v3503
        %v3568 = verf.f32.pop %v3504
        %v3569 = verf.f32.pop %v3505
        %v3570 = verf.f32.pop %v3506
        %v3571 = verf.f32.pop %v3507
        %v3572 = verf.f32.pop %v3508
        %v3573 = verf.f32.pop %v3509
        %v3574 = verf.f32.pop %v3510
        %v3575 = verf.f32.pop %v3511
        %v3576 = verf.f32.pop %v3512
        %v3577 = verf.f32.pop %v3513
        %v3578 = verf.f32.pop %v3514
        %v3579 = verf.f32.pop %v3515
        %v3580 = verf.f32.pop %v3516
        %v3581 = verf.f32.pop %v3517
        %v3582 = verf.f32.pop %v3518
        %v3583 = verf.f32.pop %v3519
        %v3584 = verf.f32.pop %v3520
        %v3585 = verf.f32.pop %v3521
        %v3586 = verf.f32.pop %v3522
        %v3587 = verf.f32.pop %v3523
        %v3588 = verf.f32.pop %v3524
        %v3589 = verf.f32.pop %v3525
        %v3590 = verf.f32.pop %v3526
        %v3591 = verf.f32.pop %v3527
        %v3592 = verf.f32.pop %v3528
        %v3593 = verf.f32.pop %v3529
        %v3594 = verf.f32.pop %v3530
        %v3595 = verf.f32.pop %v3531
        %v3596 = verf.f32.pop %v3532
        %v3597 = verf.f32.pop %v3533
        %v3598 = verf.f32.pop %v3534
        %v3599 = verf.f32.pop %v3535
        %v3600 = verf.f32.pop %v3536
        %v3601 = verf.f32.pop %v3537
        %v3602 = verf.f32.pop %v3538
        %v3603 = verf.f32.pop %v3539
        %v3604 = verf.f32.pop %v3540
        %v3605 = verf.f32.pop %v3541
        %v3606 = verf.f32.pop %v3542
        %v3607 = verf.f32.pop %v3543
        %v3608 = verf.f32.pop %v3544
        %v3609 = verf.f32.pop %v3545
        %v3610 = verf.f32.pop %v3546
        %v3611 = verf.f32.pop %v3547
        %v3612 = verf.f32.pop %v3548
        %v3613 = verf.f32.pop %v3549
        %v3614 = verf.f32.pop %v3550
        %v3615 = verf.f32.pop %v3551
        %v3616 = verf.f32.pop %v3552
        %v3617 = verf.f32.pop %v3553
        %v3618 = verf.f32.pop %v3554
        %v3619 = verf.f32.pop %v3555
        %v3620 = verf.f32.pop %v3556
        %v3621 = verf.f32.pop %v3557
        %v3622 = verf.f32.pop %v3558
        %v3623 = vadd.f32 %v3559, 1.0
        %v3624 = vadd.f32 %v3560, 1.0
        %v3625 = vadd.f32 %v3561, 1.0
        %v3626 = vadd.f32 %v3562, 1.0
        %v3627 = vadd.f32 %v3563, 1.0
        %v3628 = vadd.f32 %v3564, 1.0
        %v3629 = vadd.f32 %v3565, 1.0
        %v3630 = vadd.f32 %v3566, 1.0
        %v3631 = vadd.f32 %v3567, 1.0
        %v3632 = vadd.f32 %v3568, 1.0
        %v3633 = vadd.f32 %v3569, 1.0
        %v3634 = vadd.f32 %v3570, 1.0
        %v3635 = vadd.f32 %v3571, 1.0
        %v3636 = vadd.f32 %v3572, 1.0
        %v3637 = vadd.f32 %v3573, 1.0
        %v3638 = vadd.f32 %v3574, 1.0
        %v3639 = vadd.f32 %v3575, 1.0
        %v3640 = vadd.f32 %v3576, 1.0
        %v3641 = vadd.f32 %v3577, 1.0
        %v3642 = vadd.f32 %v3578, 1.0
        %v3643 = vadd.f32 %v3579, 1.0
        %v3644 = vadd.f32 %v3580, 1.0
        %v3645 = vadd.f32 %v3581, 1.0
        %v3646 = vadd.f32 %v3582, 1.0
        %v3647 = vadd.f32 %v3583, 1.0
        %v3648 = vadd.f32 %v3584, 1.0
        %v3649 = vadd.f32 %v3585, 1.0
        %v3650 = vadd.f32 %v3586, 1.0
        %v3651 = vadd.f32 %v3587, 1.0
        %v3652 = vadd.f32 %v3588, 1.0
        %v3653 = vadd.f32 %v3589, 1.0
        %v3654 = vadd.f32 %v3590, 1.0
        %v3655 = vadd.f32 %v3591, 1.0
        %v3656 = vadd.f32 %v3592, 1.0
        %v3657 = vadd.f32 %v3593, 1.0
        %v3658 = vadd.f32 %v3594, 1.0
        %v3659 = vadd.f32 %v3595, 1.0
        %v3660 = vadd.f32 %v3596, 1.0
        %v3661 = vadd.f32 %v3597, 1.0
        %v3662 = vadd.f32 %v3598, 1.0
        %v3663 = vadd.f32 %v3599, 1.0
        %v3664 = vadd.f32 %v3600, 1.0
        %v3665 = vadd.f32 %v3601, 1.0
        %v3666 = vadd.f32 %v3602, 1.0
        %v3667 = vadd.f32 %v3603, 1.0
        %v3668 = vadd.f32 %v3604, 1.0
        %v3669 = vadd.f32 %v3605, 1.0
        %v3670 = vadd.f32 %v3606, 1.0
        %v3671 = vadd.f32 %v3607, 1.0
        %v3672 = vadd.f32 %v3608, 1.0
        %v3673 = vadd.f32 %v3609, 1.0
        %v3674 = vadd.f32 %v3610, 1.0
        %v3675 = vadd.f32 %v3611, 1.0
        %v3676 = vadd.f32 %v3612, 1.0
        %v3677 = vadd.f32 %v3613, 1.0
        %v3678 = vadd.f32 %v3614, 1.0
        %v3679 = vadd.f32 %v3615, 1.0
        %v3680 = vadd.f32 %v3616, 1.0
        %v3681 = vadd.f32 %v3617, 1.0
        %v3682 = vadd.f32 %v3618, 1.0
        %v3683 = vadd.f32 %v3619, 1.0
        %v3684 = vadd.f32 %v3620, 1.0
        %v3685 = vadd.f32 %v3621, 1.0
        %v3686 = vadd.f32 %v3622, 1.0
        %v3687 = vmul.f32 %v3431, %v3623
        %v3688 = vmul.f32 %v3432, %v3624
        %v3689 = vmul.f32 %v3433, %v3625
        %v3690 = vmul.f32 %v3434, %v3626
        %v3691 = vmul.f32 %v3435, %v3627
        %v3692 = vmul.f32 %v3436, %v3628
        %v3693 = vmul.f32 %v3437, %v3629
        %v3694 = vmul.f32 %v3438, %v3630
        %v3695 = vmul.f32 %v3439, %v3631
        %v3696 = vmul.f32 %v3440, %v3632
        %v3697 = vmul.f32 %v3441, %v3633
        %v3698 = vmul.f32 %v3442, %v3634
        %v3699 = vmul.f32 %v3443, %v3635
        %v3700 = vmul.f32 %v3444, %v3636
        %v3701 = vmul.f32 %v3445, %v3637
        %v3702 = vmul.f32 %v3446, %v3638
        %v3703 = vmul.f32 %v3447, %v3639
        %v3704 = vmul.f32 %v3448, %v3640
        %v3705 = vmul.f32 %v3449, %v3641
        %v3706 = vmul.f32 %v3450, %v3642
        %v3707 = vmul.f32 %v3451, %v3643
        %v3708 = vmul.f32 %v3452, %v3644
        %v3709 = vmul.f32 %v3453, %v3645
        %v3710 = vmul.f32 %v3454, %v3646
        %v3711 = vmul.f32 %v3455, %v3647
        %v3712 = vmul.f32 %v3456, %v3648
        %v3713 = vmul.f32 %v3457, %v3649
        %v3714 = vmul.f32 %v3458, %v3650
        %v3715 = vmul.f32 %v3459, %v3651
        %v3716 = vmul.f32 %v3460, %v3652
        %v3717 = vmul.f32 %v3461, %v3653
        %v3718 = vmul.f32 %v3462, %v3654
        %v3719 = vmul.f32 %v3463, %v3655
        %v3720 = vmul.f32 %v3464, %v3656
        %v3721 = vmul.f32 %v3465, %v3657
        %v3722 = vmul.f32 %v3466, %v3658
        %v3723 = vmul.f32 %v3467, %v3659
        %v3724 = vmul.f32 %v3468, %v3660
        %v3725 = vmul.f32 %v3469, %v3661
        %v3726 = vmul.f32 %v3470, %v3662
        %v3727 = vmul.f32 %v3471, %v3663
        %v3728 = vmul.f32 %v3472, %v3664
        %v3729 = vmul.f32 %v3473, %v3665
        %v3730 = vmul.f32 %v3474, %v3666
        %v3731 = vmul.f32 %v3475, %v3667
        %v3732 = vmul.f32 %v3476, %v3668
        %v3733 = vmul.f32 %v3477, %v3669
        %v3734 = vmul.f32 %v3478, %v3670
        %v3735 = vmul.f32 %v3479, %v3671
        %v3736 = vmul.f32 %v3480, %v3672
        %v3737 = vmul.f32 %v3481, %v3673
        %v3738 = vmul.f32 %v3482, %v3674
        %v3739 = vmul.f32 %v3483, %v3675
        %v3740 = vmul.f32 %v3484, %v3676
        %v3741 = vmul.f32 %v3485, %v3677
        %v3742 = vmul.f32 %v3486, %v3678
        %v3743 = vmul.f32 %v3487, %v3679
        %v3744 = vmul.f32 %v3488, %v3680
        %v3745 = vmul.f32 %v3489, %v3681
        %v3746 = vmul.f32 %v3490, %v3682
        %v3747 = vmul.f32 %v3491, %v3683
        %v3748 = vmul.f32 %v3492, %v3684
        %v3749 = vmul.f32 %v3493, %v3685
        %v3750 = vmul.f32 %v3494, %v3686
        %v3751 = vld [vmem:[%s819] sm:$0xff]
        %v3752 = vld [vmem:[%s819 + $0x8] sm:$0xff]
        %v3753 = vld [vmem:[%s819 + $0x10] sm:$0xff]
        %v3754 = vld [vmem:[%s819 + $0x18] sm:$0xff]
        %v3755 = vld [vmem:[%s819 + $0x20] sm:$0xff]
        %v3756 = vld [vmem:[%s819 + $0x28] sm:$0xff]
        %v3757 = vld [vmem:[%s819 + $0x30] sm:$0xff]
        %v3758 = vld [vmem:[%s819 + $0x38] sm:$0xff]
        %v3759 = vld [vmem:[%s819 + $0x40] sm:$0xff]
        %v3760 = vld [vmem:[%s819 + $0x48] sm:$0xff]
        %v3761 = vld [vmem:[%s819 + $0x50] sm:$0xff]
        %v3762 = vld [vmem:[%s819 + $0x58] sm:$0xff]
        %v3763 = vld [vmem:[%s819 + $0x60] sm:$0xff]
        %v3764 = vld [vmem:[%s819 + $0x68] sm:$0xff]
        %v3765 = vld [vmem:[%s819 + $0x70] sm:$0xff]
        %v3766 = vld [vmem:[%s819 + $0x78] sm:$0xff]
        %v3767 = vld [vmem:[%s819 + $0x80] sm:$0xff]
        %v3768 = vld [vmem:[%s819 + $0x88] sm:$0xff]
        %v3769 = vld [vmem:[%s819 + $0x90] sm:$0xff]
        %v3770 = vld [vmem:[%s819 + $0x98] sm:$0xff]
        %v3771 = vld [vmem:[%s819 + $0xa0] sm:$0xff]
        %v3772 = vld [vmem:[%s819 + $0xa8] sm:$0xff]
        %v3773 = vld [vmem:[%s819 + $0xb0] sm:$0xff]
        %v3774 = vld [vmem:[%s819 + $0xb8] sm:$0xff]
        %v3775 = vld [vmem:[%s819 + $0xc0] sm:$0xff]
        %v3776 = vld [vmem:[%s819 + $0xc8] sm:$0xff]
        %v3777 = vld [vmem:[%s819 + $0xd0] sm:$0xff]
        %v3778 = vld [vmem:[%s819 + $0xd8] sm:$0xff]
        %v3779 = vld [vmem:[%s819 + $0xe0] sm:$0xff]
        %v3780 = vld [vmem:[%s819 + $0xe8] sm:$0xff]
        %v3781 = vld [vmem:[%s819 + $0xf0] sm:$0xff]
        %v3782 = vld [vmem:[%s819 + $0xf8] sm:$0xff]
        %v3783 = vld [vmem:[%s819 + $0x100] sm:$0xff]
        %v3784 = vld [vmem:[%s819 + $0x108] sm:$0xff]
        %v3785 = vld [vmem:[%s819 + $0x110] sm:$0xff]
        %v3786 = vld [vmem:[%s819 + $0x118] sm:$0xff]
        %v3787 = vld [vmem:[%s819 + $0x120] sm:$0xff]
        %v3788 = vld [vmem:[%s819 + $0x128] sm:$0xff]
        %v3789 = vld [vmem:[%s819 + $0x130] sm:$0xff]
        %v3790 = vld [vmem:[%s819 + $0x138] sm:$0xff]
        %v3791 = vld [vmem:[%s819 + $0x140] sm:$0xff]
        %v3792 = vld [vmem:[%s819 + $0x148] sm:$0xff]
        %v3793 = vld [vmem:[%s819 + $0x150] sm:$0xff]
        %v3794 = vld [vmem:[%s819 + $0x158] sm:$0xff]
        %v3795 = vld [vmem:[%s819 + $0x160] sm:$0xff]
        %v3796 = vld [vmem:[%s819 + $0x168] sm:$0xff]
        %v3797 = vld [vmem:[%s819 + $0x170] sm:$0xff]
        %v3798 = vld [vmem:[%s819 + $0x178] sm:$0xff]
        %v3799 = vld [vmem:[%s819 + $0x180] sm:$0xff]
        %v3800 = vld [vmem:[%s819 + $0x188] sm:$0xff]
        %v3801 = vld [vmem:[%s819 + $0x190] sm:$0xff]
        %v3802 = vld [vmem:[%s819 + $0x198] sm:$0xff]
        %v3803 = vld [vmem:[%s819 + $0x1a0] sm:$0xff]
        %v3804 = vld [vmem:[%s819 + $0x1a8] sm:$0xff]
        %v3805 = vld [vmem:[%s819 + $0x1b0] sm:$0xff]
        %v3806 = vld [vmem:[%s819 + $0x1b8] sm:$0xff]
        %v3807 = vld [vmem:[%s819 + $0x1c0] sm:$0xff]
        %v3808 = vld [vmem:[%s819 + $0x1c8] sm:$0xff]
        %v3809 = vld [vmem:[%s819 + $0x1d0] sm:$0xff]
        %v3810 = vld [vmem:[%s819 + $0x1d8] sm:$0xff]
        %v3811 = vld [vmem:[%s819 + $0x1e0] sm:$0xff]
        %v3812 = vld [vmem:[%s819 + $0x1e8] sm:$0xff]
        %v3813 = vld [vmem:[%s819 + $0x1f0] sm:$0xff]
        %v3814 = vld [vmem:[%s819 + $0x1f8] sm:$0xff]
        %v3815 = vld [vmem:[%s950] sm:$0x1]
        %v3817 = vlaneseq
        %v3818 = vshrl.u32 %v3817, 7
        %v3819 = vsub.s32 0, %v3818
        %v3820 = vrot.slane %v3815, %v3819
        %3822 = vmatprep.subr.mxu0 0.0
        %3823 = vmatpush1.msra.mxu0 %v3751
        %3824 = vmatprep.subr.mxu0 0.0
        %3825 = vmatpush1.msra.mxu0 %v3752
        %3826 = vmatprep.subr.mxu0 0.0
        %3827 = vmatpush1.msra.mxu0 %v3753
        %3828 = vmatprep.subr.mxu0 0.0
        %3829 = vmatpush1.msra.mxu0 %v3754
        %3830 = vmatprep.subr.mxu0 0.0
        %3831 = vmatpush1.msra.mxu0 %v3755
        %3832 = vmatprep.subr.mxu0 0.0
        %3833 = vmatpush1.msra.mxu0 %v3756
        %3834 = vmatprep.subr.mxu0 0.0
        %3835 = vmatpush1.msra.mxu0 %v3757
        %3836 = vmatprep.subr.mxu0 0.0
        %3837 = vmatpush1.msra.mxu0 %v3758
        %3838 = vmatprep.subr.mxu0 0.0
        %3839 = vmatpush1.msra.mxu0 %v3759
        %3840 = vmatprep.subr.mxu0 0.0
        %3841 = vmatpush1.msra.mxu0 %v3760
        %3842 = vmatprep.subr.mxu0 0.0
        %3843 = vmatpush1.msra.mxu0 %v3761
        %3844 = vmatprep.subr.mxu0 0.0
        %3845 = vmatpush1.msra.mxu0 %v3762
        %3846 = vmatprep.subr.mxu0 0.0
        %3847 = vmatpush1.msra.mxu0 %v3763
        %3848 = vmatprep.subr.mxu0 0.0
        %3849 = vmatpush1.msra.mxu0 %v3764
        %3850 = vmatprep.subr.mxu0 0.0
        %3851 = vmatpush1.msra.mxu0 %v3765
        %3852 = vmatprep.subr.mxu0 0.0
        %3853 = vmatpush1.msra.mxu0 %v3766
        %3854 = vmatprep.subr.mxu0 0.0
        %3855 = vmatpush1.msra.mxu0 %v3767
        %3856 = vmatprep.subr.mxu0 0.0
        %3857 = vmatpush1.msra.mxu0 %v3768
        %3858 = vmatprep.subr.mxu0 0.0
        %3859 = vmatpush1.msra.mxu0 %v3769
        %3860 = vmatprep.subr.mxu0 0.0
        %3861 = vmatpush1.msra.mxu0 %v3770
        %3862 = vmatprep.subr.mxu0 0.0
        %3863 = vmatpush1.msra.mxu0 %v3771
        %3864 = vmatprep.subr.mxu0 0.0
        %3865 = vmatpush1.msra.mxu0 %v3772
        %3866 = vmatprep.subr.mxu0 0.0
        %3867 = vmatpush1.msra.mxu0 %v3773
        %3868 = vmatprep.subr.mxu0 0.0
        %3869 = vmatpush1.msra.mxu0 %v3774
        %3870 = vmatprep.subr.mxu0 0.0
        %3871 = vmatpush1.msra.mxu0 %v3775
        %3872 = vmatprep.subr.mxu0 0.0
        %3873 = vmatpush1.msra.mxu0 %v3776
        %3874 = vmatprep.subr.mxu0 0.0
        %3875 = vmatpush1.msra.mxu0 %v3777
        %3876 = vmatprep.subr.mxu0 0.0
        %3877 = vmatpush1.msra.mxu0 %v3778
        %3878 = vmatprep.subr.mxu0 0.0
        %3879 = vmatpush1.msra.mxu0 %v3779
        %3880 = vmatprep.subr.mxu0 0.0
        %3881 = vmatpush1.msra.mxu0 %v3780
        %3882 = vmatprep.subr.mxu0 0.0
        %3883 = vmatpush1.msra.mxu0 %v3781
        %3884 = vmatprep.subr.mxu0 0.0
        %3885 = vmatpush1.msra.mxu0 %v3782
        %3886 = vmatprep.mubr.f32.mxu0 %v3688
        %3887 = vmatmul.mubr.f32.gmra.mrb[0].mxu0 %v3687
        %v3888 = vpop.f32.mrb[0].mxu0
        %v3889 = vadd.f32 %v3820, %v3888
        %v3890 = vpop.f32.mrb[0].mxu0
        %3891 = vmatprep.mubr.f32.mxu0 %v3692
        %3892 = vmatmul.mubr.f32.gmra.mrb[0].mxu0 %v3691
        %v3893 = vpop.f32.mrb[0].mxu0
        %v3894 = vadd.f32 %v3820, %v3893
        %v3895 = vpop.f32.mrb[0].mxu0
        %3896 = vmatprep.mubr.f32.mxu0 %v3696
        %3897 = vmatmul.mubr.f32.gmra.mrb[0].mxu0 %v3695
        %v3898 = vpop.f32.mrb[0].mxu0
        %v3899 = vadd.f32 %v3820, %v3898
        %v3900 = vpop.f32.mrb[0].mxu0
        %3901 = vmatprep.mubr.f32.mxu0 %v3700
        %3902 = vmatmul.mubr.f32.gmra.mrb[0].mxu0 %v3699
        %v3903 = vpop.f32.mrb[0].mxu0
        %v3904 = vadd.f32 %v3820, %v3903
        %v3905 = vpop.f32.mrb[0].mxu0
        %3906 = vmatprep.mubr.f32.mxu0 %v3704
        %3907 = vmatmul.mubr.f32.gmra.mrb[0].mxu0 %v3703
        %v3908 = vpop.f32.mrb[0].mxu0
        %v3909 = vadd.f32 %v3820, %v3908
        %v3910 = vpop.f32.mrb[0].mxu0
        %3911 = vmatprep.mubr.f32.mxu0 %v3708
        %3912 = vmatmul.mubr.f32.gmra.mrb[0].mxu0 %v3707
        %v3913 = vpop.f32.mrb[0].mxu0
        %v3914 = vadd.f32 %v3820, %v3913
        %v3915 = vpop.f32.mrb[0].mxu0
        %3916 = vmatprep.mubr.f32.mxu0 %v3712
        %3917 = vmatmul.mubr.f32.gmra.mrb[0].mxu0 %v3711
        %v3918 = vpop.f32.mrb[0].mxu0
        %v3919 = vadd.f32 %v3820, %v3918
        %v3920 = vpop.f32.mrb[0].mxu0
        %3921 = vmatprep.mubr.f32.mxu0 %v3716
        %3922 = vmatmul.mubr.f32.gmra.mrb[0].mxu0 %v3715
        %v3923 = vpop.f32.mrb[0].mxu0
        %v3924 = vadd.f32 %v3820, %v3923
        %v3925 = vpop.f32.mrb[0].mxu0
        %3926 = vmatprep.mubr.f32.mxu0 %v3720
        %3927 = vmatmul.mubr.f32.gmra.mrb[0].mxu0 %v3719
        %v3928 = vpop.f32.mrb[0].mxu0
        %v3929 = vadd.f32 %v3820, %v3928
        %v3930 = vpop.f32.mrb[0].mxu0
        %3931 = vmatprep.mubr.f32.mxu0 %v3724
        %3932 = vmatmul.mubr.f32.gmra.mrb[0].mxu0 %v3723
        %v3933 = vpop.f32.mrb[0].mxu0
        %v3934 = vadd.f32 %v3820, %v3933
        %v3935 = vpop.f32.mrb[0].mxu0
        %3936 = vmatprep.mubr.f32.mxu0 %v3728
        %3937 = vmatmul.mubr.f32.gmra.mrb[0].mxu0 %v3727
        %v3938 = vpop.f32.mrb[0].mxu0
        %v3939 = vadd.f32 %v3820, %v3938
        %v3940 = vpop.f32.mrb[0].mxu0
        %3941 = vmatprep.mubr.f32.mxu0 %v3732
        %3942 = vmatmul.mubr.f32.gmra.mrb[0].mxu0 %v3731
        %v3943 = vpop.f32.mrb[0].mxu0
        %v3944 = vadd.f32 %v3820, %v3943
        %v3945 = vpop.f32.mrb[0].mxu0
        %3946 = vmatprep.mubr.f32.mxu0 %v3736
        %3947 = vmatmul.mubr.f32.gmra.mrb[0].mxu0 %v3735
        %v3948 = vpop.f32.mrb[0].mxu0
        %v3949 = vadd.f32 %v3820, %v3948
        %v3950 = vpop.f32.mrb[0].mxu0
        %3951 = vmatprep.mubr.f32.mxu0 %v3740
        %3952 = vmatmul.mubr.f32.gmra.mrb[0].mxu0 %v3739
        %v3953 = vpop.f32.mrb[0].mxu0
        %v3954 = vadd.f32 %v3820, %v3953
        %v3955 = vpop.f32.mrb[0].mxu0
        %3956 = vmatprep.mubr.f32.mxu0 %v3744
        %3957 = vmatmul.mubr.f32.gmra.mrb[0].mxu0 %v3743
        %v3958 = vpop.f32.mrb[0].mxu0
        %v3959 = vadd.f32 %v3820, %v3958
        %v3960 = vpop.f32.mrb[0].mxu0
        %3961 = vmatprep.mubr.f32.mxu0 %v3748
        %3962 = vmatmul.mubr.f32.gmra.mrb[0].mxu0 %v3747
        %v3963 = vpop.f32.mrb[0].mxu0
        %v3964 = vadd.f32 %v3820, %v3963
        %v3965 = vpop.f32.mrb[0].mxu0
        %3966 = vdwg.mxu0
        %3967 = vmatprep.subr.mxu0 0.0
        %3968 = vmatpush1.msra.mxu0 %v3783
        %3969 = vmatprep.subr.mxu0 0.0
        %3970 = vmatpush1.msra.mxu0 %v3784
        %3971 = vmatprep.subr.mxu0 0.0
        %3972 = vmatpush1.msra.mxu0 %v3785
        %3973 = vmatprep.subr.mxu0 0.0
        %3974 = vmatpush1.msra.mxu0 %v3786
        %3975 = vmatprep.subr.mxu0 0.0
        %3976 = vmatpush1.msra.mxu0 %v3787
        %3977 = vmatprep.subr.mxu0 0.0
        %3978 = vmatpush1.msra.mxu0 %v3788
        %3979 = vmatprep.subr.mxu0 0.0
        %3980 = vmatpush1.msra.mxu0 %v3789
        %3981 = vmatprep.subr.mxu0 0.0
        %3982 = vmatpush1.msra.mxu0 %v3790
        %3983 = vmatprep.subr.mxu0 0.0
        %3984 = vmatpush1.msra.mxu0 %v3791
        %3985 = vmatprep.subr.mxu0 0.0
        %3986 = vmatpush1.msra.mxu0 %v3792
        %3987 = vmatprep.subr.mxu0 0.0
        %3988 = vmatpush1.msra.mxu0 %v3793
        %3989 = vmatprep.subr.mxu0 0.0
        %3990 = vmatpush1.msra.mxu0 %v3794
        %3991 = vmatprep.subr.mxu0 0.0
        %3992 = vmatpush1.msra.mxu0 %v3795
        %3993 = vmatprep.subr.mxu0 0.0
        %3994 = vmatpush1.msra.mxu0 %v3796
        %3995 = vmatprep.subr.mxu0 0.0
        %3996 = vmatpush1.msra.mxu0 %v3797
        %3997 = vmatprep.subr.mxu0 0.0
        %3998 = vmatpush1.msra.mxu0 %v3798
        %3999 = vmatprep.subr.mxu0 0.0
        %4000 = vmatpush1.msra.mxu0 %v3799
        %4001 = vmatprep.subr.mxu0 0.0
        %4002 = vmatpush1.msra.mxu0 %v3800
        %4003 = vmatprep.subr.mxu0 0.0
        %4004 = vmatpush1.msra.mxu0 %v3801
        %4005 = vmatprep.subr.mxu0 0.0
        %4006 = vmatpush1.msra.mxu0 %v3802
        %4007 = vmatprep.subr.mxu0 0.0
        %4008 = vmatpush1.msra.mxu0 %v3803
        %4009 = vmatprep.subr.mxu0 0.0
        %4010 = vmatpush1.msra.mxu0 %v3804
        %4011 = vmatprep.subr.mxu0 0.0
        %4012 = vmatpush1.msra.mxu0 %v3805
        %4013 = vmatprep.subr.mxu0 0.0
        %4014 = vmatpush1.msra.mxu0 %v3806
        %4015 = vmatprep.subr.mxu0 0.0
        %4016 = vmatpush1.msra.mxu0 %v3807
        %4017 = vmatprep.subr.mxu0 0.0
        %4018 = vmatpush1.msra.mxu0 %v3808
        %4019 = vmatprep.subr.mxu0 0.0
        %4020 = vmatpush1.msra.mxu0 %v3809
        %4021 = vmatprep.subr.mxu0 0.0
        %4022 = vmatpush1.msra.mxu0 %v3810
        %4023 = vmatprep.subr.mxu0 0.0
        %4024 = vmatpush1.msra.mxu0 %v3811
        %4025 = vmatprep.subr.mxu0 0.0
        %4026 = vmatpush1.msra.mxu0 %v3812
        %4027 = vmatprep.subr.mxu0 0.0
        %4028 = vmatpush1.msra.mxu0 %v3813
        %4029 = vmatprep.subr.mxu0 0.0
        %4030 = vmatpush1.msra.mxu0 %v3814
        %4031 = vmatprep.mubr.f32.mxu0 %v3690
        %4032 = vmatmul.mubr.f32.gmra.mrb[0].mxu0 %v3689
        %v4033 = vpop.f32.mrb[0].mxu0
        %v4034 = vadd.f32 %v3889, %v4033
        %v4035 = vpop.f32.mrb[0].mxu0
        %4036 = vmatprep.mubr.f32.mxu0 %v3694
        %4037 = vmatmul.mubr.f32.gmra.mrb[0].mxu0 %v3693
        %v4038 = vpop.f32.mrb[0].mxu0
        %v4039 = vadd.f32 %v3894, %v4038
        %v4040 = vpop.f32.mrb[0].mxu0
        %4041 = vmatprep.mubr.f32.mxu0 %v3698
        %4042 = vmatmul.mubr.f32.gmra.mrb[0].mxu0 %v3697
        %v4043 = vpop.f32.mrb[0].mxu0
        %v4044 = vadd.f32 %v3899, %v4043
        %v4045 = vpop.f32.mrb[0].mxu0
        %4046 = vmatprep.mubr.f32.mxu0 %v3702
        %4047 = vmatmul.mubr.f32.gmra.mrb[0].mxu0 %v3701
        %v4048 = vpop.f32.mrb[0].mxu0
        %v4049 = vadd.f32 %v3904, %v4048
        %v4050 = vpop.f32.mrb[0].mxu0
        %4051 = vmatprep.mubr.f32.mxu0 %v3706
        %4052 = vmatmul.mubr.f32.gmra.mrb[0].mxu0 %v3705
        %v4053 = vpop.f32.mrb[0].mxu0
        %v4054 = vadd.f32 %v3909, %v4053
        %v4055 = vpop.f32.mrb[0].mxu0
        %4056 = vmatprep.mubr.f32.mxu0 %v3710
        %4057 = vmatmul.mubr.f32.gmra.mrb[0].mxu0 %v3709
        %v4058 = vpop.f32.mrb[0].mxu0
        %v4059 = vadd.f32 %v3914, %v4058
        %v4060 = vpop.f32.mrb[0].mxu0
        %4061 = vmatprep.mubr.f32.mxu0 %v3714
        %4062 = vmatmul.mubr.f32.gmra.mrb[0].mxu0 %v3713
        %v4063 = vpop.f32.mrb[0].mxu0
        %v4064 = vadd.f32 %v3919, %v4063
        %v4065 = vpop.f32.mrb[0].mxu0
        %4066 = vmatprep.mubr.f32.mxu0 %v3718
        %4067 = vmatmul.mubr.f32.gmra.mrb[0].mxu0 %v3717
        %v4068 = vpop.f32.mrb[0].mxu0
        %v4069 = vadd.f32 %v3924, %v4068
        %v4070 = vpop.f32.mrb[0].mxu0
        %4071 = vmatprep.mubr.f32.mxu0 %v3722
        %4072 = vmatmul.mubr.f32.gmra.mrb[0].mxu0 %v3721
        %v4073 = vpop.f32.mrb[0].mxu0
        %v4074 = vadd.f32 %v3929, %v4073
        %v4075 = vpop.f32.mrb[0].mxu0
        %4076 = vmatprep.mubr.f32.mxu0 %v3726
        %4077 = vmatmul.mubr.f32.gmra.mrb[0].mxu0 %v3725
        %v4078 = vpop.f32.mrb[0].mxu0
        %v4079 = vadd.f32 %v3934, %v4078
        %v4080 = vpop.f32.mrb[0].mxu0
        %4081 = vmatprep.mubr.f32.mxu0 %v3730
        %4082 = vmatmul.mubr.f32.gmra.mrb[0].mxu0 %v3729
        %v4083 = vpop.f32.mrb[0].mxu0
        %v4084 = vadd.f32 %v3939, %v4083
        %v4085 = vpop.f32.mrb[0].mxu0
        %4086 = vmatprep.mubr.f32.mxu0 %v3734
        %4087 = vmatmul.mubr.f32.gmra.mrb[0].mxu0 %v3733
        %v4088 = vpop.f32.mrb[0].mxu0
        %v4089 = vadd.f32 %v3944, %v4088
        %v4090 = vpop.f32.mrb[0].mxu0
        %4091 = vmatprep.mubr.f32.mxu0 %v3738
        %4092 = vmatmul.mubr.f32.gmra.mrb[0].mxu0 %v3737
        %v4093 = vpop.f32.mrb[0].mxu0
        %v4094 = vadd.f32 %v3949, %v4093
        %v4095 = vpop.f32.mrb[0].mxu0
        %4096 = vmatprep.mubr.f32.mxu0 %v3742
        %4097 = vmatmul.mubr.f32.gmra.mrb[0].mxu0 %v3741
        %v4098 = vpop.f32.mrb[0].mxu0
        %v4099 = vadd.f32 %v3954, %v4098
        %v4100 = vpop.f32.mrb[0].mxu0
        %4101 = vmatprep.mubr.f32.mxu0 %v3746
        %4102 = vmatmul.mubr.f32.gmra.mrb[0].mxu0 %v3745
        %v4103 = vpop.f32.mrb[0].mxu0
        %v4104 = vadd.f32 %v3959, %v4103
        %v4105 = vpop.f32.mrb[0].mxu0
        %4106 = vmatprep.mubr.f32.mxu0 %v3750
        %4107 = vmatmul.mubr.f32.gmra.mrb[0].mxu0 %v3749
        %v4108 = vpop.f32.mrb[0].mxu0
        %v4109 = vadd.f32 %v3964, %v4108
        %v4110 = vpop.f32.mrb[0].mxu0
        %4111 = vdwg.mxu0
        %v4112 = vmul.f32 %v4034, 0.5
        %v4113 = vmul.f32 %v4039, 0.5
        %v4114 = vmul.f32 %v4044, 0.5
        %v4115 = vmul.f32 %v4049, 0.5
        %v4116 = vmul.f32 %v4054, 0.5
        %v4117 = vmul.f32 %v4059, 0.5
        %v4118 = vmul.f32 %v4064, 0.5
        %v4119 = vmul.f32 %v4069, 0.5
        %v4120 = vmul.f32 %v4074, 0.5
        %v4121 = vmul.f32 %v4079, 0.5
        %v4122 = vmul.f32 %v4084, 0.5
        %v4123 = vmul.f32 %v4089, 0.5
        %v4124 = vmul.f32 %v4094, 0.5
        %v4125 = vmul.f32 %v4099, 0.5
        %v4126 = vmul.f32 %v4104, 0.5
        %v4127 = vmul.f32 %v4109, 0.5
        %v4128 = vmul.f32 %v4034, 0.70710677
        %v4129 = vmul.f32 %v4039, 0.70710677
        %v4130 = vmul.f32 %v4044, 0.70710677
        %v4131 = vmul.f32 %v4049, 0.70710677
        %v4132 = vmul.f32 %v4054, 0.70710677
        %v4133 = vmul.f32 %v4059, 0.70710677
        %v4134 = vmul.f32 %v4064, 0.70710677
        %v4135 = vmul.f32 %v4069, 0.70710677
        %v4136 = vmul.f32 %v4074, 0.70710677
        %v4137 = vmul.f32 %v4079, 0.70710677
        %v4138 = vmul.f32 %v4084, 0.70710677
        %v4139 = vmul.f32 %v4089, 0.70710677
        %v4140 = vmul.f32 %v4094, 0.70710677
        %v4141 = vmul.f32 %v4099, 0.70710677
        %v4142 = vmul.f32 %v4104, 0.70710677
        %v4143 = vmul.f32 %v4109, 0.70710677
        %v4144 = verf.f32.pop %v4128
        %v4145 = verf.f32.pop %v4129
        %v4146 = verf.f32.pop %v4130
        %v4147 = verf.f32.pop %v4131
        %v4148 = verf.f32.pop %v4132
        %v4149 = verf.f32.pop %v4133
        %v4150 = verf.f32.pop %v4134
        %v4151 = verf.f32.pop %v4135
        %v4152 = verf.f32.pop %v4136
        %v4153 = verf.f32.pop %v4137
        %v4154 = verf.f32.pop %v4138
        %v4155 = verf.f32.pop %v4139
        %v4156 = verf.f32.pop %v4140
        %v4157 = verf.f32.pop %v4141
        %v4158 = verf.f32.pop %v4142
        %v4159 = verf.f32.pop %v4143
        %v4160 = vadd.f32 %v4144, 1.0
        %v4161 = vadd.f32 %v4145, 1.0
        %v4162 = vadd.f32 %v4146, 1.0
        %v4163 = vadd.f32 %v4147, 1.0
        %v4164 = vadd.f32 %v4148, 1.0
        %v4165 = vadd.f32 %v4149, 1.0
        %v4166 = vadd.f32 %v4150, 1.0
        %v4167 = vadd.f32 %v4151, 1.0
        %v4168 = vadd.f32 %v4152, 1.0
        %v4169 = vadd.f32 %v4153, 1.0
        %v4170 = vadd.f32 %v4154, 1.0
        %v4171 = vadd.f32 %v4155, 1.0
        %v4172 = vadd.f32 %v4156, 1.0
        %v4173 = vadd.f32 %v4157, 1.0
        %v4174 = vadd.f32 %v4158, 1.0
        %v4175 = vadd.f32 %v4159, 1.0
        %v4176 = vmul.f32 %v4112, %v4160
        %v4177 = vmul.f32 %v4113, %v4161
        %v4178 = vmul.f32 %v4114, %v4162
        %v4179 = vmul.f32 %v4115, %v4163
        %v4180 = vmul.f32 %v4116, %v4164
        %v4181 = vmul.f32 %v4117, %v4165
        %v4182 = vmul.f32 %v4118, %v4166
        %v4183 = vmul.f32 %v4119, %v4167
        %v4184 = vmul.f32 %v4120, %v4168
        %v4185 = vmul.f32 %v4121, %v4169
        %v4186 = vmul.f32 %v4122, %v4170
        %v4187 = vmul.f32 %v4123, %v4171
        %v4188 = vmul.f32 %v4124, %v4172
        %v4189 = vmul.f32 %v4125, %v4173
        %v4190 = vmul.f32 %v4126, %v4174
        %v4191 = vmul.f32 %v4127, %v4175
        %v4192 = vadd.f32 %v2737, %v4176
        %v4193 = vadd.f32 %v2738, %v4177
        %v4194 = vadd.f32 %v2739, %v4178
        %v4195 = vadd.f32 %v2740, %v4179
        %v4196 = vadd.f32 %v2741, %v4180
        %v4197 = vadd.f32 %v2742, %v4181
        %v4198 = vadd.f32 %v2743, %v4182
        %v4199 = vadd.f32 %v2744, %v4183
        %v4200 = vadd.f32 %v2745, %v4184
        %v4201 = vadd.f32 %v2746, %v4185
        %v4202 = vadd.f32 %v2747, %v4186
        %v4203 = vadd.f32 %v2748, %v4187
        %v4204 = vadd.f32 %v2749, %v4188
        %v4205 = vadd.f32 %v2750, %v4189
        %v4206 = vadd.f32 %v2751, %v4190
        %v4207 = vadd.f32 %v2752, %v4191
        %4208 = vst [vmem:[#allocation2] sm:$0xff] %v4192
        %4209 = vst [vmem:[#allocation2 + $0x8] sm:$0xff] %v4193
        %4210 = vst [vmem:[#allocation2 + $0x10] sm:$0xff] %v4194
        %4211 = vst [vmem:[#allocation2 + $0x18] sm:$0xff] %v4195
        %4212 = vst [vmem:[#allocation2 + $0x20] sm:$0xff] %v4196
        %4213 = vst [vmem:[#allocation2 + $0x28] sm:$0xff] %v4197
        %4214 = vst [vmem:[#allocation2 + $0x30] sm:$0xff] %v4198
        %4215 = vst [vmem:[#allocation2 + $0x38] sm:$0xff] %v4199
        %4216 = vst [vmem:[#allocation2 + $0x40] sm:$0xff] %v4200
        %4217 = vst [vmem:[#allocation2 + $0x48] sm:$0xff] %v4201
        %4218 = vst [vmem:[#allocation2 + $0x50] sm:$0xff] %v4202
        %4219 = vst [vmem:[#allocation2 + $0x58] sm:$0xff] %v4203
        %4220 = vst [vmem:[#allocation2 + $0x60] sm:$0xff] %v4204
        %4221 = vst [vmem:[#allocation2 + $0x68] sm:$0xff] %v4205
        %4222 = vst [vmem:[#allocation2 + $0x70] sm:$0xff] %v4206
        %4223 = vst [vmem:[#allocation2 + $0x78] sm:$0xff] %v4207
        %p4224 = scmp.eq.s32.totalorder %s43, 3
        // Predicated region
        $region137: #{tpu_custom_call.1} parent=103 // pred_check
          %p4225 = pneg %p4224
        $region138: #{tpu_custom_call.1} parent=103 // pred_check_branch
          %4227 = sbr.rel (%p4225) target = $region140
        $region139: #{tpu_custom_call.1} parent=103 // pred_region
          %v4228 = vld [vmem:[#allocation2] sm:$0xff]
          %v4229 = vld [vmem:[#allocation2 + $0x8] sm:$0xff]
          %v4230 = vld [vmem:[#allocation2 + $0x10] sm:$0xff]
          %v4231 = vld [vmem:[#allocation2 + $0x18] sm:$0xff]
          %v4232 = vld [vmem:[#allocation2 + $0x20] sm:$0xff]
          %v4233 = vld [vmem:[#allocation2 + $0x28] sm:$0xff]
          %v4234 = vld [vmem:[#allocation2 + $0x30] sm:$0xff]
          %v4235 = vld [vmem:[#allocation2 + $0x38] sm:$0xff]
          %v4236 = vld [vmem:[#allocation2 + $0x40] sm:$0xff]
          %v4237 = vld [vmem:[#allocation2 + $0x48] sm:$0xff]
          %v4238 = vld [vmem:[#allocation2 + $0x50] sm:$0xff]
          %v4239 = vld [vmem:[#allocation2 + $0x58] sm:$0xff]
          %v4240 = vld [vmem:[#allocation2 + $0x60] sm:$0xff]
          %v4241 = vld [vmem:[#allocation2 + $0x68] sm:$0xff]
          %v4242 = vld [vmem:[#allocation2 + $0x70] sm:$0xff]
          %v4243 = vld [vmem:[#allocation2 + $0x78] sm:$0xff]
          %v4244 = vld [vmem:[%s19] sm:$0x1]
          %v4245 = vld [vmem:[%s20] sm:$0x1]
          %4246 = vadd.xlane.f32.xlu0 %v4228
          %v4247 = vpop.xlane.xlu0 %4246
          %4248 = vadd.xlane.f32.xlu0 %v4229
          %v4249 = vpop.xlane.xlu0 %4248
          %4250 = vadd.xlane.f32.xlu0 %v4230
          %v4251 = vpop.xlane.xlu0 %4250
          %4252 = vadd.xlane.f32.xlu0 %v4231
          %v4253 = vpop.xlane.xlu0 %4252
          %4254 = vadd.xlane.f32.xlu0 %v4232
          %v4255 = vpop.xlane.xlu0 %4254
          %4256 = vadd.xlane.f32.xlu0 %v4233
          %v4257 = vpop.xlane.xlu0 %4256
          %4258 = vadd.xlane.f32.xlu0 %v4234
          %v4259 = vpop.xlane.xlu0 %4258
          %4260 = vadd.xlane.f32.xlu0 %v4235
          %v4261 = vpop.xlane.xlu0 %4260
          %4262 = vadd.xlane.f32.xlu0 %v4236
          %v4263 = vpop.xlane.xlu0 %4262
          %4264 = vadd.xlane.f32.xlu0 %v4237
          %v4265 = vpop.xlane.xlu0 %4264
          %4266 = vadd.xlane.f32.xlu0 %v4238
          %v4267 = vpop.xlane.xlu0 %4266
          %4268 = vadd.xlane.f32.xlu0 %v4239
          %v4269 = vpop.xlane.xlu0 %4268
          %4270 = vadd.xlane.f32.xlu0 %v4240
          %v4271 = vpop.xlane.xlu0 %4270
          %4272 = vadd.xlane.f32.xlu0 %v4241
          %v4273 = vpop.xlane.xlu0 %4272
          %4274 = vadd.xlane.f32.xlu0 %v4242
          %v4275 = vpop.xlane.xlu0 %4274
          %4276 = vadd.xlane.f32.xlu0 %v4243
          %v4277 = vpop.xlane.xlu0 %4276
          %v4278 = vmul.f32 %v4247, %v1672
          %v4279 = vmul.f32 %v4249, %v1672
          %v4280 = vmul.f32 %v4251, %v1672
          %v4281 = vmul.f32 %v4253, %v1672
          %v4282 = vmul.f32 %v4255, %v1672
          %v4283 = vmul.f32 %v4257, %v1672
          %v4284 = vmul.f32 %v4259, %v1672
          %v4285 = vmul.f32 %v4261, %v1672
          %v4286 = vmul.f32 %v4263, %v1672
          %v4287 = vmul.f32 %v4265, %v1672
          %v4288 = vmul.f32 %v4267, %v1672
          %v4289 = vmul.f32 %v4269, %v1672
          %v4290 = vmul.f32 %v4271, %v1672
          %v4291 = vmul.f32 %v4273, %v1672
          %v4292 = vmul.f32 %v4275, %v1672
          %v4293 = vmul.f32 %v4277, %v1672
          %v4294 = vmul.f32 %v4228, %v4228
          %v4295 = vmul.f32 %v4229, %v4229
          %v4296 = vmul.f32 %v4230, %v4230
          %v4297 = vmul.f32 %v4231, %v4231
          %v4298 = vmul.f32 %v4232, %v4232
          %v4299 = vmul.f32 %v4233, %v4233
          %v4300 = vmul.f32 %v4234, %v4234
          %v4301 = vmul.f32 %v4235, %v4235
          %v4302 = vmul.f32 %v4236, %v4236
          %v4303 = vmul.f32 %v4237, %v4237
          %v4304 = vmul.f32 %v4238, %v4238
          %v4305 = vmul.f32 %v4239, %v4239
          %v4306 = vmul.f32 %v4240, %v4240
          %v4307 = vmul.f32 %v4241, %v4241
          %v4308 = vmul.f32 %v4242, %v4242
          %v4309 = vmul.f32 %v4243, %v4243
          %4310 = vadd.xlane.f32.xlu0 %v4294
          %v4311 = vpop.xlane.xlu0 %4310
          %4312 = vadd.xlane.f32.xlu0 %v4295
          %v4313 = vpop.xlane.xlu0 %4312
          %4314 = vadd.xlane.f32.xlu0 %v4296
          %v4315 = vpop.xlane.xlu0 %4314
          %4316 = vadd.xlane.f32.xlu0 %v4297
          %v4317 = vpop.xlane.xlu0 %4316
          %4318 = vadd.xlane.f32.xlu0 %v4298
          %v4319 = vpop.xlane.xlu0 %4318
          %4320 = vadd.xlane.f32.xlu0 %v4299
          %v4321 = vpop.xlane.xlu0 %4320
          %4322 = vadd.xlane.f32.xlu0 %v4300
          %v4323 = vpop.xlane.xlu0 %4322
          %4324 = vadd.xlane.f32.xlu0 %v4301
          %v4325 = vpop.xlane.xlu0 %4324
          %4326 = vadd.xlane.f32.xlu0 %v4302
          %v4327 = vpop.xlane.xlu0 %4326
          %4328 = vadd.xlane.f32.xlu0 %v4303
          %v4329 = vpop.xlane.xlu0 %4328
          %4330 = vadd.xlane.f32.xlu0 %v4304
          %v4331 = vpop.xlane.xlu0 %4330
          %4332 = vadd.xlane.f32.xlu0 %v4305
          %v4333 = vpop.xlane.xlu0 %4332
          %4334 = vadd.xlane.f32.xlu0 %v4306
          %v4335 = vpop.xlane.xlu0 %4334
          %4336 = vadd.xlane.f32.xlu0 %v4307
          %v4337 = vpop.xlane.xlu0 %4336
          %4338 = vadd.xlane.f32.xlu0 %v4308
          %v4339 = vpop.xlane.xlu0 %4338
          %4340 = vadd.xlane.f32.xlu0 %v4309
          %v4341 = vpop.xlane.xlu0 %4340
          %v4342 = vmul.f32 %v4311, %v1672
          %v4343 = vmul.f32 %v4313, %v1672
          %v4344 = vmul.f32 %v4315, %v1672
          %v4345 = vmul.f32 %v4317, %v1672
          %v4346 = vmul.f32 %v4319, %v1672
          %v4347 = vmul.f32 %v4321, %v1672
          %v4348 = vmul.f32 %v4323, %v1672
          %v4349 = vmul.f32 %v4325, %v1672
          %v4350 = vmul.f32 %v4327, %v1672
          %v4351 = vmul.f32 %v4329, %v1672
          %v4352 = vmul.f32 %v4331, %v1672
          %v4353 = vmul.f32 %v4333, %v1672
          %v4354 = vmul.f32 %v4335, %v1672
          %v4355 = vmul.f32 %v4337, %v1672
          %v4356 = vmul.f32 %v4339, %v1672
          %v4357 = vmul.f32 %v4341, %v1672
          %v4358 = vmul.f32 %v4278, %v4278
          %v4359 = vmul.f32 %v4279, %v4279
          %v4360 = vmul.f32 %v4280, %v4280
          %v4361 = vmul.f32 %v4281, %v4281
          %v4362 = vmul.f32 %v4282, %v4282
          %v4363 = vmul.f32 %v4283, %v4283
          %v4364 = vmul.f32 %v4284, %v4284
          %v4365 = vmul.f32 %v4285, %v4285
          %v4366 = vmul.f32 %v4286, %v4286
          %v4367 = vmul.f32 %v4287, %v4287
          %v4368 = vmul.f32 %v4288, %v4288
          %v4369 = vmul.f32 %v4289, %v4289
          %v4370 = vmul.f32 %v4290, %v4290
          %v4371 = vmul.f32 %v4291, %v4291
          %v4372 = vmul.f32 %v4292, %v4292
          %v4373 = vmul.f32 %v4293, %v4293
          %v4374 = vsub.f32 %v4342, %v4358
          %v4375 = vsub.f32 %v4343, %v4359
          %v4376 = vsub.f32 %v4344, %v4360
          %v4377 = vsub.f32 %v4345, %v4361
          %v4378 = vsub.f32 %v4346, %v4362
          %v4379 = vsub.f32 %v4347, %v4363
          %v4380 = vsub.f32 %v4348, %v4364
          %v4381 = vsub.f32 %v4349, %v4365
          %v4382 = vsub.f32 %v4350, %v4366
          %v4383 = vsub.f32 %v4351, %v4367
          %v4384 = vsub.f32 %v4352, %v4368
          %v4385 = vsub.f32 %v4353, %v4369
          %v4386 = vsub.f32 %v4354, %v4370
          %v4387 = vsub.f32 %v4355, %v4371
          %v4388 = vsub.f32 %v4356, %v4372
          %v4389 = vsub.f32 %v4357, %v4373
          %v4390 = vmax.f32 %v4374, 0.0
          %v4391 = vmax.f32 %v4375, 0.0
          %v4392 = vmax.f32 %v4376, 0.0
          %v4393 = vmax.f32 %v4377, 0.0
          %v4394 = vmax.f32 %v4378, 0.0
          %v4395 = vmax.f32 %v4379, 0.0
          %v4396 = vmax.f32 %v4380, 0.0
          %v4397 = vmax.f32 %v4381, 0.0
          %v4398 = vmax.f32 %v4382, 0.0
          %v4399 = vmax.f32 %v4383, 0.0
          %v4400 = vmax.f32 %v4384, 0.0
          %v4401 = vmax.f32 %v4385, 0.0
          %v4402 = vmax.f32 %v4386, 0.0
          %v4403 = vmax.f32 %v4387, 0.0
          %v4404 = vmax.f32 %v4388, 0.0
          %v4405 = vmax.f32 %v4389, 0.0
          %v4406 = vsub.f32 %v4228, %v4278
          %v4407 = vsub.f32 %v4229, %v4279
          %v4408 = vsub.f32 %v4230, %v4280
          %v4409 = vsub.f32 %v4231, %v4281
          %v4410 = vsub.f32 %v4232, %v4282
          %v4411 = vsub.f32 %v4233, %v4283
          %v4412 = vsub.f32 %v4234, %v4284
          %v4413 = vsub.f32 %v4235, %v4285
          %v4414 = vsub.f32 %v4236, %v4286
          %v4415 = vsub.f32 %v4237, %v4287
          %v4416 = vsub.f32 %v4238, %v4288
          %v4417 = vsub.f32 %v4239, %v4289
          %v4418 = vsub.f32 %v4240, %v4290
          %v4419 = vsub.f32 %v4241, %v4291
          %v4420 = vsub.f32 %v4242, %v4292
          %v4421 = vsub.f32 %v4243, %v4293
          %v4422 = vadd.f32 %v4390, 1e-05
          %v4423 = vadd.f32 %v4391, 1e-05
          %v4424 = vadd.f32 %v4392, 1e-05
          %v4425 = vadd.f32 %v4393, 1e-05
          %v4426 = vadd.f32 %v4394, 1e-05
          %v4427 = vadd.f32 %v4395, 1e-05
          %v4428 = vadd.f32 %v4396, 1e-05
          %v4429 = vadd.f32 %v4397, 1e-05
          %v4430 = vadd.f32 %v4398, 1e-05
          %v4431 = vadd.f32 %v4399, 1e-05
          %v4432 = vadd.f32 %v4400, 1e-05
          %v4433 = vadd.f32 %v4401, 1e-05
          %v4434 = vadd.f32 %v4402, 1e-05
          %v4435 = vadd.f32 %v4403, 1e-05
          %v4436 = vadd.f32 %v4404, 1e-05
          %v4437 = vadd.f32 %v4405, 1e-05
          %v4438 = vrsqrt.pop %v4422
          %v4439 = vrsqrt.pop %v4423
          %v4440 = vrsqrt.pop %v4424
          %v4441 = vrsqrt.pop %v4425
          %v4442 = vrsqrt.pop %v4426
          %v4443 = vrsqrt.pop %v4427
          %v4444 = vrsqrt.pop %v4428
          %v4445 = vrsqrt.pop %v4429
          %v4446 = vrsqrt.pop %v4430
          %v4447 = vrsqrt.pop %v4431
          %v4448 = vrsqrt.pop %v4432
          %v4449 = vrsqrt.pop %v4433
          %v4450 = vrsqrt.pop %v4434
          %v4451 = vrsqrt.pop %v4435
          %v4452 = vrsqrt.pop %v4436
          %v4453 = vrsqrt.pop %v4437
          %v4454 = vmul.f32 %v4406, %v4438
          %v4455 = vmul.f32 %v4407, %v4439
          %v4456 = vmul.f32 %v4408, %v4440
          %v4457 = vmul.f32 %v4409, %v4441
          %v4458 = vmul.f32 %v4410, %v4442
          %v4459 = vmul.f32 %v4411, %v4443
          %v4460 = vmul.f32 %v4412, %v4444
          %v4461 = vmul.f32 %v4413, %v4445
          %v4462 = vmul.f32 %v4414, %v4446
          %v4463 = vmul.f32 %v4415, %v4447
          %v4464 = vmul.f32 %v4416, %v4448
          %v4465 = vmul.f32 %v4417, %v4449
          %v4466 = vmul.f32 %v4418, %v4450
          %v4467 = vmul.f32 %v4419, %v4451
          %v4468 = vmul.f32 %v4420, %v4452
          %v4469 = vmul.f32 %v4421, %v4453
          %v4471 = vlaneseq
          %v4472 = vshrl.u32 %v4471, 7
          %v4473 = vsub.s32 0, %v4472
          %v4474 = vrot.slane %v4244, %v4473
          %v4476 = vmul.f32 %v4454, %v4474
          %v4477 = vmul.f32 %v4455, %v4474
          %v4478 = vmul.f32 %v4456, %v4474
          %v4479 = vmul.f32 %v4457, %v4474
          %v4480 = vmul.f32 %v4458, %v4474
          %v4481 = vmul.f32 %v4459, %v4474
          %v4482 = vmul.f32 %v4460, %v4474
          %v4483 = vmul.f32 %v4461, %v4474
          %v4484 = vmul.f32 %v4462, %v4474
          %v4485 = vmul.f32 %v4463, %v4474
          %v4486 = vmul.f32 %v4464, %v4474
          %v4487 = vmul.f32 %v4465, %v4474
          %v4488 = vmul.f32 %v4466, %v4474
          %v4489 = vmul.f32 %v4467, %v4474
          %v4490 = vmul.f32 %v4468, %v4474
          %v4491 = vmul.f32 %v4469, %v4474
          %v4493 = vlaneseq
          %v4494 = vshrl.u32 %v4493, 7
          %v4495 = vsub.s32 0, %v4494
          %v4496 = vrot.slane %v4245, %v4495
          %v4498 = vadd.f32 %v4476, %v4496
          %v4499 = vadd.f32 %v4477, %v4496
          %v4500 = vadd.f32 %v4478, %v4496
          %v4501 = vadd.f32 %v4479, %v4496
          %v4502 = vadd.f32 %v4480, %v4496
          %v4503 = vadd.f32 %v4481, %v4496
          %v4504 = vadd.f32 %v4482, %v4496
          %v4505 = vadd.f32 %v4483, %v4496
          %v4506 = vadd.f32 %v4484, %v4496
          %v4507 = vadd.f32 %v4485, %v4496
          %v4508 = vadd.f32 %v4486, %v4496
          %v4509 = vadd.f32 %v4487, %v4496
          %v4510 = vadd.f32 %v4488, %v4496
          %v4511 = vadd.f32 %v4489, %v4496
          %v4512 = vadd.f32 %v4490, %v4496
          %v4513 = vadd.f32 %v4491, %v4496
          %4514 = vst [vmem:[%s918] sm:$0xff] %v4498
          %4515 = vst [vmem:[%s918 + $0x8] sm:$0xff] %v4499
          %4516 = vst [vmem:[%s918 + $0x10] sm:$0xff] %v4500
          %4517 = vst [vmem:[%s918 + $0x18] sm:$0xff] %v4501
          %4518 = vst [vmem:[%s918 + $0x20] sm:$0xff] %v4502
          %4519 = vst [vmem:[%s918 + $0x28] sm:$0xff] %v4503
          %4520 = vst [vmem:[%s918 + $0x30] sm:$0xff] %v4504
          %4521 = vst [vmem:[%s918 + $0x38] sm:$0xff] %v4505
          %4522 = vst [vmem:[%s918 + $0x40] sm:$0xff] %v4506
          %4523 = vst [vmem:[%s918 + $0x48] sm:$0xff] %v4507
          %4524 = vst [vmem:[%s918 + $0x50] sm:$0xff] %v4508
          %4525 = vst [vmem:[%s918 + $0x58] sm:$0xff] %v4509
          %4526 = vst [vmem:[%s918 + $0x60] sm:$0xff] %v4510
          %4527 = vst [vmem:[%s918 + $0x68] sm:$0xff] %v4511
          %4528 = vst [vmem:[%s918 + $0x70] sm:$0xff] %v4512
          %4529 = vst [vmem:[%s918 + $0x78] sm:$0xff] %v4513
        $region140: #{tpu_custom_call.1} parent=103 // pred_fallthru
          _
        %s4530 = sand.u32 %s559, 1
        %s4531 = scalar_lea.sflag [#allocation5], %s4530
        %s4532 = sand.u32 %s559, 1
        %s4533 = smul.addr %s4532, 128
        %s4534 = scalar_lea.vmem [#allocation14], %s4533
        // Predicated region
        $region141: #{tpu_custom_call.1} parent=103 // pred_check
          %p4535 = pneg %p569
        $region142: #{tpu_custom_call.1} parent=103 // pred_check_branch
          %4537 = sbr.rel (%p4535) target = $region144
        $region143: #{tpu_custom_call.1} parent=103 // pred_region
          %s4538 = smul.u32 16, %s42
          %s4540 = ssub.s32 2048, 2048
          %4541 = vsyncadd %s4531, %s4540
          %s4542 = smul.addr %s4538, 128
          %s4543 = scalar_lea.hbm %s21, %s4542
          %s4544 = sshll.u32 %s4534, 4
          %s4545 = int_to_ptr.vmem [resolvable:$true] %s4544
          %4550 = dma.vmem_to_hbm [thread:$0]  %s4545, 2048, %s4543, %s4531, 128, 128, 8
        $region144: #{tpu_custom_call.1} parent=103 // pred_fallthru
          _
      $region104: #{tpu_custom_call.1} parent=5 // pred_fallthru
        _
      %p4551 = scmp.le.s32.totalorder 2, %s33
      // Predicated region
      $region145: #{tpu_custom_call.1} parent=5 // pred_check
        %p4552 = pneg %p4551
      $region146: #{tpu_custom_call.1} parent=5 // pred_check_branch
        %4554 = sbr.rel (%p4552) target = $region148
      $region147: #{tpu_custom_call.1} parent=5 // pred_region
        %s4555 = ssub.s32 %s33, 2
        // Predicated region
        $region149: #{tpu_custom_call.1} parent=147 // pred_check
          %p4556 = pneg %p575
        $region150: #{tpu_custom_call.1} parent=147 // pred_check_branch
          %4558 = sbr.rel (%p4556) target = $region152
        $region151: #{tpu_custom_call.1} parent=147 // pred_region
          %s4559 = sand.u32 %s560, 1
          %s4560 = scalar_lea.sflag [#allocation5], %s4559
          %s4561 = sand.u32 %s560, 1
          %s4562 = smul.addr %s4561, 128
          %s4563 = scalar_lea.vmem [#allocation14], %s4562
          %4564 = dma.done %s4560, 2048
        $region152: #{tpu_custom_call.1} parent=147 // pred_fallthru
          _
      $region148: #{tpu_custom_call.1} parent=5 // pred_fallthru
        _
    $region6: #{tpu_custom_call.1} parent=1 // loop_footer
      %s37 = sadd.s32 1, %s33
    $region7: #{tpu_custom_call.1} parent=1 // loop_footer_branch
      %32 = sbr.rel target = $region3
    $region8: #{tpu_custom_call.1} parent=1 // loop_exit
      _
    %4565 = vsyncpa [#allocation4], 1
    %s4566 = scalar_lea.sflag [#allocation4], 1
    %4567 = vsyncpa %s4566, 1
    %4568 = vsyncpa [#allocation7], 1
    %4569 = vsyncpa [#allocation10], 1
    %4570 = vsyncpa [#allocation5], 1
    %s4571 = scalar_lea.sflag [#allocation5], 1
    %4572 = vsyncpa %s4571, 1

</llo_original>
